<compile_context>
chip_gen: v7x
topology: tpu7x:2x2x1
jax: 0.10.0
libtpu: 0.0.40
codegen_flags: <defaults>
</compile_context>

<pallas_src>
import functools
import math

import jax
import jax.numpy as jnp
from jax.experimental import pallas as pl
from jax.experimental.pallas import tpu as pltpu


def p2p_attention_kernel(x_ref, wqkv_ref, w1_ref, w2_ref, bn_ref, out_ref,
                         pack_ref, *, num_heads):
    f32 = jnp.float32
    eps = 1e-5

    B, C, N = x_ref.shape
    H = num_heads
    D = C // H                                  # per-head depth (8 -> sublane aligned)

    # Weights stored bf16 (halves dominant HBM traffic); convert once, compute f32.
    wqkv = wqkv_ref[...].astype(f32)            # (3C, C); Wq rows pre-scaled by 1/sqrt(D)
    w1 = w1_ref[...].astype(f32)                # (F, C)
    w2 = w2_ref[...].astype(f32)                # (C, F)
    bn = bn_ref[...]                            # (C, 4) f32 = [g1, b1, g2, b2]

    # ---- per-batch: fused QKV GEMM + multi-head attention + residual ----------
    # Result (x + attn_out) is packed along lanes into pack_ref as (C, B*N).
    for b in range(B):                          # B=2 -> static unroll
        xb = x_ref[b]                           # (C, N) f32
        qkv = jnp.dot(wqkv, xb, preferred_element_type=f32)        # (3C, N)

        # Energies for every head, stacked on sublanes -> one softmax pass.
        e_blocks = []
        for h in range(H):                      # static unroll; slices are vreg-aligned
            qh = qkv[h * D:(h + 1) * D, :]                          # (D, N)
            kh = qkv[C + h * D:C + (h + 1) * D, :]                  # (D, N)
            # e[i, j] = sum_d q[d, i] * k[d, j]
            e_blocks.append(jnp.dot(qh.T, kh, preferred_element_type=f32))  # (N, N)
        e_all = jnp.concatenate(e_blocks, axis=0)                   # (H*N, N)

        m = jnp.max(e_all, axis=-1, keepdims=True)
        p = jnp.exp(e_all - m)
        s = jnp.sum(p, axis=-1, keepdims=True)
        attn = p * pl.reciprocal(s, approx=True)                    # (H*N, N)

        o_blocks = []
        for h in range(H):
            vh = qkv[2 * C + h * D:2 * C + (h + 1) * D, :]          # (D, N)
            ah = attn[h * N:(h + 1) * N, :]                         # (N, N) rows=i cols=j
            # o[d, i] = sum_j v[d, j] * a[i, j]   (stays in the (D, N) layout)
            o_blocks.append(jnp.einsum('dj,ij->di', vh, ah,
                                       preferred_element_type=f32))  # (D, N)
        attn_out = jnp.concatenate(o_blocks, axis=0)                # (C, N)

        # residual + lane-pack both batches side by side
        pack_ref[:, b * N:(b + 1) * N] = xb + attn_out

    g1, b1 = bn[:, 0:1], bn[:, 1:2]             # (C, 1): broadcast over (C, B*N)
    g2, b2 = bn[:, 2:3], bn[:, 3:4]

    # ---- BatchNorm1d #1 (training-mode biased batch stats), lane-packed -------
    r1 = pack_ref[...]                                              # (C, B*N)
    mean1 = jnp.mean(r1, axis=1, keepdims=True)
    var1 = jnp.mean((r1 - mean1) ** 2, axis=1, keepdims=True)
    y1 = (r1 - mean1) * jax.lax.rsqrt(var1 + eps) * g1 + b1

    # ---- feed-forward: conv1x1 -> LeakyReLU(0.2) -> conv1x1 (single GEMMs) ----
    h1 = jnp.dot(w1, y1, preferred_element_type=f32)                # (F, B*N)
    h1 = jnp.where(h1 >= 0, h1, 0.2 * h1)
    ff = jnp.dot(w2, h1, preferred_element_type=f32)                # (C, B*N)

    # ---- residual + BatchNorm1d #2 ---------------------------------------------
    r2 = y1 + ff
    mean2 = jnp.mean(r2, axis=1, keepdims=True)
    var2 = jnp.mean((r2 - mean2) ** 2, axis=1, keepdims=True)
    y2 = (r2 - mean2) * jax.lax.rsqrt(var2 + eps) * g2 + b2         # (C, B*N)

    # ---- unpack lanes back into the native (B, C, N) output layout ------------
    pack_ref[...] = y2
    for b in range(B):
        out_ref[b] = pack_ref[:, b * N:(b + 1) * N].astype(out_ref.dtype)


def pack_params(wq, wk, wv, w1, w2, g1, b1, g2, b2, num_heads=8):
    """One-time host-side packing (done once per model, not per call)."""
    C = wq.shape[0]
    D = C // num_heads
    inv_scale = 1.0 / math.sqrt(D)              # fold attention scale into Wq
    wqkv = jnp.concatenate([wq * inv_scale, wk, wv], axis=0).astype(jnp.bfloat16)
    bn_affine = jnp.stack([g1, b1, g2, b2], axis=1).astype(jnp.float32)    # (C, 4)
    return (wqkv, w1.astype(jnp.bfloat16), w2.astype(jnp.bfloat16), bn_affine)


def point2point_attention(x_bcn, packed, num_heads=8):
    """x_bcn: (B, C, N) in the module's native layout.  Returns (B, C, N)."""
    wqkv, w1, w2, bn_affine = packed
    B, C, N = x_bcn.shape
    kernel = functools.partial(p2p_attention_kernel, num_heads=num_heads)
    vmem = pl.BlockSpec(memory_space=pltpu.MemorySpace.VMEM)
    return pl.pallas_call(
        kernel,
        out_shape=jax.ShapeDtypeStruct((B, C, N), jnp.float32),
        in_specs=[vmem] * 5,
        out_specs=vmem,
        scratch_shapes=[pltpu.VMEM((C, B * N), jnp.float32)],
    )(x_bcn.astype(jnp.float32), wqkv, w1, w2, bn_affine)


def reference_forward(x_bcn, packed, num_heads=8):
    """Pure-JAX transcription of the PyTorch forward (training-mode BN), using
    the same effective (bf16-rounded, 1/sqrt(D)-folded) parameters as the kernel."""
    wqkv, w1, w2, bn_affine = packed
    wqkv = wqkv.astype(jnp.float32)
    w1 = w1.astype(jnp.float32)
    w2 = w2.astype(jnp.float32)
    g1, b1, g2, b2 = (bn_affine[:, 0], bn_affine[:, 1],
                      bn_affine[:, 2], bn_affine[:, 3])
    B, C, N = x_bcn.shape
    D = C // num_heads
    wq_s, wk, wv = wqkv[:C], wqkv[C:2 * C], wqkv[2 * C:]

    def conv1x1(x, w):  # x: (B, Cin, N), w: (Cout, Cin)
        return jnp.einsum('oi,bin->bon', w, x)

    def bn(x, g, b):
        mean = jnp.mean(x, axis=(0, 2), keepdims=True)
        var = jnp.mean((x - mean) ** 2, axis=(0, 2), keepdims=True)
        return ((x - mean) / jnp.sqrt(var + 1e-5) * g.reshape(1, -1, 1)
                + b.reshape(1, -1, 1))

    # 1/sqrt(D) already folded into wq_s, so no explicit energy scaling here.
    q = conv1x1(x_bcn, wq_s).reshape(B, num_heads, D, N)
    k = conv1x1(x_bcn, wk).reshape(B, num_heads, D, N)
    v = conv1x1(x_bcn, wv).reshape(B, num_heads, D, N)
    energy = jnp.einsum('bhdi,bhdj->bhij', q, k)
    attn = jax.nn.softmax(energy, axis=-1)
    xt = jnp.einsum('bhij,bhdj->bhid', attn, v)           # (B, H, N, D)
    xt = jnp.transpose(xt, (0, 2, 1, 3)).reshape(B, N, C)
    xt = jnp.transpose(xt, (0, 2, 1))                     # (B, C, N)
    y1 = bn(x_bcn + xt, g1, b1)
    h = conv1x1(y1, w1)
    h = jnp.where(h >= 0, h, 0.2 * h)
    ff = conv1x1(h, w2)
    return bn(y1 + ff, g2, b2)


if __name__ == "__main__":
    # Module defaults: q_in=..=v_out=64, num_heads=8, ff 64 -> 128 -> 64.
    B, C, N, H, F = 2, 64, 16, 8, 128
    key = jax.random.PRNGKey(0)
    ks = jax.random.split(key, 10)
    x = jax.random.normal(ks[0], (B, C, N), dtype=jnp.float32)

    # Deterministic parameter init (Conv1d weights squeezed to 2-D; BN affine randomized).
    wq = jax.random.normal(ks[1], (C, C), jnp.float32) / math.sqrt(C)
    wk = jax.random.normal(ks[2], (C, C), jnp.float32) / math.sqrt(C)
    wv = jax.random.normal(ks[3], (C, C), jnp.float32) / math.sqrt(C)
    w1 = jax.random.normal(ks[4], (F, C), jnp.float32) / math.sqrt(C)
    w2 = jax.random.normal(ks[5], (C, F), jnp.float32) / math.sqrt(F)
    g1 = 1.0 + 0.1 * jax.random.normal(ks[6], (C,), jnp.float32)
    b1 = 0.1 * jax.random.normal(ks[7], (C,), jnp.float32)
    g2 = 1.0 + 0.1 * jax.random.normal(ks[8], (C,), jnp.float32)
    b2 = 0.1 * jax.random.normal(ks[9], (C,), jnp.float32)

    packed = pack_params(wq, wk, wv, w1, w2, g1, b1, g2, b2, num_heads=H)

    out = jax.block_until_ready(point2point_attention(x, packed, num_heads=H))
    ref = jax.block_until_ready(reference_forward(x, packed, num_heads=H))

    assert out.shape == (B, C, N), out.shape
    max_err = float(jnp.max(jnp.abs(out - ref)))
    assert jnp.allclose(out, ref, rtol=2e-2, atol=2e-2), f"max abs err {max_err}"
    print("KERNEL_OK")
</pallas_src>

<mosaic_0001>
module attributes {stable_mosaic.version = 11 : i64} {
  func.func @p2p_attention_kernel(%arg0: memref<2x64x16xf32, #tpu.memory_space<vmem>>, %arg1: memref<192x64xbf16, #tpu.memory_space<vmem>>, %arg2: memref<128x64xbf16, #tpu.memory_space<vmem>>, %arg3: memref<64x128xbf16, #tpu.memory_space<vmem>>, %arg4: memref<64x4xf32, #tpu.memory_space<vmem>>, %arg5: memref<2x64x16xf32, #tpu.memory_space<vmem>>, %arg6: memref<64x32xf32, #tpu.memory_space<vmem>>) attributes {dimension_semantics = [], scalar_prefetch = 0 : i64, scratch_operands = 1 : i64, tpu.core_type = #tpu.core_type<tc>} {
    %c0 = arith.constant 0 : index
    %c0_0 = arith.constant 0 : index
    %0 = vector.load %arg1[%c0, %c0_0] : memref<192x64xbf16, #tpu.memory_space<vmem>>, vector<192x64xbf16>
    %1 = arith.extf %0 : vector<192x64xbf16> to vector<192x64xf32>
    %c0_1 = arith.constant 0 : index
    %c0_2 = arith.constant 0 : index
    %2 = vector.load %arg2[%c0_1, %c0_2] : memref<128x64xbf16, #tpu.memory_space<vmem>>, vector<128x64xbf16>
    %3 = arith.extf %2 : vector<128x64xbf16> to vector<128x64xf32>
    %c0_3 = arith.constant 0 : index
    %c0_4 = arith.constant 0 : index
    %4 = vector.load %arg3[%c0_3, %c0_4] : memref<64x128xbf16, #tpu.memory_space<vmem>>, vector<64x128xbf16>
    %5 = arith.extf %4 : vector<64x128xbf16> to vector<64x128xf32>
    %c0_5 = arith.constant 0 : index
    %c0_6 = arith.constant 0 : index
    %6 = vector.load %arg4[%c0_5, %c0_6] : memref<64x4xf32, #tpu.memory_space<vmem>>, vector<64x4xf32>
    %c0_7 = arith.constant 0 : index
    %c0_8 = arith.constant 0 : index
    %c0_9 = arith.constant 0 : index
    %7 = vector.load %arg0[%c0_7, %c0_8, %c0_9] : memref<2x64x16xf32, #tpu.memory_space<vmem>>, vector<1x64x16xf32>
    %8 = vector.shape_cast %7 : vector<1x64x16xf32> to vector<64x16xf32>
    %cst = arith.constant dense<0.000000e+00> : vector<192x16xf32>
    %9 = tpu.matmul %1, %8, %cst {dimension_numbers = #tpu.dot_dimension_numbers<[1], [0], [0], [1], [0, 0, 1, 1], [], []>} : vector<192x64xf32>, vector<64x16xf32>, vector<192x16xf32> -> vector<192x16xf32>
    %10 = vector.extract_strided_slice %9 {offsets = [0, 0], sizes = [8, 16], strides = [1, 1]} : vector<192x16xf32> to vector<8x16xf32>
    %11 = vector.extract_strided_slice %9 {offsets = [64, 0], sizes = [8, 16], strides = [1, 1]} : vector<192x16xf32> to vector<8x16xf32>
    %12 = tpu.transpose %10, [1, 0] : vector<8x16xf32> -> vector<16x8xf32>
    %cst_10 = arith.constant dense<0.000000e+00> : vector<16x16xf32>
    %13 = tpu.matmul %12, %11, %cst_10 {dimension_numbers = #tpu.dot_dimension_numbers<[1], [0], [0], [1], [0, 0, 1, 1], [], []>} : vector<16x8xf32>, vector<8x16xf32>, vector<16x16xf32> -> vector<16x16xf32>
    %14 = vector.extract_strided_slice %9 {offsets = [8, 0], sizes = [8, 16], strides = [1, 1]} : vector<192x16xf32> to vector<8x16xf32>
    %15 = vector.extract_strided_slice %9 {offsets = [72, 0], sizes = [8, 16], strides = [1, 1]} : vector<192x16xf32> to vector<8x16xf32>
    %16 = tpu.transpose %14, [1, 0] : vector<8x16xf32> -> vector<16x8xf32>
    %cst_11 = arith.constant dense<0.000000e+00> : vector<16x16xf32>
    %17 = tpu.matmul %16, %15, %cst_11 {dimension_numbers = #tpu.dot_dimension_numbers<[1], [0], [0], [1], [0, 0, 1, 1], [], []>} : vector<16x8xf32>, vector<8x16xf32>, vector<16x16xf32> -> vector<16x16xf32>
    %18 = vector.extract_strided_slice %9 {offsets = [16, 0], sizes = [8, 16], strides = [1, 1]} : vector<192x16xf32> to vector<8x16xf32>
    %19 = vector.extract_strided_slice %9 {offsets = [80, 0], sizes = [8, 16], strides = [1, 1]} : vector<192x16xf32> to vector<8x16xf32>
    %20 = tpu.transpose %18, [1, 0] : vector<8x16xf32> -> vector<16x8xf32>
    %cst_12 = arith.constant dense<0.000000e+00> : vector<16x16xf32>
    %21 = tpu.matmul %20, %19, %cst_12 {dimension_numbers = #tpu.dot_dimension_numbers<[1], [0], [0], [1], [0, 0, 1, 1], [], []>} : vector<16x8xf32>, vector<8x16xf32>, vector<16x16xf32> -> vector<16x16xf32>
    %22 = vector.extract_strided_slice %9 {offsets = [24, 0], sizes = [8, 16], strides = [1, 1]} : vector<192x16xf32> to vector<8x16xf32>
    %23 = vector.extract_strided_slice %9 {offsets = [88, 0], sizes = [8, 16], strides = [1, 1]} : vector<192x16xf32> to vector<8x16xf32>
    %24 = tpu.transpose %22, [1, 0] : vector<8x16xf32> -> vector<16x8xf32>
    %cst_13 = arith.constant dense<0.000000e+00> : vector<16x16xf32>
    %25 = tpu.matmul %24, %23, %cst_13 {dimension_numbers = #tpu.dot_dimension_numbers<[1], [0], [0], [1], [0, 0, 1, 1], [], []>} : vector<16x8xf32>, vector<8x16xf32>, vector<16x16xf32> -> vector<16x16xf32>
    %26 = vector.extract_strided_slice %9 {offsets = [32, 0], sizes = [8, 16], strides = [1, 1]} : vector<192x16xf32> to vector<8x16xf32>
    %27 = vector.extract_strided_slice %9 {offsets = [96, 0], sizes = [8, 16], strides = [1, 1]} : vector<192x16xf32> to vector<8x16xf32>
    %28 = tpu.transpose %26, [1, 0] : vector<8x16xf32> -> vector<16x8xf32>
    %cst_14 = arith.constant dense<0.000000e+00> : vector<16x16xf32>
    %29 = tpu.matmul %28, %27, %cst_14 {dimension_numbers = #tpu.dot_dimension_numbers<[1], [0], [0], [1], [0, 0, 1, 1], [], []>} : vector<16x8xf32>, vector<8x16xf32>, vector<16x16xf32> -> vector<16x16xf32>
    %30 = vector.extract_strided_slice %9 {offsets = [40, 0], sizes = [8, 16], strides = [1, 1]} : vector<192x16xf32> to vector<8x16xf32>
    %31 = vector.extract_strided_slice %9 {offsets = [104, 0], sizes = [8, 16], strides = [1, 1]} : vector<192x16xf32> to vector<8x16xf32>
    %32 = tpu.transpose %30, [1, 0] : vector<8x16xf32> -> vector<16x8xf32>
    %cst_15 = arith.constant dense<0.000000e+00> : vector<16x16xf32>
    %33 = tpu.matmul %32, %31, %cst_15 {dimension_numbers = #tpu.dot_dimension_numbers<[1], [0], [0], [1], [0, 0, 1, 1], [], []>} : vector<16x8xf32>, vector<8x16xf32>, vector<16x16xf32> -> vector<16x16xf32>
    %34 = vector.extract_strided_slice %9 {offsets = [48, 0], sizes = [8, 16], strides = [1, 1]} : vector<192x16xf32> to vector<8x16xf32>
    %35 = vector.extract_strided_slice %9 {offsets = [112, 0], sizes = [8, 16], strides = [1, 1]} : vector<192x16xf32> to vector<8x16xf32>
    %36 = tpu.transpose %34, [1, 0] : vector<8x16xf32> -> vector<16x8xf32>
    %cst_16 = arith.constant dense<0.000000e+00> : vector<16x16xf32>
    %37 = tpu.matmul %36, %35, %cst_16 {dimension_numbers = #tpu.dot_dimension_numbers<[1], [0], [0], [1], [0, 0, 1, 1], [], []>} : vector<16x8xf32>, vector<8x16xf32>, vector<16x16xf32> -> vector<16x16xf32>
    %38 = vector.extract_strided_slice %9 {offsets = [56, 0], sizes = [8, 16], strides = [1, 1]} : vector<192x16xf32> to vector<8x16xf32>
    %39 = vector.extract_strided_slice %9 {offsets = [120, 0], sizes = [8, 16], strides = [1, 1]} : vector<192x16xf32> to vector<8x16xf32>
    %40 = tpu.transpose %38, [1, 0] : vector<8x16xf32> -> vector<16x8xf32>
    %cst_17 = arith.constant dense<0.000000e+00> : vector<16x16xf32>
    %41 = tpu.matmul %40, %39, %cst_17 {dimension_numbers = #tpu.dot_dimension_numbers<[1], [0], [0], [1], [0, 0, 1, 1], [], []>} : vector<16x8xf32>, vector<8x16xf32>, vector<16x16xf32> -> vector<16x16xf32>
    %42 = tpu.concatenate %13, %17, %21, %25, %29, %33, %37, %41 in 0 : vector<16x16xf32>, vector<16x16xf32>, vector<16x16xf32>, vector<16x16xf32>, vector<16x16xf32>, vector<16x16xf32>, vector<16x16xf32>, vector<16x16xf32> -> vector<128x16xf32>
    %cst_18 = arith.constant dense<0xFF800000> : vector<128xf32>
    %43 = vector.multi_reduction <maximumf>, %42, %cst_18 [1] : vector<128x16xf32> to vector<128xf32>
    %44 = vector.shape_cast %43 : vector<128xf32> to vector<128x1xf32>
    %45 = vector.broadcast %44 : vector<128x1xf32> to vector<128x16xf32>
    %46 = arith.subf %42, %45 : vector<128x16xf32>
    %47 = math.exp %46 : vector<128x16xf32>
    %cst_19 = arith.constant dense<0.000000e+00> : vector<128xf32>
    %48 = vector.multi_reduction <add>, %47, %cst_19 [1] : vector<128x16xf32> to vector<128xf32>
    %49 = vector.shape_cast %48 : vector<128xf32> to vector<128x1xf32>
    %50 = tpu.reciprocal %49 {approx = true} : vector<128x1xf32> -> vector<128x1xf32>
    %51 = vector.broadcast %50 : vector<128x1xf32> to vector<128x16xf32>
    %52 = arith.mulf %47, %51 : vector<128x16xf32>
    %53 = vector.extract_strided_slice %9 {offsets = [128, 0], sizes = [8, 16], strides = [1, 1]} : vector<192x16xf32> to vector<8x16xf32>
    %54 = vector.extract_strided_slice %52 {offsets = [0, 0], sizes = [16, 16], strides = [1, 1]} : vector<128x16xf32> to vector<16x16xf32>
    "tpu.trace_start"() <{level = 10 : i32, message = "dj,ij->di"}> : () -> ()
    %cst_20 = arith.constant dense<0.000000e+00> : vector<8x16xf32>
    %55 = tpu.matmul %53, %54, %cst_20 {dimension_numbers = #tpu.dot_dimension_numbers<[1], [1], [0], [0], [0, 0, 1, 0], [], []>} : vector<8x16xf32>, vector<16x16xf32>, vector<8x16xf32> -> vector<8x16xf32>
    "tpu.trace_stop"() : () -> ()
    %56 = vector.extract_strided_slice %9 {offsets = [136, 0], sizes = [8, 16], strides = [1, 1]} : vector<192x16xf32> to vector<8x16xf32>
    %57 = vector.extract_strided_slice %52 {offsets = [16, 0], sizes = [16, 16], strides = [1, 1]} : vector<128x16xf32> to vector<16x16xf32>
    "tpu.trace_start"() <{level = 10 : i32, message = "dj,ij->di"}> : () -> ()
    %cst_21 = arith.constant dense<0.000000e+00> : vector<8x16xf32>
    %58 = tpu.matmul %56, %57, %cst_21 {dimension_numbers = #tpu.dot_dimension_numbers<[1], [1], [0], [0], [0, 0, 1, 0], [], []>} : vector<8x16xf32>, vector<16x16xf32>, vector<8x16xf32> -> vector<8x16xf32>
    "tpu.trace_stop"() : () -> ()
    %59 = vector.extract_strided_slice %9 {offsets = [144, 0], sizes = [8, 16], strides = [1, 1]} : vector<192x16xf32> to vector<8x16xf32>
    %60 = vector.extract_strided_slice %52 {offsets = [32, 0], sizes = [16, 16], strides = [1, 1]} : vector<128x16xf32> to vector<16x16xf32>
    "tpu.trace_start"() <{level = 10 : i32, message = "dj,ij->di"}> : () -> ()
    %cst_22 = arith.constant dense<0.000000e+00> : vector<8x16xf32>
    %61 = tpu.matmul %59, %60, %cst_22 {dimension_numbers = #tpu.dot_dimension_numbers<[1], [1], [0], [0], [0, 0, 1, 0], [], []>} : vector<8x16xf32>, vector<16x16xf32>, vector<8x16xf32> -> vector<8x16xf32>
    "tpu.trace_stop"() : () -> ()
    %62 = vector.extract_strided_slice %9 {offsets = [152, 0], sizes = [8, 16], strides = [1, 1]} : vector<192x16xf32> to vector<8x16xf32>
    %63 = vector.extract_strided_slice %52 {offsets = [48, 0], sizes = [16, 16], strides = [1, 1]} : vector<128x16xf32> to vector<16x16xf32>
    "tpu.trace_start"() <{level = 10 : i32, message = "dj,ij->di"}> : () -> ()
    %cst_23 = arith.constant dense<0.000000e+00> : vector<8x16xf32>
    %64 = tpu.matmul %62, %63, %cst_23 {dimension_numbers = #tpu.dot_dimension_numbers<[1], [1], [0], [0], [0, 0, 1, 0], [], []>} : vector<8x16xf32>, vector<16x16xf32>, vector<8x16xf32> -> vector<8x16xf32>
    "tpu.trace_stop"() : () -> ()
    %65 = vector.extract_strided_slice %9 {offsets = [160, 0], sizes = [8, 16], strides = [1, 1]} : vector<192x16xf32> to vector<8x16xf32>
    %66 = vector.extract_strided_slice %52 {offsets = [64, 0], sizes = [16, 16], strides = [1, 1]} : vector<128x16xf32> to vector<16x16xf32>
    "tpu.trace_start"() <{level = 10 : i32, message = "dj,ij->di"}> : () -> ()
    %cst_24 = arith.constant dense<0.000000e+00> : vector<8x16xf32>
    %67 = tpu.matmul %65, %66, %cst_24 {dimension_numbers = #tpu.dot_dimension_numbers<[1], [1], [0], [0], [0, 0, 1, 0], [], []>} : vector<8x16xf32>, vector<16x16xf32>, vector<8x16xf32> -> vector<8x16xf32>
    "tpu.trace_stop"() : () -> ()
    %68 = vector.extract_strided_slice %9 {offsets = [168, 0], sizes = [8, 16], strides = [1, 1]} : vector<192x16xf32> to vector<8x16xf32>
    %69 = vector.extract_strided_slice %52 {offsets = [80, 0], sizes = [16, 16], strides = [1, 1]} : vector<128x16xf32> to vector<16x16xf32>
    "tpu.trace_start"() <{level = 10 : i32, message = "dj,ij->di"}> : () -> ()
    %cst_25 = arith.constant dense<0.000000e+00> : vector<8x16xf32>
    %70 = tpu.matmul %68, %69, %cst_25 {dimension_numbers = #tpu.dot_dimension_numbers<[1], [1], [0], [0], [0, 0, 1, 0], [], []>} : vector<8x16xf32>, vector<16x16xf32>, vector<8x16xf32> -> vector<8x16xf32>
    "tpu.trace_stop"() : () -> ()
    %71 = vector.extract_strided_slice %9 {offsets = [176, 0], sizes = [8, 16], strides = [1, 1]} : vector<192x16xf32> to vector<8x16xf32>
    %72 = vector.extract_strided_slice %52 {offsets = [96, 0], sizes = [16, 16], strides = [1, 1]} : vector<128x16xf32> to vector<16x16xf32>
    "tpu.trace_start"() <{level = 10 : i32, message = "dj,ij->di"}> : () -> ()
    %cst_26 = arith.constant dense<0.000000e+00> : vector<8x16xf32>
    %73 = tpu.matmul %71, %72, %cst_26 {dimension_numbers = #tpu.dot_dimension_numbers<[1], [1], [0], [0], [0, 0, 1, 0], [], []>} : vector<8x16xf32>, vector<16x16xf32>, vector<8x16xf32> -> vector<8x16xf32>
    "tpu.trace_stop"() : () -> ()
    %74 = vector.extract_strided_slice %9 {offsets = [184, 0], sizes = [8, 16], strides = [1, 1]} : vector<192x16xf32> to vector<8x16xf32>
    %75 = vector.extract_strided_slice %52 {offsets = [112, 0], sizes = [16, 16], strides = [1, 1]} : vector<128x16xf32> to vector<16x16xf32>
    "tpu.trace_start"() <{level = 10 : i32, message = "dj,ij->di"}> : () -> ()
    %cst_27 = arith.constant dense<0.000000e+00> : vector<8x16xf32>
    %76 = tpu.matmul %74, %75, %cst_27 {dimension_numbers = #tpu.dot_dimension_numbers<[1], [1], [0], [0], [0, 0, 1, 0], [], []>} : vector<8x16xf32>, vector<16x16xf32>, vector<8x16xf32> -> vector<8x16xf32>
    "tpu.trace_stop"() : () -> ()
    %77 = tpu.concatenate %55, %58, %61, %64, %67, %70, %73, %76 in 0 : vector<8x16xf32>, vector<8x16xf32>, vector<8x16xf32>, vector<8x16xf32>, vector<8x16xf32>, vector<8x16xf32>, vector<8x16xf32>, vector<8x16xf32> -> vector<64x16xf32>
    %78 = arith.addf %8, %77 : vector<64x16xf32>
    %c0_28 = arith.constant 0 : index
    %c0_29 = arith.constant 0 : index
    %79 = vector.load %arg6[%c0_28, %c0_29] : memref<64x32xf32, #tpu.memory_space<vmem>>, vector<64x16xf32>
    tpu.vector_store %arg6[%c0_28, %c0_29], %78 {strides = array<i32>} : memref<64x32xf32, #tpu.memory_space<vmem>>, vector<64x16xf32>,
    %c1 = arith.constant 1 : index
    %c0_30 = arith.constant 0 : index
    %c0_31 = arith.constant 0 : index
    %80 = vector.load %arg0[%c1, %c0_30, %c0_31] : memref<2x64x16xf32, #tpu.memory_space<vmem>>, vector<1x64x16xf32>
    %81 = vector.shape_cast %80 : vector<1x64x16xf32> to vector<64x16xf32>
    %cst_32 = arith.constant dense<0.000000e+00> : vector<192x16xf32>
    %82 = tpu.matmul %1, %81, %cst_32 {dimension_numbers = #tpu.dot_dimension_numbers<[1], [0], [0], [1], [0, 0, 1, 1], [], []>} : vector<192x64xf32>, vector<64x16xf32>, vector<192x16xf32> -> vector<192x16xf32>
    %83 = vector.extract_strided_slice %82 {offsets = [0, 0], sizes = [8, 16], strides = [1, 1]} : vector<192x16xf32> to vector<8x16xf32>
    %84 = vector.extract_strided_slice %82 {offsets = [64, 0], sizes = [8, 16], strides = [1, 1]} : vector<192x16xf32> to vector<8x16xf32>
    %85 = tpu.transpose %83, [1, 0] : vector<8x16xf32> -> vector<16x8xf32>
    %cst_33 = arith.constant dense<0.000000e+00> : vector<16x16xf32>
    %86 = tpu.matmul %85, %84, %cst_33 {dimension_numbers = #tpu.dot_dimension_numbers<[1], [0], [0], [1], [0, 0, 1, 1], [], []>} : vector<16x8xf32>, vector<8x16xf32>, vector<16x16xf32> -> vector<16x16xf32>
    %87 = vector.extract_strided_slice %82 {offsets = [8, 0], sizes = [8, 16], strides = [1, 1]} : vector<192x16xf32> to vector<8x16xf32>
    %88 = vector.extract_strided_slice %82 {offsets = [72, 0], sizes = [8, 16], strides = [1, 1]} : vector<192x16xf32> to vector<8x16xf32>
    %89 = tpu.transpose %87, [1, 0] : vector<8x16xf32> -> vector<16x8xf32>
    %cst_34 = arith.constant dense<0.000000e+00> : vector<16x16xf32>
    %90 = tpu.matmul %89, %88, %cst_34 {dimension_numbers = #tpu.dot_dimension_numbers<[1], [0], [0], [1], [0, 0, 1, 1], [], []>} : vector<16x8xf32>, vector<8x16xf32>, vector<16x16xf32> -> vector<16x16xf32>
    %91 = vector.extract_strided_slice %82 {offsets = [16, 0], sizes = [8, 16], strides = [1, 1]} : vector<192x16xf32> to vector<8x16xf32>
    %92 = vector.extract_strided_slice %82 {offsets = [80, 0], sizes = [8, 16], strides = [1, 1]} : vector<192x16xf32> to vector<8x16xf32>
    %93 = tpu.transpose %91, [1, 0] : vector<8x16xf32> -> vector<16x8xf32>
    %cst_35 = arith.constant dense<0.000000e+00> : vector<16x16xf32>
    %94 = tpu.matmul %93, %92, %cst_35 {dimension_numbers = #tpu.dot_dimension_numbers<[1], [0], [0], [1], [0, 0, 1, 1], [], []>} : vector<16x8xf32>, vector<8x16xf32>, vector<16x16xf32> -> vector<16x16xf32>
    %95 = vector.extract_strided_slice %82 {offsets = [24, 0], sizes = [8, 16], strides = [1, 1]} : vector<192x16xf32> to vector<8x16xf32>
    %96 = vector.extract_strided_slice %82 {offsets = [88, 0], sizes = [8, 16], strides = [1, 1]} : vector<192x16xf32> to vector<8x16xf32>
    %97 = tpu.transpose %95, [1, 0] : vector<8x16xf32> -> vector<16x8xf32>
    %cst_36 = arith.constant dense<0.000000e+00> : vector<16x16xf32>
    %98 = tpu.matmul %97, %96, %cst_36 {dimension_numbers = #tpu.dot_dimension_numbers<[1], [0], [0], [1], [0, 0, 1, 1], [], []>} : vector<16x8xf32>, vector<8x16xf32>, vector<16x16xf32> -> vector<16x16xf32>
    %99 = vector.extract_strided_slice %82 {offsets = [32, 0], sizes = [8, 16], strides = [1, 1]} : vector<192x16xf32> to vector<8x16xf32>
    %100 = vector.extract_strided_slice %82 {offsets = [96, 0], sizes = [8, 16], strides = [1, 1]} : vector<192x16xf32> to vector<8x16xf32>
    %101 = tpu.transpose %99, [1, 0] : vector<8x16xf32> -> vector<16x8xf32>
    %cst_37 = arith.constant dense<0.000000e+00> : vector<16x16xf32>
    %102 = tpu.matmul %101, %100, %cst_37 {dimension_numbers = #tpu.dot_dimension_numbers<[1], [0], [0], [1], [0, 0, 1, 1], [], []>} : vector<16x8xf32>, vector<8x16xf32>, vector<16x16xf32> -> vector<16x16xf32>
    %103 = vector.extract_strided_slice %82 {offsets = [40, 0], sizes = [8, 16], strides = [1, 1]} : vector<192x16xf32> to vector<8x16xf32>
    %104 = vector.extract_strided_slice %82 {offsets = [104, 0], sizes = [8, 16], strides = [1, 1]} : vector<192x16xf32> to vector<8x16xf32>
    %105 = tpu.transpose %103, [1, 0] : vector<8x16xf32> -> vector<16x8xf32>
    %cst_38 = arith.constant dense<0.000000e+00> : vector<16x16xf32>
    %106 = tpu.matmul %105, %104, %cst_38 {dimension_numbers = #tpu.dot_dimension_numbers<[1], [0], [0], [1], [0, 0, 1, 1], [], []>} : vector<16x8xf32>, vector<8x16xf32>, vector<16x16xf32> -> vector<16x16xf32>
    %107 = vector.extract_strided_slice %82 {offsets = [48, 0], sizes = [8, 16], strides = [1, 1]} : vector<192x16xf32> to vector<8x16xf32>
    %108 = vector.extract_strided_slice %82 {offsets = [112, 0], sizes = [8, 16], strides = [1, 1]} : vector<192x16xf32> to vector<8x16xf32>
    %109 = tpu.transpose %107, [1, 0] : vector<8x16xf32> -> vector<16x8xf32>
    %cst_39 = arith.constant dense<0.000000e+00> : vector<16x16xf32>
    %110 = tpu.matmul %109, %108, %cst_39 {dimension_numbers = #tpu.dot_dimension_numbers<[1], [0], [0], [1], [0, 0, 1, 1], [], []>} : vector<16x8xf32>, vector<8x16xf32>, vector<16x16xf32> -> vector<16x16xf32>
    %111 = vector.extract_strided_slice %82 {offsets = [56, 0], sizes = [8, 16], strides = [1, 1]} : vector<192x16xf32> to vector<8x16xf32>
    %112 = vector.extract_strided_slice %82 {offsets = [120, 0], sizes = [8, 16], strides = [1, 1]} : vector<192x16xf32> to vector<8x16xf32>
    %113 = tpu.transpose %111, [1, 0] : vector<8x16xf32> -> vector<16x8xf32>
    %cst_40 = arith.constant dense<0.000000e+00> : vector<16x16xf32>
    %114 = tpu.matmul %113, %112, %cst_40 {dimension_numbers = #tpu.dot_dimension_numbers<[1], [0], [0], [1], [0, 0, 1, 1], [], []>} : vector<16x8xf32>, vector<8x16xf32>, vector<16x16xf32> -> vector<16x16xf32>
    %115 = tpu.concatenate %86, %90, %94, %98, %102, %106, %110, %114 in 0 : vector<16x16xf32>, vector<16x16xf32>, vector<16x16xf32>, vector<16x16xf32>, vector<16x16xf32>, vector<16x16xf32>, vector<16x16xf32>, vector<16x16xf32> -> vector<128x16xf32>
    %cst_41 = arith.constant dense<0xFF800000> : vector<128xf32>
    %116 = vector.multi_reduction <maximumf>, %115, %cst_41 [1] : vector<128x16xf32> to vector<128xf32>
    %117 = vector.shape_cast %116 : vector<128xf32> to vector<128x1xf32>
    %118 = vector.broadcast %117 : vector<128x1xf32> to vector<128x16xf32>
    %119 = arith.subf %115, %118 : vector<128x16xf32>
    %120 = math.exp %119 : vector<128x16xf32>
    %cst_42 = arith.constant dense<0.000000e+00> : vector<128xf32>
    %121 = vector.multi_reduction <add>, %120, %cst_42 [1] : vector<128x16xf32> to vector<128xf32>
    %122 = vector.shape_cast %121 : vector<128xf32> to vector<128x1xf32>
    %123 = tpu.reciprocal %122 {approx = true} : vector<128x1xf32> -> vector<128x1xf32>
    %124 = vector.broadcast %123 : vector<128x1xf32> to vector<128x16xf32>
    %125 = arith.mulf %120, %124 : vector<128x16xf32>
    %126 = vector.extract_strided_slice %82 {offsets = [128, 0], sizes = [8, 16], strides = [1, 1]} : vector<192x16xf32> to vector<8x16xf32>
    %127 = vector.extract_strided_slice %125 {offsets = [0, 0], sizes = [16, 16], strides = [1, 1]} : vector<128x16xf32> to vector<16x16xf32>
    "tpu.trace_start"() <{level = 10 : i32, message = "dj,ij->di"}> : () -> ()
    %cst_43 = arith.constant dense<0.000000e+00> : vector<8x16xf32>
    %128 = tpu.matmul %126, %127, %cst_43 {dimension_numbers = #tpu.dot_dimension_numbers<[1], [1], [0], [0], [0, 0, 1, 0], [], []>} : vector<8x16xf32>, vector<16x16xf32>, vector<8x16xf32> -> vector<8x16xf32>
    "tpu.trace_stop"() : () -> ()
    %129 = vector.extract_strided_slice %82 {offsets = [136, 0], sizes = [8, 16], strides = [1, 1]} : vector<192x16xf32> to vector<8x16xf32>
    %130 = vector.extract_strided_slice %125 {offsets = [16, 0], sizes = [16, 16], strides = [1, 1]} : vector<128x16xf32> to vector<16x16xf32>
    "tpu.trace_start"() <{level = 10 : i32, message = "dj,ij->di"}> : () -> ()
    %cst_44 = arith.constant dense<0.000000e+00> : vector<8x16xf32>
    %131 = tpu.matmul %129, %130, %cst_44 {dimension_numbers = #tpu.dot_dimension_numbers<[1], [1], [0], [0], [0, 0, 1, 0], [], []>} : vector<8x16xf32>, vector<16x16xf32>, vector<8x16xf32> -> vector<8x16xf32>
    "tpu.trace_stop"() : () -> ()
    %132 = vector.extract_strided_slice %82 {offsets = [144, 0], sizes = [8, 16], strides = [1, 1]} : vector<192x16xf32> to vector<8x16xf32>
    %133 = vector.extract_strided_slice %125 {offsets = [32, 0], sizes = [16, 16], strides = [1, 1]} : vector<128x16xf32> to vector<16x16xf32>
    "tpu.trace_start"() <{level = 10 : i32, message = "dj,ij->di"}> : () -> ()
    %cst_45 = arith.constant dense<0.000000e+00> : vector<8x16xf32>
    %134 = tpu.matmul %132, %133, %cst_45 {dimension_numbers = #tpu.dot_dimension_numbers<[1], [1], [0], [0], [0, 0, 1, 0], [], []>} : vector<8x16xf32>, vector<16x16xf32>, vector<8x16xf32> -> vector<8x16xf32>
    "tpu.trace_stop"() : () -> ()
    %135 = vector.extract_strided_slice %82 {offsets = [152, 0], sizes = [8, 16], strides = [1, 1]} : vector<192x16xf32> to vector<8x16xf32>
    %136 = vector.extract_strided_slice %125 {offsets = [48, 0], sizes = [16, 16], strides = [1, 1]} : vector<128x16xf32> to vector<16x16xf32>
    "tpu.trace_start"() <{level = 10 : i32, message = "dj,ij->di"}> : () -> ()
    %cst_46 = arith.constant dense<0.000000e+00> : vector<8x16xf32>
    %137 = tpu.matmul %135, %136, %cst_46 {dimension_numbers = #tpu.dot_dimension_numbers<[1], [1], [0], [0], [0, 0, 1, 0], [], []>} : vector<8x16xf32>, vector<16x16xf32>, vector<8x16xf32> -> vector<8x16xf32>
    "tpu.trace_stop"() : () -> ()
    %138 = vector.extract_strided_slice %82 {offsets = [160, 0], sizes = [8, 16], strides = [1, 1]} : vector<192x16xf32> to vector<8x16xf32>
    %139 = vector.extract_strided_slice %125 {offsets = [64, 0], sizes = [16, 16], strides = [1, 1]} : vector<128x16xf32> to vector<16x16xf32>
    "tpu.trace_start"() <{level = 10 : i32, message = "dj,ij->di"}> : () -> ()
    %cst_47 = arith.constant dense<0.000000e+00> : vector<8x16xf32>
    %140 = tpu.matmul %138, %139, %cst_47 {dimension_numbers = #tpu.dot_dimension_numbers<[1], [1], [0], [0], [0, 0, 1, 0], [], []>} : vector<8x16xf32>, vector<16x16xf32>, vector<8x16xf32> -> vector<8x16xf32>
    "tpu.trace_stop"() : () -> ()
    %141 = vector.extract_strided_slice %82 {offsets = [168, 0], sizes = [8, 16], strides = [1, 1]} : vector<192x16xf32> to vector<8x16xf32>
    %142 = vector.extract_strided_slice %125 {offsets = [80, 0], sizes = [16, 16], strides = [1, 1]} : vector<128x16xf32> to vector<16x16xf32>
    "tpu.trace_start"() <{level = 10 : i32, message = "dj,ij->di"}> : () -> ()
    %cst_48 = arith.constant dense<0.000000e+00> : vector<8x16xf32>
    %143 = tpu.matmul %141, %142, %cst_48 {dimension_numbers = #tpu.dot_dimension_numbers<[1], [1], [0], [0], [0, 0, 1, 0], [], []>} : vector<8x16xf32>, vector<16x16xf32>, vector<8x16xf32> -> vector<8x16xf32>
    "tpu.trace_stop"() : () -> ()
    %144 = vector.extract_strided_slice %82 {offsets = [176, 0], sizes = [8, 16], strides = [1, 1]} : vector<192x16xf32> to vector<8x16xf32>
    %145 = vector.extract_strided_slice %125 {offsets = [96, 0], sizes = [16, 16], strides = [1, 1]} : vector<128x16xf32> to vector<16x16xf32>
    "tpu.trace_start"() <{level = 10 : i32, message = "dj,ij->di"}> : () -> ()
    %cst_49 = arith.constant dense<0.000000e+00> : vector<8x16xf32>
    %146 = tpu.matmul %144, %145, %cst_49 {dimension_numbers = #tpu.dot_dimension_numbers<[1], [1], [0], [0], [0, 0, 1, 0], [], []>} : vector<8x16xf32>, vector<16x16xf32>, vector<8x16xf32> -> vector<8x16xf32>
    "tpu.trace_stop"() : () -> ()
    %147 = vector.extract_strided_slice %82 {offsets = [184, 0], sizes = [8, 16], strides = [1, 1]} : vector<192x16xf32> to vector<8x16xf32>
    %148 = vector.extract_strided_slice %125 {offsets = [112, 0], sizes = [16, 16], strides = [1, 1]} : vector<128x16xf32> to vector<16x16xf32>
    "tpu.trace_start"() <{level = 10 : i32, message = "dj,ij->di"}> : () -> ()
    %cst_50 = arith.constant dense<0.000000e+00> : vector<8x16xf32>
    %149 = tpu.matmul %147, %148, %cst_50 {dimension_numbers = #tpu.dot_dimension_numbers<[1], [1], [0], [0], [0, 0, 1, 0], [], []>} : vector<8x16xf32>, vector<16x16xf32>, vector<8x16xf32> -> vector<8x16xf32>
    "tpu.trace_stop"() : () -> ()
    %150 = tpu.concatenate %128, %131, %134, %137, %140, %143, %146, %149 in 0 : vector<8x16xf32>, vector<8x16xf32>, vector<8x16xf32>, vector<8x16xf32>, vector<8x16xf32>, vector<8x16xf32>, vector<8x16xf32>, vector<8x16xf32> -> vector<64x16xf32>
    %151 = arith.addf %81, %150 : vector<64x16xf32>
    %c0_51 = arith.constant 0 : index
    %c16 = arith.constant 16 : index
    %152 = vector.load %arg6[%c0_51, %c16] : memref<64x32xf32, #tpu.memory_space<vmem>>, vector<64x16xf32>
    tpu.vector_store %arg6[%c0_51, %c16], %151 {strides = array<i32>} : memref<64x32xf32, #tpu.memory_space<vmem>>, vector<64x16xf32>,
    %153 = vector.extract_strided_slice %6 {offsets = [0, 0], sizes = [64, 1], strides = [1, 1]} : vector<64x4xf32> to vector<64x1xf32>
    %154 = vector.extract_strided_slice %6 {offsets = [0, 1], sizes = [64, 1], strides = [1, 1]} : vector<64x4xf32> to vector<64x1xf32>
    %155 = vector.extract_strided_slice %6 {offsets = [0, 2], sizes = [64, 1], strides = [1, 1]} : vector<64x4xf32> to vector<64x1xf32>
    %156 = vector.extract_strided_slice %6 {offsets = [0, 3], sizes = [64, 1], strides = [1, 1]} : vector<64x4xf32> to vector<64x1xf32>
    %c0_52 = arith.constant 0 : index
    %c0_53 = arith.constant 0 : index
    %157 = vector.load %arg6[%c0_52, %c0_53] : memref<64x32xf32, #tpu.memory_space<vmem>>, vector<64x32xf32>
    %cst_54 = arith.constant dense<0.000000e+00> : vector<64xf32>
    %158 = vector.multi_reduction <add>, %157, %cst_54 [1] : vector<64x32xf32> to vector<64xf32>
    %159 = vector.shape_cast %158 : vector<64xf32> to vector<64x1xf32>
    %cst_55 = arith.constant 3.200000e+01 : f32
    %160 = vector.broadcast %cst_55 : f32 to vector<64x1xf32>
    %161 = arith.divf %159, %160 : vector<64x1xf32>
    %162 = vector.broadcast %161 : vector<64x1xf32> to vector<64x32xf32>
    %163 = arith.subf %157, %162 : vector<64x32xf32>
    %164 = arith.mulf %163, %163 : vector<64x32xf32>
    %cst_56 = arith.constant dense<0.000000e+00> : vector<64xf32>
    %165 = vector.multi_reduction <add>, %164, %cst_56 [1] : vector<64x32xf32> to vector<64xf32>
    %166 = vector.shape_cast %165 : vector<64xf32> to vector<64x1xf32>
    %cst_57 = arith.constant 3.200000e+01 : f32
    %167 = vector.broadcast %cst_57 : f32 to vector<64x1xf32>
    %168 = arith.divf %166, %167 : vector<64x1xf32>
    %169 = vector.broadcast %161 : vector<64x1xf32> to vector<64x32xf32>
    %170 = arith.subf %157, %169 : vector<64x32xf32>
    %cst_58 = arith.constant 9.99999974E-6 : f32
    %171 = vector.broadcast %cst_58 : f32 to vector<64x1xf32>
    %172 = arith.addf %168, %171 : vector<64x1xf32>
    %173 = math.rsqrt %172 : vector<64x1xf32>
    %174 = vector.broadcast %173 : vector<64x1xf32> to vector<64x32xf32>
    %175 = arith.mulf %170, %174 : vector<64x32xf32>
    %176 = vector.broadcast %153 : vector<64x1xf32> to vector<64x32xf32>
    %177 = arith.mulf %175, %176 : vector<64x32xf32>
    %178 = vector.broadcast %154 : vector<64x1xf32> to vector<64x32xf32>
    %179 = arith.addf %177, %178 : vector<64x32xf32>
    %cst_59 = arith.constant dense<0.000000e+00> : vector<128x32xf32>
    %180 = tpu.matmul %3, %179, %cst_59 {dimension_numbers = #tpu.dot_dimension_numbers<[1], [0], [0], [1], [0, 0, 1, 1], [], []>} : vector<128x64xf32>, vector<64x32xf32>, vector<128x32xf32> -> vector<128x32xf32>
    %cst_60 = arith.constant 0.000000e+00 : f32
    %181 = vector.broadcast %cst_60 : f32 to vector<128x32xf32>
    %182 = arith.cmpf oge, %180, %181 : vector<128x32xf32>
    %cst_61 = arith.constant 2.000000e-01 : f32
    %183 = vector.broadcast %cst_61 : f32 to vector<128x32xf32>
    %184 = arith.mulf %183, %180 : vector<128x32xf32>
    %185 = arith.select %182, %180, %184 : vector<128x32xi1>, vector<128x32xf32>
    %cst_62 = arith.constant dense<0.000000e+00> : vector<64x32xf32>
    %186 = tpu.matmul %5, %185, %cst_62 {dimension_numbers = #tpu.dot_dimension_numbers<[1], [0], [0], [1], [0, 0, 1, 1], [], []>} : vector<64x128xf32>, vector<128x32xf32>, vector<64x32xf32> -> vector<64x32xf32>
    %187 = arith.addf %179, %186 : vector<64x32xf32>
    %cst_63 = arith.constant dense<0.000000e+00> : vector<64xf32>
    %188 = vector.multi_reduction <add>, %187, %cst_63 [1] : vector<64x32xf32> to vector<64xf32>
    %189 = vector.shape_cast %188 : vector<64xf32> to vector<64x1xf32>
    %cst_64 = arith.constant 3.200000e+01 : f32
    %190 = vector.broadcast %cst_64 : f32 to vector<64x1xf32>
    %191 = arith.divf %189, %190 : vector<64x1xf32>
    %192 = vector.broadcast %191 : vector<64x1xf32> to vector<64x32xf32>
    %193 = arith.subf %187, %192 : vector<64x32xf32>
    %194 = arith.mulf %193, %193 : vector<64x32xf32>
    %cst_65 = arith.constant dense<0.000000e+00> : vector<64xf32>
    %195 = vector.multi_reduction <add>, %194, %cst_65 [1] : vector<64x32xf32> to vector<64xf32>
    %196 = vector.shape_cast %195 : vector<64xf32> to vector<64x1xf32>
    %cst_66 = arith.constant 3.200000e+01 : f32
    %197 = vector.broadcast %cst_66 : f32 to vector<64x1xf32>
    %198 = arith.divf %196, %197 : vector<64x1xf32>
    %199 = vector.broadcast %191 : vector<64x1xf32> to vector<64x32xf32>
    %200 = arith.subf %187, %199 : vector<64x32xf32>
    %cst_67 = arith.constant 9.99999974E-6 : f32
    %201 = vector.broadcast %cst_67 : f32 to vector<64x1xf32>
    %202 = arith.addf %198, %201 : vector<64x1xf32>
    %203 = math.rsqrt %202 : vector<64x1xf32>
    %204 = vector.broadcast %203 : vector<64x1xf32> to vector<64x32xf32>
    %205 = arith.mulf %200, %204 : vector<64x32xf32>
    %206 = vector.broadcast %155 : vector<64x1xf32> to vector<64x32xf32>
    %207 = arith.mulf %205, %206 : vector<64x32xf32>
    %208 = vector.broadcast %156 : vector<64x1xf32> to vector<64x32xf32>
    %209 = arith.addf %207, %208 : vector<64x32xf32>
    %c0_68 = arith.constant 0 : index
    %c0_69 = arith.constant 0 : index
    %210 = vector.load %arg6[%c0_68, %c0_69] : memref<64x32xf32, #tpu.memory_space<vmem>>, vector<64x32xf32>
    tpu.vector_store %arg6[%c0_68, %c0_69], %209 {strides = array<i32>} : memref<64x32xf32, #tpu.memory_space<vmem>>, vector<64x32xf32>,
    %c0_70 = arith.constant 0 : index
    %c0_71 = arith.constant 0 : index
    %211 = vector.load %arg6[%c0_70, %c0_71] : memref<64x32xf32, #tpu.memory_space<vmem>>, vector<64x16xf32>
    %c0_72 = arith.constant 0 : index
    %c0_73 = arith.constant 0 : index
    %c0_74 = arith.constant 0 : index
    %212 = vector.load %arg5[%c0_72, %c0_73, %c0_74] : memref<2x64x16xf32, #tpu.memory_space<vmem>>, vector<1x64x16xf32>
    %213 = vector.shape_cast %212 : vector<1x64x16xf32> to vector<64x16xf32>
    %214 = vector.shape_cast %211 : vector<64x16xf32> to vector<1x64x16xf32>
    tpu.vector_store %arg5[%c0_72, %c0_73, %c0_74], %214 {strides = array<i32>} : memref<2x64x16xf32, #tpu.memory_space<vmem>>, vector<1x64x16xf32>,
    %c0_75 = arith.constant 0 : index
    %c16_76 = arith.constant 16 : index
    %215 = vector.load %arg6[%c0_75, %c16_76] : memref<64x32xf32, #tpu.memory_space<vmem>>, vector<64x16xf32>
    %c1_77 = arith.constant 1 : index
    %c0_78 = arith.constant 0 : index
    %c0_79 = arith.constant 0 : index
    %216 = vector.load %arg5[%c1_77, %c0_78, %c0_79] : memref<2x64x16xf32, #tpu.memory_space<vmem>>, vector<1x64x16xf32>
    %217 = vector.shape_cast %216 : vector<1x64x16xf32> to vector<64x16xf32>
    %218 = vector.shape_cast %215 : vector<64x16xf32> to vector<1x64x16xf32>
    tpu.vector_store %arg5[%c1_77, %c0_78, %c0_79], %218 {strides = array<i32>} : memref<2x64x16xf32, #tpu.memory_space<vmem>>, vector<1x64x16xf32>,
    return
  }
}

</mosaic_0001>

<llo_original>
// kernel: tpu_custom_call.1
$region0: #{tpu_custom_call.1}
  #allocation0 [shape = 'u32[]', space=smem, size = 0x4, offset = 0x4, fixed_abs, tag = 'smem constant byte address 0x4 - core index']
  #allocation1 [shape = 'u32[144,128]{1,0:T(1,128)}', space=vmem, size = 0x12000, scoped, tag = 'internal scratch']
  #allocation2 [shape = 'f32[64,32]{1,0:T(8,128)}', space=vmem, size = 0x8000, scoped, tag = 'scratch operand']
  %s0 = inlined_call_operand.vmem [shape: f32[2,64,16], index: 0, kind: input, shape index: {}]
  %s1 = inlined_call_operand.vmem [shape: bf16[192,64], index: 1, kind: input, shape index: {}]
  %s2 = inlined_call_operand.vmem [shape: bf16[128,64], index: 2, kind: input, shape index: {}]
  %s3 = inlined_call_operand.vmem [shape: bf16[64,128], index: 3, kind: input, shape index: {}]
  %s4 = inlined_call_operand.vmem [shape: f32[64,4], index: 4, kind: input, shape index: {}]
  %s5 = inlined_call_operand.vmem [shape: f32[2,64,16], index: 5, kind: output, shape index: {}]
  %s6 = sld [smem:[#allocation0]]
  $region30: #{tpu_custom_call.1} parent=0
    _
  %s8 = ssub.s32 1, %s6
  %s9 = scalar_select 0, %s8, %s6
  // Predicated region
  $region2: #{tpu_custom_call.1} parent=0 // pred_check
    _
  $region3: #{tpu_custom_call.1} parent=0 // pred_check_branch
    %11 = sbr.rel (0) target = $region5
  $region4: #{tpu_custom_call.1} parent=0 // pred_region
    _
  $region5: #{tpu_custom_call.1} parent=0 // pred_fallthru
    _
  // Predicated region
  $region6: #{tpu_custom_call.1} parent=0 // pred_check
    _
  $region7: #{tpu_custom_call.1} parent=0 // pred_check_branch
    %13 = sbr.rel (0) target = $region9
  $region8: #{tpu_custom_call.1} parent=0 // pred_region
    _
  $region9: #{tpu_custom_call.1} parent=0 // pred_fallthru
    _
  // Predicated region
  $region10: #{tpu_custom_call.1} parent=0 // pred_check
    _
  $region11: #{tpu_custom_call.1} parent=0 // pred_check_branch
    %15 = sbr.rel (0) target = $region13
  $region12: #{tpu_custom_call.1} parent=0 // pred_region
    _
  $region13: #{tpu_custom_call.1} parent=0 // pred_fallthru
    _
  // Predicated region
  $region14: #{tpu_custom_call.1} parent=0 // pred_check
    _
  $region15: #{tpu_custom_call.1} parent=0 // pred_check_branch
    %17 = sbr.rel (0) target = $region17
  $region16: #{tpu_custom_call.1} parent=0 // pred_region
    _
  $region17: #{tpu_custom_call.1} parent=0 // pred_fallthru
    _
  // Predicated region
  $region18: #{tpu_custom_call.1} parent=0 // pred_check
    _
  $region19: #{tpu_custom_call.1} parent=0 // pred_check_branch
    %19 = sbr.rel (0) target = $region21
  $region20: #{tpu_custom_call.1} parent=0 // pred_region
    _
  $region21: #{tpu_custom_call.1} parent=0 // pred_fallthru
    _
  %v20 = vld [vmem:[%s1] sm:$0xf]
  %v21 = vld [vmem:[%s1 + $0x4] sm:$0xf]
  %v22 = vld [vmem:[%s1 + $0x8] sm:$0xf]
  %v23 = vld [vmem:[%s1 + $0xc] sm:$0xf]
  %v24 = vld [vmem:[%s1 + $0x10] sm:$0xf]
  %v25 = vld [vmem:[%s1 + $0x14] sm:$0xf]
  %v26 = vld [vmem:[%s1 + $0x18] sm:$0xf]
  %v27 = vld [vmem:[%s1 + $0x1c] sm:$0xf]
  %v28 = vld [vmem:[%s1 + $0x20] sm:$0xf]
  %v29 = vld [vmem:[%s1 + $0x24] sm:$0xf]
  %v30 = vld [vmem:[%s1 + $0x28] sm:$0xf]
  %v31 = vld [vmem:[%s1 + $0x2c] sm:$0xf]
  %v32 = vld [vmem:[%s1 + $0x30] sm:$0xf]
  %v33 = vld [vmem:[%s1 + $0x34] sm:$0xf]
  %v34 = vld [vmem:[%s1 + $0x38] sm:$0xf]
  %v35 = vld [vmem:[%s1 + $0x3c] sm:$0xf]
  %v36 = vld [vmem:[%s1 + $0x40] sm:$0xf]
  %v37 = vld [vmem:[%s1 + $0x44] sm:$0xf]
  %v38 = vld [vmem:[%s1 + $0x48] sm:$0xf]
  %v39 = vld [vmem:[%s1 + $0x4c] sm:$0xf]
  %v40 = vld [vmem:[%s1 + $0x50] sm:$0xf]
  %v41 = vld [vmem:[%s1 + $0x54] sm:$0xf]
  %v42 = vld [vmem:[%s1 + $0x58] sm:$0xf]
  %v43 = vld [vmem:[%s1 + $0x5c] sm:$0xf]
  %v44 = vunpack.c.l.bf16 %v20
  %v45 = vunpack.c.l.bf16 %v21
  %v46 = vunpack.c.l.bf16 %v22
  %v47 = vunpack.c.l.bf16 %v23
  %v48 = vunpack.c.l.bf16 %v24
  %v49 = vunpack.c.l.bf16 %v25
  %v50 = vunpack.c.l.bf16 %v26
  %v51 = vunpack.c.l.bf16 %v27
  %v52 = vunpack.c.l.bf16 %v28
  %v53 = vunpack.c.l.bf16 %v29
  %v54 = vunpack.c.l.bf16 %v30
  %v55 = vunpack.c.l.bf16 %v31
  %v56 = vunpack.c.l.bf16 %v32
  %v57 = vunpack.c.l.bf16 %v33
  %v58 = vunpack.c.l.bf16 %v34
  %v59 = vunpack.c.l.bf16 %v35
  %v60 = vunpack.c.l.bf16 %v36
  %v61 = vunpack.c.l.bf16 %v37
  %v62 = vunpack.c.l.bf16 %v38
  %v63 = vunpack.c.l.bf16 %v39
  %v64 = vunpack.c.l.bf16 %v40
  %v65 = vunpack.c.l.bf16 %v41
  %v66 = vunpack.c.l.bf16 %v42
  %v67 = vunpack.c.l.bf16 %v43
  %v68 = vld [vmem:[%s2] sm:$0xf]
  %v69 = vld [vmem:[%s2 + $0x4] sm:$0xf]
  %v70 = vld [vmem:[%s2 + $0x8] sm:$0xf]
  %v71 = vld [vmem:[%s2 + $0xc] sm:$0xf]
  %v72 = vld [vmem:[%s2 + $0x10] sm:$0xf]
  %v73 = vld [vmem:[%s2 + $0x14] sm:$0xf]
  %v74 = vld [vmem:[%s2 + $0x18] sm:$0xf]
  %v75 = vld [vmem:[%s2 + $0x1c] sm:$0xf]
  %v76 = vld [vmem:[%s2 + $0x20] sm:$0xf]
  %v77 = vld [vmem:[%s2 + $0x24] sm:$0xf]
  %v78 = vld [vmem:[%s2 + $0x28] sm:$0xf]
  %v79 = vld [vmem:[%s2 + $0x2c] sm:$0xf]
  %v80 = vld [vmem:[%s2 + $0x30] sm:$0xf]
  %v81 = vld [vmem:[%s2 + $0x34] sm:$0xf]
  %v82 = vld [vmem:[%s2 + $0x38] sm:$0xf]
  %v83 = vld [vmem:[%s2 + $0x3c] sm:$0xf]
  %v84 = vunpack.c.l.bf16 %v68
  %v85 = vunpack.c.l.bf16 %v69
  %v86 = vunpack.c.l.bf16 %v70
  %v87 = vunpack.c.l.bf16 %v71
  %v88 = vunpack.c.l.bf16 %v72
  %v89 = vunpack.c.l.bf16 %v73
  %v90 = vunpack.c.l.bf16 %v74
  %v91 = vunpack.c.l.bf16 %v75
  %v92 = vunpack.c.l.bf16 %v76
  %v93 = vunpack.c.l.bf16 %v77
  %v94 = vunpack.c.l.bf16 %v78
  %v95 = vunpack.c.l.bf16 %v79
  %v96 = vunpack.c.l.bf16 %v80
  %v97 = vunpack.c.l.bf16 %v81
  %v98 = vunpack.c.l.bf16 %v82
  %v99 = vunpack.c.l.bf16 %v83
  %v100 = vld [vmem:[%s3] sm:$0xf]
  %v101 = vld [vmem:[%s3 + $0x4] sm:$0xf]
  %v102 = vld [vmem:[%s3 + $0x8] sm:$0xf]
  %v103 = vld [vmem:[%s3 + $0xc] sm:$0xf]
  %v104 = vld [vmem:[%s3 + $0x10] sm:$0xf]
  %v105 = vld [vmem:[%s3 + $0x14] sm:$0xf]
  %v106 = vld [vmem:[%s3 + $0x18] sm:$0xf]
  %v107 = vld [vmem:[%s3 + $0x1c] sm:$0xf]
  %v108 = vunpack.c.l.bf16 %v100
  %v109 = vunpack.c.l.bf16 %v101
  %v110 = vunpack.c.l.bf16 %v102
  %v111 = vunpack.c.l.bf16 %v103
  %v112 = vunpack.c.l.bf16 %v104
  %v113 = vunpack.c.l.bf16 %v105
  %v114 = vunpack.c.l.bf16 %v106
  %v115 = vunpack.c.l.bf16 %v107
  %v116 = vld [vmem:[%s4] sm:$0xff]
  %v117 = vld [vmem:[%s4 + $0x8] sm:$0xff]
  %v118 = vld [vmem:[%s4 + $0x10] sm:$0xff]
  %v119 = vld [vmem:[%s4 + $0x18] sm:$0xff]
  %v120 = vld [vmem:[%s4 + $0x20] sm:$0xff]
  %v121 = vld [vmem:[%s4 + $0x28] sm:$0xff]
  %v122 = vld [vmem:[%s4 + $0x30] sm:$0xff]
  %v123 = vld [vmem:[%s4 + $0x38] sm:$0xff]
  %v124 = vld [vmem:[%s0] sm:$0xff]
  %v125 = vld [vmem:[%s0 + $0x8] sm:$0xff]
  %v126 = vld [vmem:[%s0 + $0x10] sm:$0xff]
  %v127 = vld [vmem:[%s0 + $0x18] sm:$0xff]
  %v128 = vld [vmem:[%s0 + $0x20] sm:$0xff]
  %v129 = vld [vmem:[%s0 + $0x28] sm:$0xff]
  %v130 = vld [vmem:[%s0 + $0x30] sm:$0xff]
  %v131 = vld [vmem:[%s0 + $0x38] sm:$0xff]
  %vm132 = vcmask 523264
  %v134 = vsel %vm132, %v44, 0
  %v137 = vsel %vm132, %v45, 0
  %v140 = vsel %vm132, %v46, 0
  %v143 = vsel %vm132, %v47, 0
  %v146 = vsel %vm132, %v48, 0
  %v149 = vsel %vm132, %v49, 0
  %v152 = vsel %vm132, %v50, 0
  %v155 = vsel %vm132, %v51, 0
  %v158 = vsel %vm132, %v52, 0
  %v161 = vsel %vm132, %v53, 0
  %v164 = vsel %vm132, %v54, 0
  %v167 = vsel %vm132, %v55, 0
  %v170 = vsel %vm132, %v56, 0
  %v173 = vsel %vm132, %v57, 0
  %v176 = vsel %vm132, %v58, 0
  %v179 = vsel %vm132, %v59, 0
  %v182 = vsel %vm132, %v60, 0
  %v185 = vsel %vm132, %v61, 0
  %v188 = vsel %vm132, %v62, 0
  %v191 = vsel %vm132, %v63, 0
  %v194 = vsel %vm132, %v64, 0
  %v197 = vsel %vm132, %v65, 0
  %v200 = vsel %vm132, %v66, 0
  %v203 = vsel %vm132, %v67, 0
  %205 = vmatprep.subr.mxu0 0.0
  %206 = vmatpush1.msra.mxu0 %v124
  %207 = vmatprep.subr.mxu0 0.0
  %208 = vmatpush1.msra.mxu0 %v125
  %209 = vmatprep.subr.mxu0 0.0
  %210 = vmatpush1.msra.mxu0 %v126
  %211 = vmatprep.subr.mxu0 0.0
  %212 = vmatpush1.msra.mxu0 %v127
  %213 = vmatprep.subr.mxu0 0.0
  %214 = vmatpush1.msra.mxu0 %v128
  %215 = vmatprep.subr.mxu0 0.0
  %216 = vmatpush1.msra.mxu0 %v129
  %217 = vmatprep.subr.mxu0 0.0
  %218 = vmatpush1.msra.mxu0 %v130
  %219 = vmatprep.subr.mxu0 0.0
  %220 = vmatpush1.msra.mxu0 %v131
  %221 = vmatprep.subr.mxu0 0.0
  %222 = vmatpush1.msra.mxu0 0.0
  %223 = vmatprep.subr.mxu0 0.0
  %224 = vmatpush1.msra.mxu0 0.0
  %225 = vmatprep.subr.mxu0 0.0
  %226 = vmatpush1.msra.mxu0 0.0
  %227 = vmatprep.subr.mxu0 0.0
  %228 = vmatpush1.msra.mxu0 0.0
  %229 = vmatprep.subr.mxu0 0.0
  %230 = vmatpush1.msra.mxu0 0.0
  %231 = vmatprep.subr.mxu0 0.0
  %232 = vmatpush1.msra.mxu0 0.0
  %233 = vmatprep.subr.mxu0 0.0
  %234 = vmatpush1.msra.mxu0 0.0
  %235 = vmatprep.subr.mxu0 0.0
  %236 = vmatpush1.msra.mxu0 0.0
  %237 = vmatprep.subr.mxu0 0.0
  %238 = vmatpush1.msra.mxu0 0.0
  %239 = vmatprep.subr.mxu0 0.0
  %240 = vmatpush1.msra.mxu0 0.0
  %241 = vmatprep.subr.mxu0 0.0
  %242 = vmatpush1.msra.mxu0 0.0
  %243 = vmatprep.subr.mxu0 0.0
  %244 = vmatpush1.msra.mxu0 0.0
  %245 = vmatprep.subr.mxu0 0.0
  %246 = vmatpush1.msra.mxu0 0.0
  %247 = vmatprep.subr.mxu0 0.0
  %248 = vmatpush1.msra.mxu0 0.0
  %249 = vmatprep.subr.mxu0 0.0
  %250 = vmatpush1.msra.mxu0 0.0
  %251 = vmatprep.subr.mxu0 0.0
  %252 = vmatpush1.msra.mxu0 0.0
  %253 = vmatprep.subr.mxu0 0.0
  %254 = vmatpush1.msra.mxu0 0.0
  %255 = vmatprep.subr.mxu0 0.0
  %256 = vmatpush1.msra.mxu0 0.0
  %257 = vmatprep.subr.mxu0 0.0
  %258 = vmatpush1.msra.mxu0 0.0
  %259 = vmatprep.subr.mxu0 0.0
  %260 = vmatpush1.msra.mxu0 0.0
  %261 = vmatprep.subr.mxu0 0.0
  %262 = vmatpush1.msra.mxu0 0.0
  %263 = vmatprep.subr.mxu0 0.0
  %264 = vmatpush1.msra.mxu0 0.0
  %265 = vmatprep.subr.mxu0 0.0
  %266 = vmatpush1.msra.mxu0 0.0
  %267 = vmatprep.subr.mxu0 0.0
  %268 = vmatpush1.msra.mxu0 0.0
  %269 = vmatprep.mubr.f32.mxu0 0.0
  %270 = vmatmul.mubr.f32.gmra.mrb[0].mxu0 %v134
  %v271 = vpop.f32.mrb[0].mxu0
  %v272 = vadd.f32 0.0, %v271
  %v273 = vpop.f32.mrb[0].mxu0
  %274 = vmatprep.mubr.f32.mxu0 0.0
  %275 = vmatmul.mubr.f32.gmra.mrb[0].mxu0 %v137
  %v276 = vpop.f32.mrb[0].mxu0
  %v277 = vadd.f32 0.0, %v276
  %v278 = vpop.f32.mrb[0].mxu0
  %279 = vmatprep.mubr.f32.mxu0 0.0
  %280 = vmatmul.mubr.f32.gmra.mrb[0].mxu0 %v140
  %v281 = vpop.f32.mrb[0].mxu0
  %v282 = vadd.f32 0.0, %v281
  %v283 = vpop.f32.mrb[0].mxu0
  %284 = vmatprep.mubr.f32.mxu0 0.0
  %285 = vmatmul.mubr.f32.gmra.mrb[0].mxu0 %v143
  %v286 = vpop.f32.mrb[0].mxu0
  %v287 = vadd.f32 0.0, %v286
  %v288 = vpop.f32.mrb[0].mxu0
  %289 = vmatprep.mubr.f32.mxu0 0.0
  %290 = vmatmul.mubr.f32.gmra.mrb[0].mxu0 %v146
  %v291 = vpop.f32.mrb[0].mxu0
  %v292 = vadd.f32 0.0, %v291
  %v293 = vpop.f32.mrb[0].mxu0
  %294 = vmatprep.mubr.f32.mxu0 0.0
  %295 = vmatmul.mubr.f32.gmra.mrb[0].mxu0 %v149
  %v296 = vpop.f32.mrb[0].mxu0
  %v297 = vadd.f32 0.0, %v296
  %v298 = vpop.f32.mrb[0].mxu0
  %299 = vmatprep.mubr.f32.mxu0 0.0
  %300 = vmatmul.mubr.f32.gmra.mrb[0].mxu0 %v152
  %v301 = vpop.f32.mrb[0].mxu0
  %v302 = vadd.f32 0.0, %v301
  %v303 = vpop.f32.mrb[0].mxu0
  %304 = vmatprep.mubr.f32.mxu0 0.0
  %305 = vmatmul.mubr.f32.gmra.mrb[0].mxu0 %v155
  %v306 = vpop.f32.mrb[0].mxu0
  %v307 = vadd.f32 0.0, %v306
  %v308 = vpop.f32.mrb[0].mxu0
  %309 = vmatprep.mubr.f32.mxu0 0.0
  %310 = vmatmul.mubr.f32.gmra.mrb[0].mxu0 %v158
  %v311 = vpop.f32.mrb[0].mxu0
  %v312 = vadd.f32 0.0, %v311
  %v313 = vpop.f32.mrb[0].mxu0
  %314 = vmatprep.mubr.f32.mxu0 0.0
  %315 = vmatmul.mubr.f32.gmra.mrb[0].mxu0 %v161
  %v316 = vpop.f32.mrb[0].mxu0
  %v317 = vadd.f32 0.0, %v316
  %v318 = vpop.f32.mrb[0].mxu0
  %319 = vmatprep.mubr.f32.mxu0 0.0
  %320 = vmatmul.mubr.f32.gmra.mrb[0].mxu0 %v164
  %v321 = vpop.f32.mrb[0].mxu0
  %v322 = vadd.f32 0.0, %v321
  %v323 = vpop.f32.mrb[0].mxu0
  %324 = vmatprep.mubr.f32.mxu0 0.0
  %325 = vmatmul.mubr.f32.gmra.mrb[0].mxu0 %v167
  %v326 = vpop.f32.mrb[0].mxu0
  %v327 = vadd.f32 0.0, %v326
  %v328 = vpop.f32.mrb[0].mxu0
  %329 = vmatprep.mubr.f32.mxu0 0.0
  %330 = vmatmul.mubr.f32.gmra.mrb[0].mxu0 %v170
  %v331 = vpop.f32.mrb[0].mxu0
  %v332 = vadd.f32 0.0, %v331
  %v333 = vpop.f32.mrb[0].mxu0
  %334 = vmatprep.mubr.f32.mxu0 0.0
  %335 = vmatmul.mubr.f32.gmra.mrb[0].mxu0 %v173
  %v336 = vpop.f32.mrb[0].mxu0
  %v337 = vadd.f32 0.0, %v336
  %v338 = vpop.f32.mrb[0].mxu0
  %339 = vmatprep.mubr.f32.mxu0 0.0
  %340 = vmatmul.mubr.f32.gmra.mrb[0].mxu0 %v176
  %v341 = vpop.f32.mrb[0].mxu0
  %v342 = vadd.f32 0.0, %v341
  %v343 = vpop.f32.mrb[0].mxu0
  %344 = vmatprep.mubr.f32.mxu0 0.0
  %345 = vmatmul.mubr.f32.gmra.mrb[0].mxu0 %v179
  %v346 = vpop.f32.mrb[0].mxu0
  %v347 = vadd.f32 0.0, %v346
  %v348 = vpop.f32.mrb[0].mxu0
  %349 = vmatprep.mubr.f32.mxu0 0.0
  %350 = vmatmul.mubr.f32.gmra.mrb[0].mxu0 %v182
  %v351 = vpop.f32.mrb[0].mxu0
  %v352 = vadd.f32 0.0, %v351
  %v353 = vpop.f32.mrb[0].mxu0
  %354 = vmatprep.mubr.f32.mxu0 0.0
  %355 = vmatmul.mubr.f32.gmra.mrb[0].mxu0 %v185
  %v356 = vpop.f32.mrb[0].mxu0
  %v357 = vadd.f32 0.0, %v356
  %v358 = vpop.f32.mrb[0].mxu0
  %359 = vmatprep.mubr.f32.mxu0 0.0
  %360 = vmatmul.mubr.f32.gmra.mrb[0].mxu0 %v188
  %v361 = vpop.f32.mrb[0].mxu0
  %v362 = vadd.f32 0.0, %v361
  %v363 = vpop.f32.mrb[0].mxu0
  %364 = vmatprep.mubr.f32.mxu0 0.0
  %365 = vmatmul.mubr.f32.gmra.mrb[0].mxu0 %v191
  %v366 = vpop.f32.mrb[0].mxu0
  %v367 = vadd.f32 0.0, %v366
  %v368 = vpop.f32.mrb[0].mxu0
  %369 = vmatprep.mubr.f32.mxu0 0.0
  %370 = vmatmul.mubr.f32.gmra.mrb[0].mxu0 %v194
  %v371 = vpop.f32.mrb[0].mxu0
  %v372 = vadd.f32 0.0, %v371
  %v373 = vpop.f32.mrb[0].mxu0
  %374 = vmatprep.mubr.f32.mxu0 0.0
  %375 = vmatmul.mubr.f32.gmra.mrb[0].mxu0 %v197
  %v376 = vpop.f32.mrb[0].mxu0
  %v377 = vadd.f32 0.0, %v376
  %v378 = vpop.f32.mrb[0].mxu0
  %379 = vmatprep.mubr.f32.mxu0 0.0
  %380 = vmatmul.mubr.f32.gmra.mrb[0].mxu0 %v200
  %v381 = vpop.f32.mrb[0].mxu0
  %v382 = vadd.f32 0.0, %v381
  %v383 = vpop.f32.mrb[0].mxu0
  %384 = vmatprep.mubr.f32.mxu0 0.0
  %385 = vmatmul.mubr.f32.gmra.mrb[0].mxu0 %v203
  %v386 = vpop.f32.mrb[0].mxu0
  %v387 = vadd.f32 0.0, %v386
  %v388 = vpop.f32.mrb[0].mxu0
  %389 = vdwg.mxu0
  %390 = vxpose.xlu0.b32.start [1/16] %v272, 128
  %391 = vxpose.xlu0.b32.cont [2/16] 0.0, 128
  %392 = vxpose.xlu0.b32.cont [3/16] 0.0, 128
  %393 = vxpose.xlu0.b32.cont [4/16] 0.0, 128
  %394 = vxpose.xlu0.b32.cont [5/16] 0.0, 128
  %395 = vxpose.xlu0.b32.cont [6/16] 0.0, 128
  %396 = vxpose.xlu0.b32.cont [7/16] 0.0, 128
  %397 = vxpose.xlu0.b32.cont [8/16] 0.0, 128
  %398 = vxpose.xlu0.b32.cont [9/16] 0.0, 128
  %399 = vxpose.xlu0.b32.cont [10/16] 0.0, 128
  %400 = vxpose.xlu0.b32.cont [11/16] 0.0, 128
  %401 = vxpose.xlu0.b32.cont [12/16] 0.0, 128
  %402 = vxpose.xlu0.b32.cont [13/16] 0.0, 128
  %403 = vxpose.xlu0.b32.cont [14/16] 0.0, 128
  %404 = vxpose.xlu0.b32.cont [15/16] 0.0, 128
  %405 = vxpose.xlu0.b32.end [16/16] 0.0, 128
  %v406 = vpop.trf.xlu0
  %v407 = vpop.trf.xlu0
  %v408 = vpop.trf.xlu0
  %v409 = vpop.trf.xlu0
  %v410 = vpop.trf.xlu0
  %v411 = vpop.trf.xlu0
  %v412 = vpop.trf.xlu0
  %v413 = vpop.trf.xlu0
  %v414 = vpop.trf.xlu0
  %v415 = vpop.trf.xlu0
  %v416 = vpop.trf.xlu0
  %v417 = vpop.trf.xlu0
  %v418 = vpop.trf.xlu0
  %v419 = vpop.trf.xlu0
  %v420 = vpop.trf.xlu0
  %v421 = vpop.trf.xlu0
  %vm422 = vcmask 64512
  %v424 = vsel %vm422, %v406, 0
  %v427 = vsel %vm422, %v407, 0
  %429 = vmatprep.subr.mxu0 0.0
  %430 = vmatpush1.msra.mxu0 %v312
  %431 = vmatprep.subr.mxu0 0.0
  %432 = vmatpush1.msra.mxu0 0.0
  %433 = vmatprep.subr.mxu0 0.0
  %434 = vmatpush1.msra.mxu0 0.0
  %435 = vmatprep.subr.mxu0 0.0
  %436 = vmatpush1.msra.mxu0 0.0
  %437 = vmatprep.subr.mxu0 0.0
  %438 = vmatpush1.msra.mxu0 0.0
  %439 = vmatprep.subr.mxu0 0.0
  %440 = vmatpush1.msra.mxu0 0.0
  %441 = vmatprep.subr.mxu0 0.0
  %442 = vmatpush1.msra.mxu0 0.0
  %443 = vmatprep.subr.mxu0 0.0
  %444 = vmatpush1.msra.mxu0 0.0
  %445 = vmatprep.subr.mxu0 0.0
  %446 = vmatpush1.msra.mxu0 0.0
  %447 = vmatprep.subr.mxu0 0.0
  %448 = vmatpush1.msra.mxu0 0.0
  %449 = vmatprep.subr.mxu0 0.0
  %450 = vmatpush1.msra.mxu0 0.0
  %451 = vmatprep.subr.mxu0 0.0
  %452 = vmatpush1.msra.mxu0 0.0
  %453 = vmatprep.subr.mxu0 0.0
  %454 = vmatpush1.msra.mxu0 0.0
  %455 = vmatprep.subr.mxu0 0.0
  %456 = vmatpush1.msra.mxu0 0.0
  %457 = vmatprep.subr.mxu0 0.0
  %458 = vmatpush1.msra.mxu0 0.0
  %459 = vmatprep.subr.mxu0 0.0
  %460 = vmatpush1.msra.mxu0 0.0
  %461 = vmatprep.subr.mxu0 0.0
  %462 = vmatpush1.msra.mxu0 0.0
  %463 = vmatprep.subr.mxu0 0.0
  %464 = vmatpush1.msra.mxu0 0.0
  %465 = vmatprep.subr.mxu0 0.0
  %466 = vmatpush1.msra.mxu0 0.0
  %467 = vmatprep.subr.mxu0 0.0
  %468 = vmatpush1.msra.mxu0 0.0
  %469 = vmatprep.subr.mxu0 0.0
  %470 = vmatpush1.msra.mxu0 0.0
  %471 = vmatprep.subr.mxu0 0.0
  %472 = vmatpush1.msra.mxu0 0.0
  %473 = vmatprep.subr.mxu0 0.0
  %474 = vmatpush1.msra.mxu0 0.0
  %475 = vmatprep.subr.mxu0 0.0
  %476 = vmatpush1.msra.mxu0 0.0
  %477 = vmatprep.subr.mxu0 0.0
  %478 = vmatpush1.msra.mxu0 0.0
  %479 = vmatprep.subr.mxu0 0.0
  %480 = vmatpush1.msra.mxu0 0.0
  %481 = vmatprep.subr.mxu0 0.0
  %482 = vmatpush1.msra.mxu0 0.0
  %483 = vmatprep.subr.mxu0 0.0
  %484 = vmatpush1.msra.mxu0 0.0
  %485 = vmatprep.subr.mxu0 0.0
  %486 = vmatpush1.msra.mxu0 0.0
  %487 = vmatprep.subr.mxu0 0.0
  %488 = vmatpush1.msra.mxu0 0.0
  %489 = vmatprep.subr.mxu0 0.0
  %490 = vmatpush1.msra.mxu0 0.0
  %491 = vmatprep.subr.mxu0 0.0
  %492 = vmatpush1.msra.mxu0 0.0
  %493 = vmatprep.mubr.f32.mxu0 0.0
  %494 = vmatmul.mubr.f32.gmra.mrb[0].mxu0 %v424
  %v495 = vpop.f32.mrb[0].mxu0
  %v496 = vadd.f32 0.0, %v495
  %v497 = vpop.f32.mrb[0].mxu0
  %498 = vmatprep.mubr.f32.mxu0 0.0
  %499 = vmatmul.mubr.f32.gmra.mrb[0].mxu0 %v427
  %v500 = vpop.f32.mrb[0].mxu0
  %v501 = vadd.f32 0.0, %v500
  %v502 = vpop.f32.mrb[0].mxu0
  %503 = vdwg.mxu0
  %504 = vxpose.xlu0.b32.start [1/16] %v277, 128
  %505 = vxpose.xlu0.b32.cont [2/16] 0.0, 128
  %506 = vxpose.xlu0.b32.cont [3/16] 0.0, 128
  %507 = vxpose.xlu0.b32.cont [4/16] 0.0, 128
  %508 = vxpose.xlu0.b32.cont [5/16] 0.0, 128
  %509 = vxpose.xlu0.b32.cont [6/16] 0.0, 128
  %510 = vxpose.xlu0.b32.cont [7/16] 0.0, 128
  %511 = vxpose.xlu0.b32.cont [8/16] 0.0, 128
  %512 = vxpose.xlu0.b32.cont [9/16] 0.0, 128
  %513 = vxpose.xlu0.b32.cont [10/16] 0.0, 128
  %514 = vxpose.xlu0.b32.cont [11/16] 0.0, 128
  %515 = vxpose.xlu0.b32.cont [12/16] 0.0, 128
  %516 = vxpose.xlu0.b32.cont [13/16] 0.0, 128
  %517 = vxpose.xlu0.b32.cont [14/16] 0.0, 128
  %518 = vxpose.xlu0.b32.cont [15/16] 0.0, 128
  %519 = vxpose.xlu0.b32.end [16/16] 0.0, 128
  %v520 = vpop.trf.xlu0
  %v521 = vpop.trf.xlu0
  %v522 = vpop.trf.xlu0
  %v523 = vpop.trf.xlu0
  %v524 = vpop.trf.xlu0
  %v525 = vpop.trf.xlu0
  %v526 = vpop.trf.xlu0
  %v527 = vpop.trf.xlu0
  %v528 = vpop.trf.xlu0
  %v529 = vpop.trf.xlu0
  %v530 = vpop.trf.xlu0
  %v531 = vpop.trf.xlu0
  %v532 = vpop.trf.xlu0
  %v533 = vpop.trf.xlu0
  %v534 = vpop.trf.xlu0
  %v535 = vpop.trf.xlu0
  %v537 = vsel %vm422, %v520, 0
  %v540 = vsel %vm422, %v521, 0
  %542 = vmatprep.subr.mxu0 0.0
  %543 = vmatpush1.msra.mxu0 %v317
  %544 = vmatprep.subr.mxu0 0.0
  %545 = vmatpush1.msra.mxu0 0.0
  %546 = vmatprep.subr.mxu0 0.0
  %547 = vmatpush1.msra.mxu0 0.0
  %548 = vmatprep.subr.mxu0 0.0
  %549 = vmatpush1.msra.mxu0 0.0
  %550 = vmatprep.subr.mxu0 0.0
  %551 = vmatpush1.msra.mxu0 0.0
  %552 = vmatprep.subr.mxu0 0.0
  %553 = vmatpush1.msra.mxu0 0.0
  %554 = vmatprep.subr.mxu0 0.0
  %555 = vmatpush1.msra.mxu0 0.0
  %556 = vmatprep.subr.mxu0 0.0
  %557 = vmatpush1.msra.mxu0 0.0
  %558 = vmatprep.subr.mxu0 0.0
  %559 = vmatpush1.msra.mxu0 0.0
  %560 = vmatprep.subr.mxu0 0.0
  %561 = vmatpush1.msra.mxu0 0.0
  %562 = vmatprep.subr.mxu0 0.0
  %563 = vmatpush1.msra.mxu0 0.0
  %564 = vmatprep.subr.mxu0 0.0
  %565 = vmatpush1.msra.mxu0 0.0
  %566 = vmatprep.subr.mxu0 0.0
  %567 = vmatpush1.msra.mxu0 0.0
  %568 = vmatprep.subr.mxu0 0.0
  %569 = vmatpush1.msra.mxu0 0.0
  %570 = vmatprep.subr.mxu0 0.0
  %571 = vmatpush1.msra.mxu0 0.0
  %572 = vmatprep.subr.mxu0 0.0
  %573 = vmatpush1.msra.mxu0 0.0
  %574 = vmatprep.subr.mxu0 0.0
  %575 = vmatpush1.msra.mxu0 0.0
  %576 = vmatprep.subr.mxu0 0.0
  %577 = vmatpush1.msra.mxu0 0.0
  %578 = vmatprep.subr.mxu0 0.0
  %579 = vmatpush1.msra.mxu0 0.0
  %580 = vmatprep.subr.mxu0 0.0
  %581 = vmatpush1.msra.mxu0 0.0
  %582 = vmatprep.subr.mxu0 0.0
  %583 = vmatpush1.msra.mxu0 0.0
  %584 = vmatprep.subr.mxu0 0.0
  %585 = vmatpush1.msra.mxu0 0.0
  %586 = vmatprep.subr.mxu0 0.0
  %587 = vmatpush1.msra.mxu0 0.0
  %588 = vmatprep.subr.mxu0 0.0
  %589 = vmatpush1.msra.mxu0 0.0
  %590 = vmatprep.subr.mxu0 0.0
  %591 = vmatpush1.msra.mxu0 0.0
  %592 = vmatprep.subr.mxu0 0.0
  %593 = vmatpush1.msra.mxu0 0.0
  %594 = vmatprep.subr.mxu0 0.0
  %595 = vmatpush1.msra.mxu0 0.0
  %596 = vmatprep.subr.mxu0 0.0
  %597 = vmatpush1.msra.mxu0 0.0
  %598 = vmatprep.subr.mxu0 0.0
  %599 = vmatpush1.msra.mxu0 0.0
  %600 = vmatprep.subr.mxu0 0.0
  %601 = vmatpush1.msra.mxu0 0.0
  %602 = vmatprep.subr.mxu0 0.0
  %603 = vmatpush1.msra.mxu0 0.0
  %604 = vmatprep.subr.mxu0 0.0
  %605 = vmatpush1.msra.mxu0 0.0
  %606 = vmatprep.mubr.f32.mxu0 0.0
  %607 = vmatmul.mubr.f32.gmra.mrb[0].mxu0 %v537
  %v608 = vpop.f32.mrb[0].mxu0
  %v609 = vadd.f32 0.0, %v608
  %v610 = vpop.f32.mrb[0].mxu0
  %611 = vmatprep.mubr.f32.mxu0 0.0
  %612 = vmatmul.mubr.f32.gmra.mrb[0].mxu0 %v540
  %v613 = vpop.f32.mrb[0].mxu0
  %v614 = vadd.f32 0.0, %v613
  %v615 = vpop.f32.mrb[0].mxu0
  %616 = vdwg.mxu0
  %617 = vxpose.xlu0.b32.start [1/16] %v282, 128
  %618 = vxpose.xlu0.b32.cont [2/16] 0.0, 128
  %619 = vxpose.xlu0.b32.cont [3/16] 0.0, 128
  %620 = vxpose.xlu0.b32.cont [4/16] 0.0, 128
  %621 = vxpose.xlu0.b32.cont [5/16] 0.0, 128
  %622 = vxpose.xlu0.b32.cont [6/16] 0.0, 128
  %623 = vxpose.xlu0.b32.cont [7/16] 0.0, 128
  %624 = vxpose.xlu0.b32.cont [8/16] 0.0, 128
  %625 = vxpose.xlu0.b32.cont [9/16] 0.0, 128
  %626 = vxpose.xlu0.b32.cont [10/16] 0.0, 128
  %627 = vxpose.xlu0.b32.cont [11/16] 0.0, 128
  %628 = vxpose.xlu0.b32.cont [12/16] 0.0, 128
  %629 = vxpose.xlu0.b32.cont [13/16] 0.0, 128
  %630 = vxpose.xlu0.b32.cont [14/16] 0.0, 128
  %631 = vxpose.xlu0.b32.cont [15/16] 0.0, 128
  %632 = vxpose.xlu0.b32.end [16/16] 0.0, 128
  %v633 = vpop.trf.xlu0
  %v634 = vpop.trf.xlu0
  %v635 = vpop.trf.xlu0
  %v636 = vpop.trf.xlu0
  %v637 = vpop.trf.xlu0
  %v638 = vpop.trf.xlu0
  %v639 = vpop.trf.xlu0
  %v640 = vpop.trf.xlu0
  %v641 = vpop.trf.xlu0
  %v642 = vpop.trf.xlu0
  %v643 = vpop.trf.xlu0
  %v644 = vpop.trf.xlu0
  %v645 = vpop.trf.xlu0
  %v646 = vpop.trf.xlu0
  %v647 = vpop.trf.xlu0
  %v648 = vpop.trf.xlu0
  %v650 = vsel %vm422, %v633, 0
  %v653 = vsel %vm422, %v634, 0
  %655 = vmatprep.subr.mxu0 0.0
  %656 = vmatpush1.msra.mxu0 %v322
  %657 = vmatprep.subr.mxu0 0.0
  %658 = vmatpush1.msra.mxu0 0.0
  %659 = vmatprep.subr.mxu0 0.0
  %660 = vmatpush1.msra.mxu0 0.0
  %661 = vmatprep.subr.mxu0 0.0
  %662 = vmatpush1.msra.mxu0 0.0
  %663 = vmatprep.subr.mxu0 0.0
  %664 = vmatpush1.msra.mxu0 0.0
  %665 = vmatprep.subr.mxu0 0.0
  %666 = vmatpush1.msra.mxu0 0.0
  %667 = vmatprep.subr.mxu0 0.0
  %668 = vmatpush1.msra.mxu0 0.0
  %669 = vmatprep.subr.mxu0 0.0
  %670 = vmatpush1.msra.mxu0 0.0
  %671 = vmatprep.subr.mxu0 0.0
  %672 = vmatpush1.msra.mxu0 0.0
  %673 = vmatprep.subr.mxu0 0.0
  %674 = vmatpush1.msra.mxu0 0.0
  %675 = vmatprep.subr.mxu0 0.0
  %676 = vmatpush1.msra.mxu0 0.0
  %677 = vmatprep.subr.mxu0 0.0
  %678 = vmatpush1.msra.mxu0 0.0
  %679 = vmatprep.subr.mxu0 0.0
  %680 = vmatpush1.msra.mxu0 0.0
  %681 = vmatprep.subr.mxu0 0.0
  %682 = vmatpush1.msra.mxu0 0.0
  %683 = vmatprep.subr.mxu0 0.0
  %684 = vmatpush1.msra.mxu0 0.0
  %685 = vmatprep.subr.mxu0 0.0
  %686 = vmatpush1.msra.mxu0 0.0
  %687 = vmatprep.subr.mxu0 0.0
  %688 = vmatpush1.msra.mxu0 0.0
  %689 = vmatprep.subr.mxu0 0.0
  %690 = vmatpush1.msra.mxu0 0.0
  %691 = vmatprep.subr.mxu0 0.0
  %692 = vmatpush1.msra.mxu0 0.0
  %693 = vmatprep.subr.mxu0 0.0
  %694 = vmatpush1.msra.mxu0 0.0
  %695 = vmatprep.subr.mxu0 0.0
  %696 = vmatpush1.msra.mxu0 0.0
  %697 = vmatprep.subr.mxu0 0.0
  %698 = vmatpush1.msra.mxu0 0.0
  %699 = vmatprep.subr.mxu0 0.0
  %700 = vmatpush1.msra.mxu0 0.0
  %701 = vmatprep.subr.mxu0 0.0
  %702 = vmatpush1.msra.mxu0 0.0
  %703 = vmatprep.subr.mxu0 0.0
  %704 = vmatpush1.msra.mxu0 0.0
  %705 = vmatprep.subr.mxu0 0.0
  %706 = vmatpush1.msra.mxu0 0.0
  %707 = vmatprep.subr.mxu0 0.0
  %708 = vmatpush1.msra.mxu0 0.0
  %709 = vmatprep.subr.mxu0 0.0
  %710 = vmatpush1.msra.mxu0 0.0
  %711 = vmatprep.subr.mxu0 0.0
  %712 = vmatpush1.msra.mxu0 0.0
  %713 = vmatprep.subr.mxu0 0.0
  %714 = vmatpush1.msra.mxu0 0.0
  %715 = vmatprep.subr.mxu0 0.0
  %716 = vmatpush1.msra.mxu0 0.0
  %717 = vmatprep.subr.mxu0 0.0
  %718 = vmatpush1.msra.mxu0 0.0
  %719 = vmatprep.mubr.f32.mxu0 0.0
  %720 = vmatmul.mubr.f32.gmra.mrb[0].mxu0 %v650
  %v721 = vpop.f32.mrb[0].mxu0
  %v722 = vadd.f32 0.0, %v721
  %v723 = vpop.f32.mrb[0].mxu0
  %724 = vmatprep.mubr.f32.mxu0 0.0
  %725 = vmatmul.mubr.f32.gmra.mrb[0].mxu0 %v653
  %v726 = vpop.f32.mrb[0].mxu0
  %v727 = vadd.f32 0.0, %v726
  %v728 = vpop.f32.mrb[0].mxu0
  %729 = vdwg.mxu0
  %730 = vxpose.xlu0.b32.start [1/16] %v287, 128
  %731 = vxpose.xlu0.b32.cont [2/16] 0.0, 128
  %732 = vxpose.xlu0.b32.cont [3/16] 0.0, 128
  %733 = vxpose.xlu0.b32.cont [4/16] 0.0, 128
  %734 = vxpose.xlu0.b32.cont [5/16] 0.0, 128
  %735 = vxpose.xlu0.b32.cont [6/16] 0.0, 128
  %736 = vxpose.xlu0.b32.cont [7/16] 0.0, 128
  %737 = vxpose.xlu0.b32.cont [8/16] 0.0, 128
  %738 = vxpose.xlu0.b32.cont [9/16] 0.0, 128
  %739 = vxpose.xlu0.b32.cont [10/16] 0.0, 128
  %740 = vxpose.xlu0.b32.cont [11/16] 0.0, 128
  %741 = vxpose.xlu0.b32.cont [12/16] 0.0, 128
  %742 = vxpose.xlu0.b32.cont [13/16] 0.0, 128
  %743 = vxpose.xlu0.b32.cont [14/16] 0.0, 128
  %744 = vxpose.xlu0.b32.cont [15/16] 0.0, 128
  %745 = vxpose.xlu0.b32.end [16/16] 0.0, 128
  %v746 = vpop.trf.xlu0
  %v747 = vpop.trf.xlu0
  %v748 = vpop.trf.xlu0
  %v749 = vpop.trf.xlu0
  %v750 = vpop.trf.xlu0
  %v751 = vpop.trf.xlu0
  %v752 = vpop.trf.xlu0
  %v753 = vpop.trf.xlu0
  %v754 = vpop.trf.xlu0
  %v755 = vpop.trf.xlu0
  %v756 = vpop.trf.xlu0
  %v757 = vpop.trf.xlu0
  %v758 = vpop.trf.xlu0
  %v759 = vpop.trf.xlu0
  %v760 = vpop.trf.xlu0
  %v761 = vpop.trf.xlu0
  %v763 = vsel %vm422, %v746, 0
  %v766 = vsel %vm422, %v747, 0
  %768 = vmatprep.subr.mxu0 0.0
  %769 = vmatpush1.msra.mxu0 %v327
  %770 = vmatprep.subr.mxu0 0.0
  %771 = vmatpush1.msra.mxu0 0.0
  %772 = vmatprep.subr.mxu0 0.0
  %773 = vmatpush1.msra.mxu0 0.0
  %774 = vmatprep.subr.mxu0 0.0
  %775 = vmatpush1.msra.mxu0 0.0
  %776 = vmatprep.subr.mxu0 0.0
  %777 = vmatpush1.msra.mxu0 0.0
  %778 = vmatprep.subr.mxu0 0.0
  %779 = vmatpush1.msra.mxu0 0.0
  %780 = vmatprep.subr.mxu0 0.0
  %781 = vmatpush1.msra.mxu0 0.0
  %782 = vmatprep.subr.mxu0 0.0
  %783 = vmatpush1.msra.mxu0 0.0
  %784 = vmatprep.subr.mxu0 0.0
  %785 = vmatpush1.msra.mxu0 0.0
  %786 = vmatprep.subr.mxu0 0.0
  %787 = vmatpush1.msra.mxu0 0.0
  %788 = vmatprep.subr.mxu0 0.0
  %789 = vmatpush1.msra.mxu0 0.0
  %790 = vmatprep.subr.mxu0 0.0
  %791 = vmatpush1.msra.mxu0 0.0
  %792 = vmatprep.subr.mxu0 0.0
  %793 = vmatpush1.msra.mxu0 0.0
  %794 = vmatprep.subr.mxu0 0.0
  %795 = vmatpush1.msra.mxu0 0.0
  %796 = vmatprep.subr.mxu0 0.0
  %797 = vmatpush1.msra.mxu0 0.0
  %798 = vmatprep.subr.mxu0 0.0
  %799 = vmatpush1.msra.mxu0 0.0
  %800 = vmatprep.subr.mxu0 0.0
  %801 = vmatpush1.msra.mxu0 0.0
  %802 = vmatprep.subr.mxu0 0.0
  %803 = vmatpush1.msra.mxu0 0.0
  %804 = vmatprep.subr.mxu0 0.0
  %805 = vmatpush1.msra.mxu0 0.0
  %806 = vmatprep.subr.mxu0 0.0
  %807 = vmatpush1.msra.mxu0 0.0
  %808 = vmatprep.subr.mxu0 0.0
  %809 = vmatpush1.msra.mxu0 0.0
  %810 = vmatprep.subr.mxu0 0.0
  %811 = vmatpush1.msra.mxu0 0.0
  %812 = vmatprep.subr.mxu0 0.0
  %813 = vmatpush1.msra.mxu0 0.0
  %814 = vmatprep.subr.mxu0 0.0
  %815 = vmatpush1.msra.mxu0 0.0
  %816 = vmatprep.subr.mxu0 0.0
  %817 = vmatpush1.msra.mxu0 0.0
  %818 = vmatprep.subr.mxu0 0.0
  %819 = vmatpush1.msra.mxu0 0.0
  %820 = vmatprep.subr.mxu0 0.0
  %821 = vmatpush1.msra.mxu0 0.0
  %822 = vmatprep.subr.mxu0 0.0
  %823 = vmatpush1.msra.mxu0 0.0
  %824 = vmatprep.subr.mxu0 0.0
  %825 = vmatpush1.msra.mxu0 0.0
  %826 = vmatprep.subr.mxu0 0.0
  %827 = vmatpush1.msra.mxu0 0.0
  %828 = vmatprep.subr.mxu0 0.0
  %829 = vmatpush1.msra.mxu0 0.0
  %830 = vmatprep.subr.mxu0 0.0
  %831 = vmatpush1.msra.mxu0 0.0
  %832 = vmatprep.mubr.f32.mxu0 0.0
  %833 = vmatmul.mubr.f32.gmra.mrb[0].mxu0 %v763
  %v834 = vpop.f32.mrb[0].mxu0
  %v835 = vadd.f32 0.0, %v834
  %v836 = vpop.f32.mrb[0].mxu0
  %837 = vmatprep.mubr.f32.mxu0 0.0
  %838 = vmatmul.mubr.f32.gmra.mrb[0].mxu0 %v766
  %v839 = vpop.f32.mrb[0].mxu0
  %v840 = vadd.f32 0.0, %v839
  %v841 = vpop.f32.mrb[0].mxu0
  %842 = vdwg.mxu0
  %843 = vxpose.xlu0.b32.start [1/16] %v292, 128
  %844 = vxpose.xlu0.b32.cont [2/16] 0.0, 128
  %845 = vxpose.xlu0.b32.cont [3/16] 0.0, 128
  %846 = vxpose.xlu0.b32.cont [4/16] 0.0, 128
  %847 = vxpose.xlu0.b32.cont [5/16] 0.0, 128
  %848 = vxpose.xlu0.b32.cont [6/16] 0.0, 128
  %849 = vxpose.xlu0.b32.cont [7/16] 0.0, 128
  %850 = vxpose.xlu0.b32.cont [8/16] 0.0, 128
  %851 = vxpose.xlu0.b32.cont [9/16] 0.0, 128
  %852 = vxpose.xlu0.b32.cont [10/16] 0.0, 128
  %853 = vxpose.xlu0.b32.cont [11/16] 0.0, 128
  %854 = vxpose.xlu0.b32.cont [12/16] 0.0, 128
  %855 = vxpose.xlu0.b32.cont [13/16] 0.0, 128
  %856 = vxpose.xlu0.b32.cont [14/16] 0.0, 128
  %857 = vxpose.xlu0.b32.cont [15/16] 0.0, 128
  %858 = vxpose.xlu0.b32.end [16/16] 0.0, 128
  %v859 = vpop.trf.xlu0
  %v860 = vpop.trf.xlu0
  %v861 = vpop.trf.xlu0
  %v862 = vpop.trf.xlu0
  %v863 = vpop.trf.xlu0
  %v864 = vpop.trf.xlu0
  %v865 = vpop.trf.xlu0
  %v866 = vpop.trf.xlu0
  %v867 = vpop.trf.xlu0
  %v868 = vpop.trf.xlu0
  %v869 = vpop.trf.xlu0
  %v870 = vpop.trf.xlu0
  %v871 = vpop.trf.xlu0
  %v872 = vpop.trf.xlu0
  %v873 = vpop.trf.xlu0
  %v874 = vpop.trf.xlu0
  %v876 = vsel %vm422, %v859, 0
  %v879 = vsel %vm422, %v860, 0
  %881 = vmatprep.subr.mxu0 0.0
  %882 = vmatpush1.msra.mxu0 %v332
  %883 = vmatprep.subr.mxu0 0.0
  %884 = vmatpush1.msra.mxu0 0.0
  %885 = vmatprep.subr.mxu0 0.0
  %886 = vmatpush1.msra.mxu0 0.0
  %887 = vmatprep.subr.mxu0 0.0
  %888 = vmatpush1.msra.mxu0 0.0
  %889 = vmatprep.subr.mxu0 0.0
  %890 = vmatpush1.msra.mxu0 0.0
  %891 = vmatprep.subr.mxu0 0.0
  %892 = vmatpush1.msra.mxu0 0.0
  %893 = vmatprep.subr.mxu0 0.0
  %894 = vmatpush1.msra.mxu0 0.0
  %895 = vmatprep.subr.mxu0 0.0
  %896 = vmatpush1.msra.mxu0 0.0
  %897 = vmatprep.subr.mxu0 0.0
  %898 = vmatpush1.msra.mxu0 0.0
  %899 = vmatprep.subr.mxu0 0.0
  %900 = vmatpush1.msra.mxu0 0.0
  %901 = vmatprep.subr.mxu0 0.0
  %902 = vmatpush1.msra.mxu0 0.0
  %903 = vmatprep.subr.mxu0 0.0
  %904 = vmatpush1.msra.mxu0 0.0
  %905 = vmatprep.subr.mxu0 0.0
  %906 = vmatpush1.msra.mxu0 0.0
  %907 = vmatprep.subr.mxu0 0.0
  %908 = vmatpush1.msra.mxu0 0.0
  %909 = vmatprep.subr.mxu0 0.0
  %910 = vmatpush1.msra.mxu0 0.0
  %911 = vmatprep.subr.mxu0 0.0
  %912 = vmatpush1.msra.mxu0 0.0
  %913 = vmatprep.subr.mxu0 0.0
  %914 = vmatpush1.msra.mxu0 0.0
  %915 = vmatprep.subr.mxu0 0.0
  %916 = vmatpush1.msra.mxu0 0.0
  %917 = vmatprep.subr.mxu0 0.0
  %918 = vmatpush1.msra.mxu0 0.0
  %919 = vmatprep.subr.mxu0 0.0
  %920 = vmatpush1.msra.mxu0 0.0
  %921 = vmatprep.subr.mxu0 0.0
  %922 = vmatpush1.msra.mxu0 0.0
  %923 = vmatprep.subr.mxu0 0.0
  %924 = vmatpush1.msra.mxu0 0.0
  %925 = vmatprep.subr.mxu0 0.0
  %926 = vmatpush1.msra.mxu0 0.0
  %927 = vmatprep.subr.mxu0 0.0
  %928 = vmatpush1.msra.mxu0 0.0
  %929 = vmatprep.subr.mxu0 0.0
  %930 = vmatpush1.msra.mxu0 0.0
  %931 = vmatprep.subr.mxu0 0.0
  %932 = vmatpush1.msra.mxu0 0.0
  %933 = vmatprep.subr.mxu0 0.0
  %934 = vmatpush1.msra.mxu0 0.0
  %935 = vmatprep.subr.mxu0 0.0
  %936 = vmatpush1.msra.mxu0 0.0
  %937 = vmatprep.subr.mxu0 0.0
  %938 = vmatpush1.msra.mxu0 0.0
  %939 = vmatprep.subr.mxu0 0.0
  %940 = vmatpush1.msra.mxu0 0.0
  %941 = vmatprep.subr.mxu0 0.0
  %942 = vmatpush1.msra.mxu0 0.0
  %943 = vmatprep.subr.mxu0 0.0
  %944 = vmatpush1.msra.mxu0 0.0
  %945 = vmatprep.mubr.f32.mxu0 0.0
  %946 = vmatmul.mubr.f32.gmra.mrb[0].mxu0 %v876
  %v947 = vpop.f32.mrb[0].mxu0
  %v948 = vadd.f32 0.0, %v947
  %v949 = vpop.f32.mrb[0].mxu0
  %950 = vmatprep.mubr.f32.mxu0 0.0
  %951 = vmatmul.mubr.f32.gmra.mrb[0].mxu0 %v879
  %v952 = vpop.f32.mrb[0].mxu0
  %v953 = vadd.f32 0.0, %v952
  %v954 = vpop.f32.mrb[0].mxu0
  %955 = vdwg.mxu0
  %956 = vxpose.xlu0.b32.start [1/16] %v297, 128
  %957 = vxpose.xlu0.b32.cont [2/16] 0.0, 128
  %958 = vxpose.xlu0.b32.cont [3/16] 0.0, 128
  %959 = vxpose.xlu0.b32.cont [4/16] 0.0, 128
  %960 = vxpose.xlu0.b32.cont [5/16] 0.0, 128
  %961 = vxpose.xlu0.b32.cont [6/16] 0.0, 128
  %962 = vxpose.xlu0.b32.cont [7/16] 0.0, 128
  %963 = vxpose.xlu0.b32.cont [8/16] 0.0, 128
  %964 = vxpose.xlu0.b32.cont [9/16] 0.0, 128
  %965 = vxpose.xlu0.b32.cont [10/16] 0.0, 128
  %966 = vxpose.xlu0.b32.cont [11/16] 0.0, 128
  %967 = vxpose.xlu0.b32.cont [12/16] 0.0, 128
  %968 = vxpose.xlu0.b32.cont [13/16] 0.0, 128
  %969 = vxpose.xlu0.b32.cont [14/16] 0.0, 128
  %970 = vxpose.xlu0.b32.cont [15/16] 0.0, 128
  %971 = vxpose.xlu0.b32.end [16/16] 0.0, 128
  %v972 = vpop.trf.xlu0
  %v973 = vpop.trf.xlu0
  %v974 = vpop.trf.xlu0
  %v975 = vpop.trf.xlu0
  %v976 = vpop.trf.xlu0
  %v977 = vpop.trf.xlu0
  %v978 = vpop.trf.xlu0
  %v979 = vpop.trf.xlu0
  %v980 = vpop.trf.xlu0
  %v981 = vpop.trf.xlu0
  %v982 = vpop.trf.xlu0
  %v983 = vpop.trf.xlu0
  %v984 = vpop.trf.xlu0
  %v985 = vpop.trf.xlu0
  %v986 = vpop.trf.xlu0
  %v987 = vpop.trf.xlu0
  %v989 = vsel %vm422, %v972, 0
  %v992 = vsel %vm422, %v973, 0
  %994 = vmatprep.subr.mxu0 0.0
  %995 = vmatpush1.msra.mxu0 %v337
  %996 = vmatprep.subr.mxu0 0.0
  %997 = vmatpush1.msra.mxu0 0.0
  %998 = vmatprep.subr.mxu0 0.0
  %999 = vmatpush1.msra.mxu0 0.0
  %1000 = vmatprep.subr.mxu0 0.0
  %1001 = vmatpush1.msra.mxu0 0.0
  %1002 = vmatprep.subr.mxu0 0.0
  %1003 = vmatpush1.msra.mxu0 0.0
  %1004 = vmatprep.subr.mxu0 0.0
  %1005 = vmatpush1.msra.mxu0 0.0
  %1006 = vmatprep.subr.mxu0 0.0
  %1007 = vmatpush1.msra.mxu0 0.0
  %1008 = vmatprep.subr.mxu0 0.0
  %1009 = vmatpush1.msra.mxu0 0.0
  %1010 = vmatprep.subr.mxu0 0.0
  %1011 = vmatpush1.msra.mxu0 0.0
  %1012 = vmatprep.subr.mxu0 0.0
  %1013 = vmatpush1.msra.mxu0 0.0
  %1014 = vmatprep.subr.mxu0 0.0
  %1015 = vmatpush1.msra.mxu0 0.0
  %1016 = vmatprep.subr.mxu0 0.0
  %1017 = vmatpush1.msra.mxu0 0.0
  %1018 = vmatprep.subr.mxu0 0.0
  %1019 = vmatpush1.msra.mxu0 0.0
  %1020 = vmatprep.subr.mxu0 0.0
  %1021 = vmatpush1.msra.mxu0 0.0
  %1022 = vmatprep.subr.mxu0 0.0
  %1023 = vmatpush1.msra.mxu0 0.0
  %1024 = vmatprep.subr.mxu0 0.0
  %1025 = vmatpush1.msra.mxu0 0.0
  %1026 = vmatprep.subr.mxu0 0.0
  %1027 = vmatpush1.msra.mxu0 0.0
  %1028 = vmatprep.subr.mxu0 0.0
  %1029 = vmatpush1.msra.mxu0 0.0
  %1030 = vmatprep.subr.mxu0 0.0
  %1031 = vmatpush1.msra.mxu0 0.0
  %1032 = vmatprep.subr.mxu0 0.0
  %1033 = vmatpush1.msra.mxu0 0.0
  %1034 = vmatprep.subr.mxu0 0.0
  %1035 = vmatpush1.msra.mxu0 0.0
  %1036 = vmatprep.subr.mxu0 0.0
  %1037 = vmatpush1.msra.mxu0 0.0
  %1038 = vmatprep.subr.mxu0 0.0
  %1039 = vmatpush1.msra.mxu0 0.0
  %1040 = vmatprep.subr.mxu0 0.0
  %1041 = vmatpush1.msra.mxu0 0.0
  %1042 = vmatprep.subr.mxu0 0.0
  %1043 = vmatpush1.msra.mxu0 0.0
  %1044 = vmatprep.subr.mxu0 0.0
  %1045 = vmatpush1.msra.mxu0 0.0
  %1046 = vmatprep.subr.mxu0 0.0
  %1047 = vmatpush1.msra.mxu0 0.0
  %1048 = vmatprep.subr.mxu0 0.0
  %1049 = vmatpush1.msra.mxu0 0.0
  %1050 = vmatprep.subr.mxu0 0.0
  %1051 = vmatpush1.msra.mxu0 0.0
  %1052 = vmatprep.subr.mxu0 0.0
  %1053 = vmatpush1.msra.mxu0 0.0
  %1054 = vmatprep.subr.mxu0 0.0
  %1055 = vmatpush1.msra.mxu0 0.0
  %1056 = vmatprep.subr.mxu0 0.0
  %1057 = vmatpush1.msra.mxu0 0.0
  %1058 = vmatprep.mubr.f32.mxu0 0.0
  %1059 = vmatmul.mubr.f32.gmra.mrb[0].mxu0 %v989
  %v1060 = vpop.f32.mrb[0].mxu0
  %v1061 = vadd.f32 0.0, %v1060
  %v1062 = vpop.f32.mrb[0].mxu0
  %1063 = vmatprep.mubr.f32.mxu0 0.0
  %1064 = vmatmul.mubr.f32.gmra.mrb[0].mxu0 %v992
  %v1065 = vpop.f32.mrb[0].mxu0
  %v1066 = vadd.f32 0.0, %v1065
  %v1067 = vpop.f32.mrb[0].mxu0
  %1068 = vdwg.mxu0
  %1069 = vxpose.xlu0.b32.start [1/16] %v302, 128
  %1070 = vxpose.xlu0.b32.cont [2/16] 0.0, 128
  %1071 = vxpose.xlu0.b32.cont [3/16] 0.0, 128
  %1072 = vxpose.xlu0.b32.cont [4/16] 0.0, 128
  %1073 = vxpose.xlu0.b32.cont [5/16] 0.0, 128
  %1074 = vxpose.xlu0.b32.cont [6/16] 0.0, 128
  %1075 = vxpose.xlu0.b32.cont [7/16] 0.0, 128
  %1076 = vxpose.xlu0.b32.cont [8/16] 0.0, 128
  %1077 = vxpose.xlu0.b32.cont [9/16] 0.0, 128
  %1078 = vxpose.xlu0.b32.cont [10/16] 0.0, 128
  %1079 = vxpose.xlu0.b32.cont [11/16] 0.0, 128
  %1080 = vxpose.xlu0.b32.cont [12/16] 0.0, 128
  %1081 = vxpose.xlu0.b32.cont [13/16] 0.0, 128
  %1082 = vxpose.xlu0.b32.cont [14/16] 0.0, 128
  %1083 = vxpose.xlu0.b32.cont [15/16] 0.0, 128
  %1084 = vxpose.xlu0.b32.end [16/16] 0.0, 128
  %v1085 = vpop.trf.xlu0
  %v1086 = vpop.trf.xlu0
  %v1087 = vpop.trf.xlu0
  %v1088 = vpop.trf.xlu0
  %v1089 = vpop.trf.xlu0
  %v1090 = vpop.trf.xlu0
  %v1091 = vpop.trf.xlu0
  %v1092 = vpop.trf.xlu0
  %v1093 = vpop.trf.xlu0
  %v1094 = vpop.trf.xlu0
  %v1095 = vpop.trf.xlu0
  %v1096 = vpop.trf.xlu0
  %v1097 = vpop.trf.xlu0
  %v1098 = vpop.trf.xlu0
  %v1099 = vpop.trf.xlu0
  %v1100 = vpop.trf.xlu0
  %v1102 = vsel %vm422, %v1085, 0
  %v1105 = vsel %vm422, %v1086, 0
  %1107 = vmatprep.subr.mxu0 0.0
  %1108 = vmatpush1.msra.mxu0 %v342
  %1109 = vmatprep.subr.mxu0 0.0
  %1110 = vmatpush1.msra.mxu0 0.0
  %1111 = vmatprep.subr.mxu0 0.0
  %1112 = vmatpush1.msra.mxu0 0.0
  %1113 = vmatprep.subr.mxu0 0.0
  %1114 = vmatpush1.msra.mxu0 0.0
  %1115 = vmatprep.subr.mxu0 0.0
  %1116 = vmatpush1.msra.mxu0 0.0
  %1117 = vmatprep.subr.mxu0 0.0
  %1118 = vmatpush1.msra.mxu0 0.0
  %1119 = vmatprep.subr.mxu0 0.0
  %1120 = vmatpush1.msra.mxu0 0.0
  %1121 = vmatprep.subr.mxu0 0.0
  %1122 = vmatpush1.msra.mxu0 0.0
  %1123 = vmatprep.subr.mxu0 0.0
  %1124 = vmatpush1.msra.mxu0 0.0
  %1125 = vmatprep.subr.mxu0 0.0
  %1126 = vmatpush1.msra.mxu0 0.0
  %1127 = vmatprep.subr.mxu0 0.0
  %1128 = vmatpush1.msra.mxu0 0.0
  %1129 = vmatprep.subr.mxu0 0.0
  %1130 = vmatpush1.msra.mxu0 0.0
  %1131 = vmatprep.subr.mxu0 0.0
  %1132 = vmatpush1.msra.mxu0 0.0
  %1133 = vmatprep.subr.mxu0 0.0
  %1134 = vmatpush1.msra.mxu0 0.0
  %1135 = vmatprep.subr.mxu0 0.0
  %1136 = vmatpush1.msra.mxu0 0.0
  %1137 = vmatprep.subr.mxu0 0.0
  %1138 = vmatpush1.msra.mxu0 0.0
  %1139 = vmatprep.subr.mxu0 0.0
  %1140 = vmatpush1.msra.mxu0 0.0
  %1141 = vmatprep.subr.mxu0 0.0
  %1142 = vmatpush1.msra.mxu0 0.0
  %1143 = vmatprep.subr.mxu0 0.0
  %1144 = vmatpush1.msra.mxu0 0.0
  %1145 = vmatprep.subr.mxu0 0.0
  %1146 = vmatpush1.msra.mxu0 0.0
  %1147 = vmatprep.subr.mxu0 0.0
  %1148 = vmatpush1.msra.mxu0 0.0
  %1149 = vmatprep.subr.mxu0 0.0
  %1150 = vmatpush1.msra.mxu0 0.0
  %1151 = vmatprep.subr.mxu0 0.0
  %1152 = vmatpush1.msra.mxu0 0.0
  %1153 = vmatprep.subr.mxu0 0.0
  %1154 = vmatpush1.msra.mxu0 0.0
  %1155 = vmatprep.subr.mxu0 0.0
  %1156 = vmatpush1.msra.mxu0 0.0
  %1157 = vmatprep.subr.mxu0 0.0
  %1158 = vmatpush1.msra.mxu0 0.0
  %1159 = vmatprep.subr.mxu0 0.0
  %1160 = vmatpush1.msra.mxu0 0.0
  %1161 = vmatprep.subr.mxu0 0.0
  %1162 = vmatpush1.msra.mxu0 0.0
  %1163 = vmatprep.subr.mxu0 0.0
  %1164 = vmatpush1.msra.mxu0 0.0
  %1165 = vmatprep.subr.mxu0 0.0
  %1166 = vmatpush1.msra.mxu0 0.0
  %1167 = vmatprep.subr.mxu0 0.0
  %1168 = vmatpush1.msra.mxu0 0.0
  %1169 = vmatprep.subr.mxu0 0.0
  %1170 = vmatpush1.msra.mxu0 0.0
  %1171 = vmatprep.mubr.f32.mxu0 0.0
  %1172 = vmatmul.mubr.f32.gmra.mrb[0].mxu0 %v1102
  %v1173 = vpop.f32.mrb[0].mxu0
  %v1174 = vadd.f32 0.0, %v1173
  %v1175 = vpop.f32.mrb[0].mxu0
  %1176 = vmatprep.mubr.f32.mxu0 0.0
  %1177 = vmatmul.mubr.f32.gmra.mrb[0].mxu0 %v1105
  %v1178 = vpop.f32.mrb[0].mxu0
  %v1179 = vadd.f32 0.0, %v1178
  %v1180 = vpop.f32.mrb[0].mxu0
  %1181 = vdwg.mxu0
  %1182 = vxpose.xlu0.b32.start [1/16] %v307, 128
  %1183 = vxpose.xlu0.b32.cont [2/16] 0.0, 128
  %1184 = vxpose.xlu0.b32.cont [3/16] 0.0, 128
  %1185 = vxpose.xlu0.b32.cont [4/16] 0.0, 128
  %1186 = vxpose.xlu0.b32.cont [5/16] 0.0, 128
  %1187 = vxpose.xlu0.b32.cont [6/16] 0.0, 128
  %1188 = vxpose.xlu0.b32.cont [7/16] 0.0, 128
  %1189 = vxpose.xlu0.b32.cont [8/16] 0.0, 128
  %1190 = vxpose.xlu0.b32.cont [9/16] 0.0, 128
  %1191 = vxpose.xlu0.b32.cont [10/16] 0.0, 128
  %1192 = vxpose.xlu0.b32.cont [11/16] 0.0, 128
  %1193 = vxpose.xlu0.b32.cont [12/16] 0.0, 128
  %1194 = vxpose.xlu0.b32.cont [13/16] 0.0, 128
  %1195 = vxpose.xlu0.b32.cont [14/16] 0.0, 128
  %1196 = vxpose.xlu0.b32.cont [15/16] 0.0, 128
  %1197 = vxpose.xlu0.b32.end [16/16] 0.0, 128
  %v1198 = vpop.trf.xlu0
  %v1199 = vpop.trf.xlu0
  %v1200 = vpop.trf.xlu0
  %v1201 = vpop.trf.xlu0
  %v1202 = vpop.trf.xlu0
  %v1203 = vpop.trf.xlu0
  %v1204 = vpop.trf.xlu0
  %v1205 = vpop.trf.xlu0
  %v1206 = vpop.trf.xlu0
  %v1207 = vpop.trf.xlu0
  %v1208 = vpop.trf.xlu0
  %v1209 = vpop.trf.xlu0
  %v1210 = vpop.trf.xlu0
  %v1211 = vpop.trf.xlu0
  %v1212 = vpop.trf.xlu0
  %v1213 = vpop.trf.xlu0
  %v1215 = vsel %vm422, %v1198, 0
  %v1218 = vsel %vm422, %v1199, 0
  %1220 = vmatprep.subr.mxu0 0.0
  %1221 = vmatpush1.msra.mxu0 %v347
  %1222 = vmatprep.subr.mxu0 0.0
  %1223 = vmatpush1.msra.mxu0 0.0
  %1224 = vmatprep.subr.mxu0 0.0
  %1225 = vmatpush1.msra.mxu0 0.0
  %1226 = vmatprep.subr.mxu0 0.0
  %1227 = vmatpush1.msra.mxu0 0.0
  %1228 = vmatprep.subr.mxu0 0.0
  %1229 = vmatpush1.msra.mxu0 0.0
  %1230 = vmatprep.subr.mxu0 0.0
  %1231 = vmatpush1.msra.mxu0 0.0
  %1232 = vmatprep.subr.mxu0 0.0
  %1233 = vmatpush1.msra.mxu0 0.0
  %1234 = vmatprep.subr.mxu0 0.0
  %1235 = vmatpush1.msra.mxu0 0.0
  %1236 = vmatprep.subr.mxu0 0.0
  %1237 = vmatpush1.msra.mxu0 0.0
  %1238 = vmatprep.subr.mxu0 0.0
  %1239 = vmatpush1.msra.mxu0 0.0
  %1240 = vmatprep.subr.mxu0 0.0
  %1241 = vmatpush1.msra.mxu0 0.0
  %1242 = vmatprep.subr.mxu0 0.0
  %1243 = vmatpush1.msra.mxu0 0.0
  %1244 = vmatprep.subr.mxu0 0.0
  %1245 = vmatpush1.msra.mxu0 0.0
  %1246 = vmatprep.subr.mxu0 0.0
  %1247 = vmatpush1.msra.mxu0 0.0
  %1248 = vmatprep.subr.mxu0 0.0
  %1249 = vmatpush1.msra.mxu0 0.0
  %1250 = vmatprep.subr.mxu0 0.0
  %1251 = vmatpush1.msra.mxu0 0.0
  %1252 = vmatprep.subr.mxu0 0.0
  %1253 = vmatpush1.msra.mxu0 0.0
  %1254 = vmatprep.subr.mxu0 0.0
  %1255 = vmatpush1.msra.mxu0 0.0
  %1256 = vmatprep.subr.mxu0 0.0
  %1257 = vmatpush1.msra.mxu0 0.0
  %1258 = vmatprep.subr.mxu0 0.0
  %1259 = vmatpush1.msra.mxu0 0.0
  %1260 = vmatprep.subr.mxu0 0.0
  %1261 = vmatpush1.msra.mxu0 0.0
  %1262 = vmatprep.subr.mxu0 0.0
  %1263 = vmatpush1.msra.mxu0 0.0
  %1264 = vmatprep.subr.mxu0 0.0
  %1265 = vmatpush1.msra.mxu0 0.0
  %1266 = vmatprep.subr.mxu0 0.0
  %1267 = vmatpush1.msra.mxu0 0.0
  %1268 = vmatprep.subr.mxu0 0.0
  %1269 = vmatpush1.msra.mxu0 0.0
  %1270 = vmatprep.subr.mxu0 0.0
  %1271 = vmatpush1.msra.mxu0 0.0
  %1272 = vmatprep.subr.mxu0 0.0
  %1273 = vmatpush1.msra.mxu0 0.0
  %1274 = vmatprep.subr.mxu0 0.0
  %1275 = vmatpush1.msra.mxu0 0.0
  %1276 = vmatprep.subr.mxu0 0.0
  %1277 = vmatpush1.msra.mxu0 0.0
  %1278 = vmatprep.subr.mxu0 0.0
  %1279 = vmatpush1.msra.mxu0 0.0
  %1280 = vmatprep.subr.mxu0 0.0
  %1281 = vmatpush1.msra.mxu0 0.0
  %1282 = vmatprep.subr.mxu0 0.0
  %1283 = vmatpush1.msra.mxu0 0.0
  %1284 = vmatprep.mubr.f32.mxu0 0.0
  %1285 = vmatmul.mubr.f32.gmra.mrb[0].mxu0 %v1215
  %v1286 = vpop.f32.mrb[0].mxu0
  %v1287 = vadd.f32 0.0, %v1286
  %v1288 = vpop.f32.mrb[0].mxu0
  %1289 = vmatprep.mubr.f32.mxu0 0.0
  %1290 = vmatmul.mubr.f32.gmra.mrb[0].mxu0 %v1218
  %v1291 = vpop.f32.mrb[0].mxu0
  %v1292 = vadd.f32 0.0, %v1291
  %v1293 = vpop.f32.mrb[0].mxu0
  %1294 = vdwg.mxu0
  %vm1295 = vcmask 130048
  %v1296 = vsel %vm1295, %v496, -inf
  %1297 = vmax.xlane.f32.xlu0 %v1296
  %v1298 = vpop.xlane.xlu0 %1297
  %v1299 = vsel %vm1295, %v501, -inf
  %1300 = vmax.xlane.f32.xlu0 %v1299
  %v1301 = vpop.xlane.xlu0 %1300
  %v1302 = vsel %vm1295, %v609, -inf
  %1303 = vmax.xlane.f32.xlu0 %v1302
  %v1304 = vpop.xlane.xlu0 %1303
  %v1305 = vsel %vm1295, %v614, -inf
  %1306 = vmax.xlane.f32.xlu0 %v1305
  %v1307 = vpop.xlane.xlu0 %1306
  %v1308 = vsel %vm1295, %v722, -inf
  %1309 = vmax.xlane.f32.xlu0 %v1308
  %v1310 = vpop.xlane.xlu0 %1309
  %v1311 = vsel %vm1295, %v727, -inf
  %1312 = vmax.xlane.f32.xlu0 %v1311
  %v1313 = vpop.xlane.xlu0 %1312
  %v1314 = vsel %vm1295, %v835, -inf
  %1315 = vmax.xlane.f32.xlu0 %v1314
  %v1316 = vpop.xlane.xlu0 %1315
  %v1317 = vsel %vm1295, %v840, -inf
  %1318 = vmax.xlane.f32.xlu0 %v1317
  %v1319 = vpop.xlane.xlu0 %1318
  %v1320 = vsel %vm1295, %v948, -inf
  %1321 = vmax.xlane.f32.xlu0 %v1320
  %v1322 = vpop.xlane.xlu0 %1321
  %v1323 = vsel %vm1295, %v953, -inf
  %1324 = vmax.xlane.f32.xlu0 %v1323
  %v1325 = vpop.xlane.xlu0 %1324
  %v1326 = vsel %vm1295, %v1061, -inf
  %1327 = vmax.xlane.f32.xlu0 %v1326
  %v1328 = vpop.xlane.xlu0 %1327
  %v1329 = vsel %vm1295, %v1066, -inf
  %1330 = vmax.xlane.f32.xlu0 %v1329
  %v1331 = vpop.xlane.xlu0 %1330
  %v1332 = vsel %vm1295, %v1174, -inf
  %1333 = vmax.xlane.f32.xlu0 %v1332
  %v1334 = vpop.xlane.xlu0 %1333
  %v1335 = vsel %vm1295, %v1179, -inf
  %1336 = vmax.xlane.f32.xlu0 %v1335
  %v1337 = vpop.xlane.xlu0 %1336
  %v1338 = vsel %vm1295, %v1287, -inf
  %1339 = vmax.xlane.f32.xlu0 %v1338
  %v1340 = vpop.xlane.xlu0 %1339
  %v1341 = vsel %vm1295, %v1292, -inf
  %1342 = vmax.xlane.f32.xlu0 %v1341
  %v1343 = vpop.xlane.xlu0 %1342
  %v1344 = vsub.f32 %v496, %v1298
  %v1345 = vsub.f32 %v501, %v1301
  %v1346 = vsub.f32 %v609, %v1304
  %v1347 = vsub.f32 %v614, %v1307
  %v1348 = vsub.f32 %v722, %v1310
  %v1349 = vsub.f32 %v727, %v1313
  %v1350 = vsub.f32 %v835, %v1316
  %v1351 = vsub.f32 %v840, %v1319
  %v1352 = vsub.f32 %v948, %v1322
  %v1353 = vsub.f32 %v953, %v1325
  %v1354 = vsub.f32 %v1061, %v1328
  %v1355 = vsub.f32 %v1066, %v1331
  %v1356 = vsub.f32 %v1174, %v1334
  %v1357 = vsub.f32 %v1179, %v1337
  %v1358 = vsub.f32 %v1287, %v1340
  %v1359 = vsub.f32 %v1292, %v1343
  %v1360 = vmul.f32 %v1344, 1.442695
  %v1361 = vpow.pop %v1360
  %v1362 = vmul.f32 %v1345, 1.442695
  %v1363 = vpow.pop %v1362
  %v1364 = vmul.f32 %v1346, 1.442695
  %v1365 = vpow.pop %v1364
  %v1366 = vmul.f32 %v1347, 1.442695
  %v1367 = vpow.pop %v1366
  %v1368 = vmul.f32 %v1348, 1.442695
  %v1369 = vpow.pop %v1368
  %v1370 = vmul.f32 %v1349, 1.442695
  %v1371 = vpow.pop %v1370
  %v1372 = vmul.f32 %v1350, 1.442695
  %v1373 = vpow.pop %v1372
  %v1374 = vmul.f32 %v1351, 1.442695
  %v1375 = vpow.pop %v1374
  %v1376 = vmul.f32 %v1352, 1.442695
  %v1377 = vpow.pop %v1376
  %v1378 = vmul.f32 %v1353, 1.442695
  %v1379 = vpow.pop %v1378
  %v1380 = vmul.f32 %v1354, 1.442695
  %v1381 = vpow.pop %v1380
  %v1382 = vmul.f32 %v1355, 1.442695
  %v1383 = vpow.pop %v1382
  %v1384 = vmul.f32 %v1356, 1.442695
  %v1385 = vpow.pop %v1384
  %v1386 = vmul.f32 %v1357, 1.442695
  %v1387 = vpow.pop %v1386
  %v1388 = vmul.f32 %v1358, 1.442695
  %v1389 = vpow.pop %v1388
  %v1390 = vmul.f32 %v1359, 1.442695
  %v1391 = vpow.pop %v1390
  %v1392 = vsel %vm1295, %v1361, 0.0
  %1393 = vadd.xlane.f32.xlu0 %v1392
  %v1394 = vpop.xlane.xlu0 %1393
  %v1395 = vsel %vm1295, %v1363, 0.0
  %1396 = vadd.xlane.f32.xlu0 %v1395
  %v1397 = vpop.xlane.xlu0 %1396
  %v1398 = vsel %vm1295, %v1365, 0.0
  %1399 = vadd.xlane.f32.xlu0 %v1398
  %v1400 = vpop.xlane.xlu0 %1399
  %v1401 = vsel %vm1295, %v1367, 0.0
  %1402 = vadd.xlane.f32.xlu0 %v1401
  %v1403 = vpop.xlane.xlu0 %1402
  %v1404 = vsel %vm1295, %v1369, 0.0
  %1405 = vadd.xlane.f32.xlu0 %v1404
  %v1406 = vpop.xlane.xlu0 %1405
  %v1407 = vsel %vm1295, %v1371, 0.0
  %1408 = vadd.xlane.f32.xlu0 %v1407
  %v1409 = vpop.xlane.xlu0 %1408
  %v1410 = vsel %vm1295, %v1373, 0.0
  %1411 = vadd.xlane.f32.xlu0 %v1410
  %v1412 = vpop.xlane.xlu0 %1411
  %v1413 = vsel %vm1295, %v1375, 0.0
  %1414 = vadd.xlane.f32.xlu0 %v1413
  %v1415 = vpop.xlane.xlu0 %1414
  %v1416 = vsel %vm1295, %v1377, 0.0
  %1417 = vadd.xlane.f32.xlu0 %v1416
  %v1418 = vpop.xlane.xlu0 %1417
  %v1419 = vsel %vm1295, %v1379, 0.0
  %1420 = vadd.xlane.f32.xlu0 %v1419
  %v1421 = vpop.xlane.xlu0 %1420
  %v1422 = vsel %vm1295, %v1381, 0.0
  %1423 = vadd.xlane.f32.xlu0 %v1422
  %v1424 = vpop.xlane.xlu0 %1423
  %v1425 = vsel %vm1295, %v1383, 0.0
  %1426 = vadd.xlane.f32.xlu0 %v1425
  %v1427 = vpop.xlane.xlu0 %1426
  %v1428 = vsel %vm1295, %v1385, 0.0
  %1429 = vadd.xlane.f32.xlu0 %v1428
  %v1430 = vpop.xlane.xlu0 %1429
  %v1431 = vsel %vm1295, %v1387, 0.0
  %1432 = vadd.xlane.f32.xlu0 %v1431
  %v1433 = vpop.xlane.xlu0 %1432
  %v1434 = vsel %vm1295, %v1389, 0.0
  %1435 = vadd.xlane.f32.xlu0 %v1434
  %v1436 = vpop.xlane.xlu0 %1435
  %v1437 = vsel %vm1295, %v1391, 0.0
  %1438 = vadd.xlane.f32.xlu0 %v1437
  %v1439 = vpop.xlane.xlu0 %1438
  %v1440 = vrcp.pop %v1394
  %v1441 = vrcp.pop %v1397
  %v1442 = vrcp.pop %v1400
  %v1443 = vrcp.pop %v1403
  %v1444 = vrcp.pop %v1406
  %v1445 = vrcp.pop %v1409
  %v1446 = vrcp.pop %v1412
  %v1447 = vrcp.pop %v1415
  %v1448 = vrcp.pop %v1418
  %v1449 = vrcp.pop %v1421
  %v1450 = vrcp.pop %v1424
  %v1451 = vrcp.pop %v1427
  %v1452 = vrcp.pop %v1430
  %v1453 = vrcp.pop %v1433
  %v1454 = vrcp.pop %v1436
  %v1455 = vrcp.pop %v1439
  %v1456 = vmul.f32 %v1361, %v1440
  %v1457 = vmul.f32 %v1363, %v1441
  %v1458 = vmul.f32 %v1365, %v1442
  %v1459 = vmul.f32 %v1367, %v1443
  %v1460 = vmul.f32 %v1369, %v1444
  %v1461 = vmul.f32 %v1371, %v1445
  %v1462 = vmul.f32 %v1373, %v1446
  %v1463 = vmul.f32 %v1375, %v1447
  %v1464 = vmul.f32 %v1377, %v1448
  %v1465 = vmul.f32 %v1379, %v1449
  %v1466 = vmul.f32 %v1381, %v1450
  %v1467 = vmul.f32 %v1383, %v1451
  %v1468 = vmul.f32 %v1385, %v1452
  %v1469 = vmul.f32 %v1387, %v1453
  %v1470 = vmul.f32 %v1389, %v1454
  %v1471 = vmul.f32 %v1391, %v1455
  %v1473 = vsel %vm1295, %v352, 0
  %v1476 = vsel %vm1295, %v1456, 0
  %v1479 = vsel %vm1295, %v1457, 0
  %1481 = vmatprep.subr.mxu0 0.0
  %1482 = vmatpush1.xpose.msra.mxu0 %v1476
  %1483 = vmatprep.subr.mxu0 0.0
  %1484 = vmatpush1.xpose.msra.mxu0 %v1479
  %1485 = vmatprep.subr.mxu0 0.0
  %1486 = vmatpush1.xpose.msra.mxu0 0.0
  %1487 = vmatprep.subr.mxu0 0.0
  %1488 = vmatpush1.xpose.msra.mxu0 0.0
  %1489 = vmatprep.subr.mxu0 0.0
  %1490 = vmatpush1.xpose.msra.mxu0 0.0
  %1491 = vmatprep.subr.mxu0 0.0
  %1492 = vmatpush1.xpose.msra.mxu0 0.0
  %1493 = vmatprep.subr.mxu0 0.0
  %1494 = vmatpush1.xpose.msra.mxu0 0.0
  %1495 = vmatprep.subr.mxu0 0.0
  %1496 = vmatpush1.xpose.msra.mxu0 0.0
  %1497 = vmatprep.subr.mxu0 0.0
  %1498 = vmatpush1.xpose.msra.mxu0 0.0
  %1499 = vmatprep.subr.mxu0 0.0
  %1500 = vmatpush1.xpose.msra.mxu0 0.0
  %1501 = vmatprep.subr.mxu0 0.0
  %1502 = vmatpush1.xpose.msra.mxu0 0.0
  %1503 = vmatprep.subr.mxu0 0.0
  %1504 = vmatpush1.xpose.msra.mxu0 0.0
  %1505 = vmatprep.subr.mxu0 0.0
  %1506 = vmatpush1.xpose.msra.mxu0 0.0
  %1507 = vmatprep.subr.mxu0 0.0
  %1508 = vmatpush1.xpose.msra.mxu0 0.0
  %1509 = vmatprep.subr.mxu0 0.0
  %1510 = vmatpush1.xpose.msra.mxu0 0.0
  %1511 = vmatprep.subr.mxu0 0.0
  %1512 = vmatpush1.xpose.msra.mxu0 0.0
  %1513 = vmatprep.subr.mxu0 0.0
  %1514 = vmatpush1.xpose.msra.mxu0 0.0
  %1515 = vmatprep.subr.mxu0 0.0
  %1516 = vmatpush1.xpose.msra.mxu0 0.0
  %1517 = vmatprep.subr.mxu0 0.0
  %1518 = vmatpush1.xpose.msra.mxu0 0.0
  %1519 = vmatprep.subr.mxu0 0.0
  %1520 = vmatpush1.xpose.msra.mxu0 0.0
  %1521 = vmatprep.subr.mxu0 0.0
  %1522 = vmatpush1.xpose.msra.mxu0 0.0
  %1523 = vmatprep.subr.mxu0 0.0
  %1524 = vmatpush1.xpose.msra.mxu0 0.0
  %1525 = vmatprep.subr.mxu0 0.0
  %1526 = vmatpush1.xpose.msra.mxu0 0.0
  %1527 = vmatprep.subr.mxu0 0.0
  %1528 = vmatpush1.xpose.msra.mxu0 0.0
  %1529 = vmatprep.subr.mxu0 0.0
  %1530 = vmatpush1.xpose.msra.mxu0 0.0
  %1531 = vmatprep.subr.mxu0 0.0
  %1532 = vmatpush1.xpose.msra.mxu0 0.0
  %1533 = vmatprep.subr.mxu0 0.0
  %1534 = vmatpush1.xpose.msra.mxu0 0.0
  %1535 = vmatprep.subr.mxu0 0.0
  %1536 = vmatpush1.xpose.msra.mxu0 0.0
  %1537 = vmatprep.subr.mxu0 0.0
  %1538 = vmatpush1.xpose.msra.mxu0 0.0
  %1539 = vmatprep.subr.mxu0 0.0
  %1540 = vmatpush1.xpose.msra.mxu0 0.0
  %1541 = vmatprep.subr.mxu0 0.0
  %1542 = vmatpush1.xpose.msra.mxu0 0.0
  %1543 = vmatprep.subr.mxu0 0.0
  %1544 = vmatpush1.xpose.msra.mxu0 0.0
  %1545 = vmatprep.mubr.f32.mxu0 0.0
  %1546 = vmatmul.mubr.f32.gmra.mrb[0].mxu0 %v1473
  %v1547 = vpop.f32.mrb[0].mxu0
  %v1548 = vadd.f32 0.0, %v1547
  %v1549 = vpop.f32.mrb[0].mxu0
  %1550 = vdwg.mxu0
  %v1552 = vsel %vm1295, %v357, 0
  %v1555 = vsel %vm1295, %v1458, 0
  %v1558 = vsel %vm1295, %v1459, 0
  %1560 = vmatprep.subr.mxu0 0.0
  %1561 = vmatpush1.xpose.msra.mxu0 %v1555
  %1562 = vmatprep.subr.mxu0 0.0
  %1563 = vmatpush1.xpose.msra.mxu0 %v1558
  %1564 = vmatprep.subr.mxu0 0.0
  %1565 = vmatpush1.xpose.msra.mxu0 0.0
  %1566 = vmatprep.subr.mxu0 0.0
  %1567 = vmatpush1.xpose.msra.mxu0 0.0
  %1568 = vmatprep.subr.mxu0 0.0
  %1569 = vmatpush1.xpose.msra.mxu0 0.0
  %1570 = vmatprep.subr.mxu0 0.0
  %1571 = vmatpush1.xpose.msra.mxu0 0.0
  %1572 = vmatprep.subr.mxu0 0.0
  %1573 = vmatpush1.xpose.msra.mxu0 0.0
  %1574 = vmatprep.subr.mxu0 0.0
  %1575 = vmatpush1.xpose.msra.mxu0 0.0
  %1576 = vmatprep.subr.mxu0 0.0
  %1577 = vmatpush1.xpose.msra.mxu0 0.0
  %1578 = vmatprep.subr.mxu0 0.0
  %1579 = vmatpush1.xpose.msra.mxu0 0.0
  %1580 = vmatprep.subr.mxu0 0.0
  %1581 = vmatpush1.xpose.msra.mxu0 0.0
  %1582 = vmatprep.subr.mxu0 0.0
  %1583 = vmatpush1.xpose.msra.mxu0 0.0
  %1584 = vmatprep.subr.mxu0 0.0
  %1585 = vmatpush1.xpose.msra.mxu0 0.0
  %1586 = vmatprep.subr.mxu0 0.0
  %1587 = vmatpush1.xpose.msra.mxu0 0.0
  %1588 = vmatprep.subr.mxu0 0.0
  %1589 = vmatpush1.xpose.msra.mxu0 0.0
  %1590 = vmatprep.subr.mxu0 0.0
  %1591 = vmatpush1.xpose.msra.mxu0 0.0
  %1592 = vmatprep.subr.mxu0 0.0
  %1593 = vmatpush1.xpose.msra.mxu0 0.0
  %1594 = vmatprep.subr.mxu0 0.0
  %1595 = vmatpush1.xpose.msra.mxu0 0.0
  %1596 = vmatprep.subr.mxu0 0.0
  %1597 = vmatpush1.xpose.msra.mxu0 0.0
  %1598 = vmatprep.subr.mxu0 0.0
  %1599 = vmatpush1.xpose.msra.mxu0 0.0
  %1600 = vmatprep.subr.mxu0 0.0
  %1601 = vmatpush1.xpose.msra.mxu0 0.0
  %1602 = vmatprep.subr.mxu0 0.0
  %1603 = vmatpush1.xpose.msra.mxu0 0.0
  %1604 = vmatprep.subr.mxu0 0.0
  %1605 = vmatpush1.xpose.msra.mxu0 0.0
  %1606 = vmatprep.subr.mxu0 0.0
  %1607 = vmatpush1.xpose.msra.mxu0 0.0
  %1608 = vmatprep.subr.mxu0 0.0
  %1609 = vmatpush1.xpose.msra.mxu0 0.0
  %1610 = vmatprep.subr.mxu0 0.0
  %1611 = vmatpush1.xpose.msra.mxu0 0.0
  %1612 = vmatprep.subr.mxu0 0.0
  %1613 = vmatpush1.xpose.msra.mxu0 0.0
  %1614 = vmatprep.subr.mxu0 0.0
  %1615 = vmatpush1.xpose.msra.mxu0 0.0
  %1616 = vmatprep.subr.mxu0 0.0
  %1617 = vmatpush1.xpose.msra.mxu0 0.0
  %1618 = vmatprep.subr.mxu0 0.0
  %1619 = vmatpush1.xpose.msra.mxu0 0.0
  %1620 = vmatprep.subr.mxu0 0.0
  %1621 = vmatpush1.xpose.msra.mxu0 0.0
  %1622 = vmatprep.subr.mxu0 0.0
  %1623 = vmatpush1.xpose.msra.mxu0 0.0
  %1624 = vmatprep.mubr.f32.mxu0 0.0
  %1625 = vmatmul.mubr.f32.gmra.mrb[0].mxu0 %v1552
  %v1626 = vpop.f32.mrb[0].mxu0
  %v1627 = vadd.f32 0.0, %v1626
  %v1628 = vpop.f32.mrb[0].mxu0
  %1629 = vdwg.mxu0
  %v1631 = vsel %vm1295, %v362, 0
  %v1634 = vsel %vm1295, %v1460, 0
  %v1637 = vsel %vm1295, %v1461, 0
  %1639 = vmatprep.subr.mxu0 0.0
  %1640 = vmatpush1.xpose.msra.mxu0 %v1634
  %1641 = vmatprep.subr.mxu0 0.0
  %1642 = vmatpush1.xpose.msra.mxu0 %v1637
  %1643 = vmatprep.subr.mxu0 0.0
  %1644 = vmatpush1.xpose.msra.mxu0 0.0
  %1645 = vmatprep.subr.mxu0 0.0
  %1646 = vmatpush1.xpose.msra.mxu0 0.0
  %1647 = vmatprep.subr.mxu0 0.0
  %1648 = vmatpush1.xpose.msra.mxu0 0.0
  %1649 = vmatprep.subr.mxu0 0.0
  %1650 = vmatpush1.xpose.msra.mxu0 0.0
  %1651 = vmatprep.subr.mxu0 0.0
  %1652 = vmatpush1.xpose.msra.mxu0 0.0
  %1653 = vmatprep.subr.mxu0 0.0
  %1654 = vmatpush1.xpose.msra.mxu0 0.0
  %1655 = vmatprep.subr.mxu0 0.0
  %1656 = vmatpush1.xpose.msra.mxu0 0.0
  %1657 = vmatprep.subr.mxu0 0.0
  %1658 = vmatpush1.xpose.msra.mxu0 0.0
  %1659 = vmatprep.subr.mxu0 0.0
  %1660 = vmatpush1.xpose.msra.mxu0 0.0
  %1661 = vmatprep.subr.mxu0 0.0
  %1662 = vmatpush1.xpose.msra.mxu0 0.0
  %1663 = vmatprep.subr.mxu0 0.0
  %1664 = vmatpush1.xpose.msra.mxu0 0.0
  %1665 = vmatprep.subr.mxu0 0.0
  %1666 = vmatpush1.xpose.msra.mxu0 0.0
  %1667 = vmatprep.subr.mxu0 0.0
  %1668 = vmatpush1.xpose.msra.mxu0 0.0
  %1669 = vmatprep.subr.mxu0 0.0
  %1670 = vmatpush1.xpose.msra.mxu0 0.0
  %1671 = vmatprep.subr.mxu0 0.0
  %1672 = vmatpush1.xpose.msra.mxu0 0.0
  %1673 = vmatprep.subr.mxu0 0.0
  %1674 = vmatpush1.xpose.msra.mxu0 0.0
  %1675 = vmatprep.subr.mxu0 0.0
  %1676 = vmatpush1.xpose.msra.mxu0 0.0
  %1677 = vmatprep.subr.mxu0 0.0
  %1678 = vmatpush1.xpose.msra.mxu0 0.0
  %1679 = vmatprep.subr.mxu0 0.0
  %1680 = vmatpush1.xpose.msra.mxu0 0.0
  %1681 = vmatprep.subr.mxu0 0.0
  %1682 = vmatpush1.xpose.msra.mxu0 0.0
  %1683 = vmatprep.subr.mxu0 0.0
  %1684 = vmatpush1.xpose.msra.mxu0 0.0
  %1685 = vmatprep.subr.mxu0 0.0
  %1686 = vmatpush1.xpose.msra.mxu0 0.0
  %1687 = vmatprep.subr.mxu0 0.0
  %1688 = vmatpush1.xpose.msra.mxu0 0.0
  %1689 = vmatprep.subr.mxu0 0.0
  %1690 = vmatpush1.xpose.msra.mxu0 0.0
  %1691 = vmatprep.subr.mxu0 0.0
  %1692 = vmatpush1.xpose.msra.mxu0 0.0
  %1693 = vmatprep.subr.mxu0 0.0
  %1694 = vmatpush1.xpose.msra.mxu0 0.0
  %1695 = vmatprep.subr.mxu0 0.0
  %1696 = vmatpush1.xpose.msra.mxu0 0.0
  %1697 = vmatprep.subr.mxu0 0.0
  %1698 = vmatpush1.xpose.msra.mxu0 0.0
  %1699 = vmatprep.subr.mxu0 0.0
  %1700 = vmatpush1.xpose.msra.mxu0 0.0
  %1701 = vmatprep.subr.mxu0 0.0
  %1702 = vmatpush1.xpose.msra.mxu0 0.0
  %1703 = vmatprep.mubr.f32.mxu0 0.0
  %1704 = vmatmul.mubr.f32.gmra.mrb[0].mxu0 %v1631
  %v1705 = vpop.f32.mrb[0].mxu0
  %v1706 = vadd.f32 0.0, %v1705
  %v1707 = vpop.f32.mrb[0].mxu0
  %1708 = vdwg.mxu0
  %v1710 = vsel %vm1295, %v367, 0
  %v1713 = vsel %vm1295, %v1462, 0
  %v1716 = vsel %vm1295, %v1463, 0
  %1718 = vmatprep.subr.mxu0 0.0
  %1719 = vmatpush1.xpose.msra.mxu0 %v1713
  %1720 = vmatprep.subr.mxu0 0.0
  %1721 = vmatpush1.xpose.msra.mxu0 %v1716
  %1722 = vmatprep.subr.mxu0 0.0
  %1723 = vmatpush1.xpose.msra.mxu0 0.0
  %1724 = vmatprep.subr.mxu0 0.0
  %1725 = vmatpush1.xpose.msra.mxu0 0.0
  %1726 = vmatprep.subr.mxu0 0.0
  %1727 = vmatpush1.xpose.msra.mxu0 0.0
  %1728 = vmatprep.subr.mxu0 0.0
  %1729 = vmatpush1.xpose.msra.mxu0 0.0
  %1730 = vmatprep.subr.mxu0 0.0
  %1731 = vmatpush1.xpose.msra.mxu0 0.0
  %1732 = vmatprep.subr.mxu0 0.0
  %1733 = vmatpush1.xpose.msra.mxu0 0.0
  %1734 = vmatprep.subr.mxu0 0.0
  %1735 = vmatpush1.xpose.msra.mxu0 0.0
  %1736 = vmatprep.subr.mxu0 0.0
  %1737 = vmatpush1.xpose.msra.mxu0 0.0
  %1738 = vmatprep.subr.mxu0 0.0
  %1739 = vmatpush1.xpose.msra.mxu0 0.0
  %1740 = vmatprep.subr.mxu0 0.0
  %1741 = vmatpush1.xpose.msra.mxu0 0.0
  %1742 = vmatprep.subr.mxu0 0.0
  %1743 = vmatpush1.xpose.msra.mxu0 0.0
  %1744 = vmatprep.subr.mxu0 0.0
  %1745 = vmatpush1.xpose.msra.mxu0 0.0
  %1746 = vmatprep.subr.mxu0 0.0
  %1747 = vmatpush1.xpose.msra.mxu0 0.0
  %1748 = vmatprep.subr.mxu0 0.0
  %1749 = vmatpush1.xpose.msra.mxu0 0.0
  %1750 = vmatprep.subr.mxu0 0.0
  %1751 = vmatpush1.xpose.msra.mxu0 0.0
  %1752 = vmatprep.subr.mxu0 0.0
  %1753 = vmatpush1.xpose.msra.mxu0 0.0
  %1754 = vmatprep.subr.mxu0 0.0
  %1755 = vmatpush1.xpose.msra.mxu0 0.0
  %1756 = vmatprep.subr.mxu0 0.0
  %1757 = vmatpush1.xpose.msra.mxu0 0.0
  %1758 = vmatprep.subr.mxu0 0.0
  %1759 = vmatpush1.xpose.msra.mxu0 0.0
  %1760 = vmatprep.subr.mxu0 0.0
  %1761 = vmatpush1.xpose.msra.mxu0 0.0
  %1762 = vmatprep.subr.mxu0 0.0
  %1763 = vmatpush1.xpose.msra.mxu0 0.0
  %1764 = vmatprep.subr.mxu0 0.0
  %1765 = vmatpush1.xpose.msra.mxu0 0.0
  %1766 = vmatprep.subr.mxu0 0.0
  %1767 = vmatpush1.xpose.msra.mxu0 0.0
  %1768 = vmatprep.subr.mxu0 0.0
  %1769 = vmatpush1.xpose.msra.mxu0 0.0
  %1770 = vmatprep.subr.mxu0 0.0
  %1771 = vmatpush1.xpose.msra.mxu0 0.0
  %1772 = vmatprep.subr.mxu0 0.0
  %1773 = vmatpush1.xpose.msra.mxu0 0.0
  %1774 = vmatprep.subr.mxu0 0.0
  %1775 = vmatpush1.xpose.msra.mxu0 0.0
  %1776 = vmatprep.subr.mxu0 0.0
  %1777 = vmatpush1.xpose.msra.mxu0 0.0
  %1778 = vmatprep.subr.mxu0 0.0
  %1779 = vmatpush1.xpose.msra.mxu0 0.0
  %1780 = vmatprep.subr.mxu0 0.0
  %1781 = vmatpush1.xpose.msra.mxu0 0.0
  %1782 = vmatprep.mubr.f32.mxu0 0.0
  %1783 = vmatmul.mubr.f32.gmra.mrb[0].mxu0 %v1710
  %v1784 = vpop.f32.mrb[0].mxu0
  %v1785 = vadd.f32 0.0, %v1784
  %v1786 = vpop.f32.mrb[0].mxu0
  %1787 = vdwg.mxu0
  %v1789 = vsel %vm1295, %v372, 0
  %v1792 = vsel %vm1295, %v1464, 0
  %v1795 = vsel %vm1295, %v1465, 0
  %1797 = vmatprep.subr.mxu0 0.0
  %1798 = vmatpush1.xpose.msra.mxu0 %v1792
  %1799 = vmatprep.subr.mxu0 0.0
  %1800 = vmatpush1.xpose.msra.mxu0 %v1795
  %1801 = vmatprep.subr.mxu0 0.0
  %1802 = vmatpush1.xpose.msra.mxu0 0.0
  %1803 = vmatprep.subr.mxu0 0.0
  %1804 = vmatpush1.xpose.msra.mxu0 0.0
  %1805 = vmatprep.subr.mxu0 0.0
  %1806 = vmatpush1.xpose.msra.mxu0 0.0
  %1807 = vmatprep.subr.mxu0 0.0
  %1808 = vmatpush1.xpose.msra.mxu0 0.0
  %1809 = vmatprep.subr.mxu0 0.0
  %1810 = vmatpush1.xpose.msra.mxu0 0.0
  %1811 = vmatprep.subr.mxu0 0.0
  %1812 = vmatpush1.xpose.msra.mxu0 0.0
  %1813 = vmatprep.subr.mxu0 0.0
  %1814 = vmatpush1.xpose.msra.mxu0 0.0
  %1815 = vmatprep.subr.mxu0 0.0
  %1816 = vmatpush1.xpose.msra.mxu0 0.0
  %1817 = vmatprep.subr.mxu0 0.0
  %1818 = vmatpush1.xpose.msra.mxu0 0.0
  %1819 = vmatprep.subr.mxu0 0.0
  %1820 = vmatpush1.xpose.msra.mxu0 0.0
  %1821 = vmatprep.subr.mxu0 0.0
  %1822 = vmatpush1.xpose.msra.mxu0 0.0
  %1823 = vmatprep.subr.mxu0 0.0
  %1824 = vmatpush1.xpose.msra.mxu0 0.0
  %1825 = vmatprep.subr.mxu0 0.0
  %1826 = vmatpush1.xpose.msra.mxu0 0.0
  %1827 = vmatprep.subr.mxu0 0.0
  %1828 = vmatpush1.xpose.msra.mxu0 0.0
  %1829 = vmatprep.subr.mxu0 0.0
  %1830 = vmatpush1.xpose.msra.mxu0 0.0
  %1831 = vmatprep.subr.mxu0 0.0
  %1832 = vmatpush1.xpose.msra.mxu0 0.0
  %1833 = vmatprep.subr.mxu0 0.0
  %1834 = vmatpush1.xpose.msra.mxu0 0.0
  %1835 = vmatprep.subr.mxu0 0.0
  %1836 = vmatpush1.xpose.msra.mxu0 0.0
  %1837 = vmatprep.subr.mxu0 0.0
  %1838 = vmatpush1.xpose.msra.mxu0 0.0
  %1839 = vmatprep.subr.mxu0 0.0
  %1840 = vmatpush1.xpose.msra.mxu0 0.0
  %1841 = vmatprep.subr.mxu0 0.0
  %1842 = vmatpush1.xpose.msra.mxu0 0.0
  %1843 = vmatprep.subr.mxu0 0.0
  %1844 = vmatpush1.xpose.msra.mxu0 0.0
  %1845 = vmatprep.subr.mxu0 0.0
  %1846 = vmatpush1.xpose.msra.mxu0 0.0
  %1847 = vmatprep.subr.mxu0 0.0
  %1848 = vmatpush1.xpose.msra.mxu0 0.0
  %1849 = vmatprep.subr.mxu0 0.0
  %1850 = vmatpush1.xpose.msra.mxu0 0.0
  %1851 = vmatprep.subr.mxu0 0.0
  %1852 = vmatpush1.xpose.msra.mxu0 0.0
  %1853 = vmatprep.subr.mxu0 0.0
  %1854 = vmatpush1.xpose.msra.mxu0 0.0
  %1855 = vmatprep.subr.mxu0 0.0
  %1856 = vmatpush1.xpose.msra.mxu0 0.0
  %1857 = vmatprep.subr.mxu0 0.0
  %1858 = vmatpush1.xpose.msra.mxu0 0.0
  %1859 = vmatprep.subr.mxu0 0.0
  %1860 = vmatpush1.xpose.msra.mxu0 0.0
  %1861 = vmatprep.mubr.f32.mxu0 0.0
  %1862 = vmatmul.mubr.f32.gmra.mrb[0].mxu0 %v1789
  %v1863 = vpop.f32.mrb[0].mxu0
  %v1864 = vadd.f32 0.0, %v1863
  %v1865 = vpop.f32.mrb[0].mxu0
  %1866 = vdwg.mxu0
  %v1868 = vsel %vm1295, %v377, 0
  %v1871 = vsel %vm1295, %v1466, 0
  %v1874 = vsel %vm1295, %v1467, 0
  %1876 = vmatprep.subr.mxu0 0.0
  %1877 = vmatpush1.xpose.msra.mxu0 %v1871
  %1878 = vmatprep.subr.mxu0 0.0
  %1879 = vmatpush1.xpose.msra.mxu0 %v1874
  %1880 = vmatprep.subr.mxu0 0.0
  %1881 = vmatpush1.xpose.msra.mxu0 0.0
  %1882 = vmatprep.subr.mxu0 0.0
  %1883 = vmatpush1.xpose.msra.mxu0 0.0
  %1884 = vmatprep.subr.mxu0 0.0
  %1885 = vmatpush1.xpose.msra.mxu0 0.0
  %1886 = vmatprep.subr.mxu0 0.0
  %1887 = vmatpush1.xpose.msra.mxu0 0.0
  %1888 = vmatprep.subr.mxu0 0.0
  %1889 = vmatpush1.xpose.msra.mxu0 0.0
  %1890 = vmatprep.subr.mxu0 0.0
  %1891 = vmatpush1.xpose.msra.mxu0 0.0
  %1892 = vmatprep.subr.mxu0 0.0
  %1893 = vmatpush1.xpose.msra.mxu0 0.0
  %1894 = vmatprep.subr.mxu0 0.0
  %1895 = vmatpush1.xpose.msra.mxu0 0.0
  %1896 = vmatprep.subr.mxu0 0.0
  %1897 = vmatpush1.xpose.msra.mxu0 0.0
  %1898 = vmatprep.subr.mxu0 0.0
  %1899 = vmatpush1.xpose.msra.mxu0 0.0
  %1900 = vmatprep.subr.mxu0 0.0
  %1901 = vmatpush1.xpose.msra.mxu0 0.0
  %1902 = vmatprep.subr.mxu0 0.0
  %1903 = vmatpush1.xpose.msra.mxu0 0.0
  %1904 = vmatprep.subr.mxu0 0.0
  %1905 = vmatpush1.xpose.msra.mxu0 0.0
  %1906 = vmatprep.subr.mxu0 0.0
  %1907 = vmatpush1.xpose.msra.mxu0 0.0
  %1908 = vmatprep.subr.mxu0 0.0
  %1909 = vmatpush1.xpose.msra.mxu0 0.0
  %1910 = vmatprep.subr.mxu0 0.0
  %1911 = vmatpush1.xpose.msra.mxu0 0.0
  %1912 = vmatprep.subr.mxu0 0.0
  %1913 = vmatpush1.xpose.msra.mxu0 0.0
  %1914 = vmatprep.subr.mxu0 0.0
  %1915 = vmatpush1.xpose.msra.mxu0 0.0
  %1916 = vmatprep.subr.mxu0 0.0
  %1917 = vmatpush1.xpose.msra.mxu0 0.0
  %1918 = vmatprep.subr.mxu0 0.0
  %1919 = vmatpush1.xpose.msra.mxu0 0.0
  %1920 = vmatprep.subr.mxu0 0.0
  %1921 = vmatpush1.xpose.msra.mxu0 0.0
  %1922 = vmatprep.subr.mxu0 0.0
  %1923 = vmatpush1.xpose.msra.mxu0 0.0
  %1924 = vmatprep.subr.mxu0 0.0
  %1925 = vmatpush1.xpose.msra.mxu0 0.0
  %1926 = vmatprep.subr.mxu0 0.0
  %1927 = vmatpush1.xpose.msra.mxu0 0.0
  %1928 = vmatprep.subr.mxu0 0.0
  %1929 = vmatpush1.xpose.msra.mxu0 0.0
  %1930 = vmatprep.subr.mxu0 0.0
  %1931 = vmatpush1.xpose.msra.mxu0 0.0
  %1932 = vmatprep.subr.mxu0 0.0
  %1933 = vmatpush1.xpose.msra.mxu0 0.0
  %1934 = vmatprep.subr.mxu0 0.0
  %1935 = vmatpush1.xpose.msra.mxu0 0.0
  %1936 = vmatprep.subr.mxu0 0.0
  %1937 = vmatpush1.xpose.msra.mxu0 0.0
  %1938 = vmatprep.subr.mxu0 0.0
  %1939 = vmatpush1.xpose.msra.mxu0 0.0
  %1940 = vmatprep.mubr.f32.mxu0 0.0
  %1941 = vmatmul.mubr.f32.gmra.mrb[0].mxu0 %v1868
  %v1942 = vpop.f32.mrb[0].mxu0
  %v1943 = vadd.f32 0.0, %v1942
  %v1944 = vpop.f32.mrb[0].mxu0
  %1945 = vdwg.mxu0
  %v1947 = vsel %vm1295, %v382, 0
  %v1950 = vsel %vm1295, %v1468, 0
  %v1953 = vsel %vm1295, %v1469, 0
  %1955 = vmatprep.subr.mxu0 0.0
  %1956 = vmatpush1.xpose.msra.mxu0 %v1950
  %1957 = vmatprep.subr.mxu0 0.0
  %1958 = vmatpush1.xpose.msra.mxu0 %v1953
  %1959 = vmatprep.subr.mxu0 0.0
  %1960 = vmatpush1.xpose.msra.mxu0 0.0
  %1961 = vmatprep.subr.mxu0 0.0
  %1962 = vmatpush1.xpose.msra.mxu0 0.0
  %1963 = vmatprep.subr.mxu0 0.0
  %1964 = vmatpush1.xpose.msra.mxu0 0.0
  %1965 = vmatprep.subr.mxu0 0.0
  %1966 = vmatpush1.xpose.msra.mxu0 0.0
  %1967 = vmatprep.subr.mxu0 0.0
  %1968 = vmatpush1.xpose.msra.mxu0 0.0
  %1969 = vmatprep.subr.mxu0 0.0
  %1970 = vmatpush1.xpose.msra.mxu0 0.0
  %1971 = vmatprep.subr.mxu0 0.0
  %1972 = vmatpush1.xpose.msra.mxu0 0.0
  %1973 = vmatprep.subr.mxu0 0.0
  %1974 = vmatpush1.xpose.msra.mxu0 0.0
  %1975 = vmatprep.subr.mxu0 0.0
  %1976 = vmatpush1.xpose.msra.mxu0 0.0
  %1977 = vmatprep.subr.mxu0 0.0
  %1978 = vmatpush1.xpose.msra.mxu0 0.0
  %1979 = vmatprep.subr.mxu0 0.0
  %1980 = vmatpush1.xpose.msra.mxu0 0.0
  %1981 = vmatprep.subr.mxu0 0.0
  %1982 = vmatpush1.xpose.msra.mxu0 0.0
  %1983 = vmatprep.subr.mxu0 0.0
  %1984 = vmatpush1.xpose.msra.mxu0 0.0
  %1985 = vmatprep.subr.mxu0 0.0
  %1986 = vmatpush1.xpose.msra.mxu0 0.0
  %1987 = vmatprep.subr.mxu0 0.0
  %1988 = vmatpush1.xpose.msra.mxu0 0.0
  %1989 = vmatprep.subr.mxu0 0.0
  %1990 = vmatpush1.xpose.msra.mxu0 0.0
  %1991 = vmatprep.subr.mxu0 0.0
  %1992 = vmatpush1.xpose.msra.mxu0 0.0
  %1993 = vmatprep.subr.mxu0 0.0
  %1994 = vmatpush1.xpose.msra.mxu0 0.0
  %1995 = vmatprep.subr.mxu0 0.0
  %1996 = vmatpush1.xpose.msra.mxu0 0.0
  %1997 = vmatprep.subr.mxu0 0.0
  %1998 = vmatpush1.xpose.msra.mxu0 0.0
  %1999 = vmatprep.subr.mxu0 0.0
  %2000 = vmatpush1.xpose.msra.mxu0 0.0
  %2001 = vmatprep.subr.mxu0 0.0
  %2002 = vmatpush1.xpose.msra.mxu0 0.0
  %2003 = vmatprep.subr.mxu0 0.0
  %2004 = vmatpush1.xpose.msra.mxu0 0.0
  %2005 = vmatprep.subr.mxu0 0.0
  %2006 = vmatpush1.xpose.msra.mxu0 0.0
  %2007 = vmatprep.subr.mxu0 0.0
  %2008 = vmatpush1.xpose.msra.mxu0 0.0
  %2009 = vmatprep.subr.mxu0 0.0
  %2010 = vmatpush1.xpose.msra.mxu0 0.0
  %2011 = vmatprep.subr.mxu0 0.0
  %2012 = vmatpush1.xpose.msra.mxu0 0.0
  %2013 = vmatprep.subr.mxu0 0.0
  %2014 = vmatpush1.xpose.msra.mxu0 0.0
  %2015 = vmatprep.subr.mxu0 0.0
  %2016 = vmatpush1.xpose.msra.mxu0 0.0
  %2017 = vmatprep.subr.mxu0 0.0
  %2018 = vmatpush1.xpose.msra.mxu0 0.0
  %2019 = vmatprep.mubr.f32.mxu0 0.0
  %2020 = vmatmul.mubr.f32.gmra.mrb[0].mxu0 %v1947
  %v2021 = vpop.f32.mrb[0].mxu0
  %v2022 = vadd.f32 0.0, %v2021
  %v2023 = vpop.f32.mrb[0].mxu0
  %2024 = vdwg.mxu0
  %v2026 = vsel %vm1295, %v387, 0
  %v2029 = vsel %vm1295, %v1470, 0
  %v2032 = vsel %vm1295, %v1471, 0
  %2034 = vmatprep.subr.mxu0 0.0
  %2035 = vmatpush1.xpose.msra.mxu0 %v2029
  %2036 = vmatprep.subr.mxu0 0.0
  %2037 = vmatpush1.xpose.msra.mxu0 %v2032
  %2038 = vmatprep.subr.mxu0 0.0
  %2039 = vmatpush1.xpose.msra.mxu0 0.0
  %2040 = vmatprep.subr.mxu0 0.0
  %2041 = vmatpush1.xpose.msra.mxu0 0.0
  %2042 = vmatprep.subr.mxu0 0.0
  %2043 = vmatpush1.xpose.msra.mxu0 0.0
  %2044 = vmatprep.subr.mxu0 0.0
  %2045 = vmatpush1.xpose.msra.mxu0 0.0
  %2046 = vmatprep.subr.mxu0 0.0
  %2047 = vmatpush1.xpose.msra.mxu0 0.0
  %2048 = vmatprep.subr.mxu0 0.0
  %2049 = vmatpush1.xpose.msra.mxu0 0.0
  %2050 = vmatprep.subr.mxu0 0.0
  %2051 = vmatpush1.xpose.msra.mxu0 0.0
  %2052 = vmatprep.subr.mxu0 0.0
  %2053 = vmatpush1.xpose.msra.mxu0 0.0
  %2054 = vmatprep.subr.mxu0 0.0
  %2055 = vmatpush1.xpose.msra.mxu0 0.0
  %2056 = vmatprep.subr.mxu0 0.0
  %2057 = vmatpush1.xpose.msra.mxu0 0.0
  %2058 = vmatprep.subr.mxu0 0.0
  %2059 = vmatpush1.xpose.msra.mxu0 0.0
  %2060 = vmatprep.subr.mxu0 0.0
  %2061 = vmatpush1.xpose.msra.mxu0 0.0
  %2062 = vmatprep.subr.mxu0 0.0
  %2063 = vmatpush1.xpose.msra.mxu0 0.0
  %2064 = vmatprep.subr.mxu0 0.0
  %2065 = vmatpush1.xpose.msra.mxu0 0.0
  %2066 = vmatprep.subr.mxu0 0.0
  %2067 = vmatpush1.xpose.msra.mxu0 0.0
  %2068 = vmatprep.subr.mxu0 0.0
  %2069 = vmatpush1.xpose.msra.mxu0 0.0
  %2070 = vmatprep.subr.mxu0 0.0
  %2071 = vmatpush1.xpose.msra.mxu0 0.0
  %2072 = vmatprep.subr.mxu0 0.0
  %2073 = vmatpush1.xpose.msra.mxu0 0.0
  %2074 = vmatprep.subr.mxu0 0.0
  %2075 = vmatpush1.xpose.msra.mxu0 0.0
  %2076 = vmatprep.subr.mxu0 0.0
  %2077 = vmatpush1.xpose.msra.mxu0 0.0
  %2078 = vmatprep.subr.mxu0 0.0
  %2079 = vmatpush1.xpose.msra.mxu0 0.0
  %2080 = vmatprep.subr.mxu0 0.0
  %2081 = vmatpush1.xpose.msra.mxu0 0.0
  %2082 = vmatprep.subr.mxu0 0.0
  %2083 = vmatpush1.xpose.msra.mxu0 0.0
  %2084 = vmatprep.subr.mxu0 0.0
  %2085 = vmatpush1.xpose.msra.mxu0 0.0
  %2086 = vmatprep.subr.mxu0 0.0
  %2087 = vmatpush1.xpose.msra.mxu0 0.0
  %2088 = vmatprep.subr.mxu0 0.0
  %2089 = vmatpush1.xpose.msra.mxu0 0.0
  %2090 = vmatprep.subr.mxu0 0.0
  %2091 = vmatpush1.xpose.msra.mxu0 0.0
  %2092 = vmatprep.subr.mxu0 0.0
  %2093 = vmatpush1.xpose.msra.mxu0 0.0
  %2094 = vmatprep.subr.mxu0 0.0
  %2095 = vmatpush1.xpose.msra.mxu0 0.0
  %2096 = vmatprep.subr.mxu0 0.0
  %2097 = vmatpush1.xpose.msra.mxu0 0.0
  %2098 = vmatprep.mubr.f32.mxu0 0.0
  %2099 = vmatmul.mubr.f32.gmra.mrb[0].mxu0 %v2026
  %v2100 = vpop.f32.mrb[0].mxu0
  %v2101 = vadd.f32 0.0, %v2100
  %v2102 = vpop.f32.mrb[0].mxu0
  %2103 = vdwg.mxu0
  %v2104 = vadd.f32 %v124, %v1548
  %v2105 = vadd.f32 %v125, %v1627
  %v2106 = vadd.f32 %v126, %v1706
  %v2107 = vadd.f32 %v127, %v1785
  %v2108 = vadd.f32 %v128, %v1864
  %v2109 = vadd.f32 %v129, %v1943
  %v2110 = vadd.f32 %v130, %v2022
  %v2111 = vadd.f32 %v131, %v2101
  %2112 = vst.msk [vmem:[#allocation2] sm:$0xff] %vm1295, %v2104
  %2113 = vst.msk [vmem:[#allocation2 + $0x8] sm:$0xff] %vm1295, %v2105
  %2114 = vst.msk [vmem:[#allocation2 + $0x10] sm:$0xff] %vm1295, %v2106
  %2115 = vst.msk [vmem:[#allocation2 + $0x18] sm:$0xff] %vm1295, %v2107
  %2116 = vst.msk [vmem:[#allocation2 + $0x20] sm:$0xff] %vm1295, %v2108
  %2117 = vst.msk [vmem:[#allocation2 + $0x28] sm:$0xff] %vm1295, %v2109
  %2118 = vst.msk [vmem:[#allocation2 + $0x30] sm:$0xff] %vm1295, %v2110
  %2119 = vst.msk [vmem:[#allocation2 + $0x38] sm:$0xff] %vm1295, %v2111
  %s2120 = scalar_lea.vmem %s0, 64
  %v2121 = vld [vmem:[%s2120] sm:$0xff]
  %v2122 = vld [vmem:[%s2120 + $0x8] sm:$0xff]
  %v2123 = vld [vmem:[%s2120 + $0x10] sm:$0xff]
  %v2124 = vld [vmem:[%s2120 + $0x18] sm:$0xff]
  %v2125 = vld [vmem:[%s2120 + $0x20] sm:$0xff]
  %v2126 = vld [vmem:[%s2120 + $0x28] sm:$0xff]
  %v2127 = vld [vmem:[%s2120 + $0x30] sm:$0xff]
  %v2128 = vld [vmem:[%s2120 + $0x38] sm:$0xff]
  %2129 = vmatprep.subr.mxu0 0.0
  %2130 = vmatpush1.msra.mxu0 %v2121
  %2131 = vmatprep.subr.mxu0 0.0
  %2132 = vmatpush1.msra.mxu0 %v2122
  %2133 = vmatprep.subr.mxu0 0.0
  %2134 = vmatpush1.msra.mxu0 %v2123
  %2135 = vmatprep.subr.mxu0 0.0
  %2136 = vmatpush1.msra.mxu0 %v2124
  %2137 = vmatprep.subr.mxu0 0.0
  %2138 = vmatpush1.msra.mxu0 %v2125
  %2139 = vmatprep.subr.mxu0 0.0
  %2140 = vmatpush1.msra.mxu0 %v2126
  %2141 = vmatprep.subr.mxu0 0.0
  %2142 = vmatpush1.msra.mxu0 %v2127
  %2143 = vmatprep.subr.mxu0 0.0
  %2144 = vmatpush1.msra.mxu0 %v2128
  %2145 = vmatprep.subr.mxu0 0.0
  %2146 = vmatpush1.msra.mxu0 0.0
  %2147 = vmatprep.subr.mxu0 0.0
  %2148 = vmatpush1.msra.mxu0 0.0
  %2149 = vmatprep.subr.mxu0 0.0
  %2150 = vmatpush1.msra.mxu0 0.0
  %2151 = vmatprep.subr.mxu0 0.0
  %2152 = vmatpush1.msra.mxu0 0.0
  %2153 = vmatprep.subr.mxu0 0.0
  %2154 = vmatpush1.msra.mxu0 0.0
  %2155 = vmatprep.subr.mxu0 0.0
  %2156 = vmatpush1.msra.mxu0 0.0
  %2157 = vmatprep.subr.mxu0 0.0
  %2158 = vmatpush1.msra.mxu0 0.0
  %2159 = vmatprep.subr.mxu0 0.0
  %2160 = vmatpush1.msra.mxu0 0.0
  %2161 = vmatprep.subr.mxu0 0.0
  %2162 = vmatpush1.msra.mxu0 0.0
  %2163 = vmatprep.subr.mxu0 0.0
  %2164 = vmatpush1.msra.mxu0 0.0
  %2165 = vmatprep.subr.mxu0 0.0
  %2166 = vmatpush1.msra.mxu0 0.0
  %2167 = vmatprep.subr.mxu0 0.0
  %2168 = vmatpush1.msra.mxu0 0.0
  %2169 = vmatprep.subr.mxu0 0.0
  %2170 = vmatpush1.msra.mxu0 0.0
  %2171 = vmatprep.subr.mxu0 0.0
  %2172 = vmatpush1.msra.mxu0 0.0
  %2173 = vmatprep.subr.mxu0 0.0
  %2174 = vmatpush1.msra.mxu0 0.0
  %2175 = vmatprep.subr.mxu0 0.0
  %2176 = vmatpush1.msra.mxu0 0.0
  %2177 = vmatprep.subr.mxu0 0.0
  %2178 = vmatpush1.msra.mxu0 0.0
  %2179 = vmatprep.subr.mxu0 0.0
  %2180 = vmatpush1.msra.mxu0 0.0
  %2181 = vmatprep.subr.mxu0 0.0
  %2182 = vmatpush1.msra.mxu0 0.0
  %2183 = vmatprep.subr.mxu0 0.0
  %2184 = vmatpush1.msra.mxu0 0.0
  %2185 = vmatprep.subr.mxu0 0.0
  %2186 = vmatpush1.msra.mxu0 0.0
  %2187 = vmatprep.subr.mxu0 0.0
  %2188 = vmatpush1.msra.mxu0 0.0
  %2189 = vmatprep.subr.mxu0 0.0
  %2190 = vmatpush1.msra.mxu0 0.0
  %2191 = vmatprep.subr.mxu0 0.0
  %2192 = vmatpush1.msra.mxu0 0.0
  %2193 = vmatprep.mubr.f32.mxu0 0.0
  %2194 = vmatmul.mubr.f32.gmra.mrb[0].mxu0 %v134
  %v2195 = vpop.f32.mrb[0].mxu0
  %v2196 = vadd.f32 0.0, %v2195
  %v2197 = vpop.f32.mrb[0].mxu0
  %2198 = vmatprep.mubr.f32.mxu0 0.0
  %2199 = vmatmul.mubr.f32.gmra.mrb[0].mxu0 %v137
  %v2200 = vpop.f32.mrb[0].mxu0
  %v2201 = vadd.f32 0.0, %v2200
  %v2202 = vpop.f32.mrb[0].mxu0
  %2203 = vmatprep.mubr.f32.mxu0 0.0
  %2204 = vmatmul.mubr.f32.gmra.mrb[0].mxu0 %v140
  %v2205 = vpop.f32.mrb[0].mxu0
  %v2206 = vadd.f32 0.0, %v2205
  %v2207 = vpop.f32.mrb[0].mxu0
  %2208 = vmatprep.mubr.f32.mxu0 0.0
  %2209 = vmatmul.mubr.f32.gmra.mrb[0].mxu0 %v143
  %v2210 = vpop.f32.mrb[0].mxu0
  %v2211 = vadd.f32 0.0, %v2210
  %v2212 = vpop.f32.mrb[0].mxu0
  %2213 = vmatprep.mubr.f32.mxu0 0.0
  %2214 = vmatmul.mubr.f32.gmra.mrb[0].mxu0 %v146
  %v2215 = vpop.f32.mrb[0].mxu0
  %v2216 = vadd.f32 0.0, %v2215
  %v2217 = vpop.f32.mrb[0].mxu0
  %2218 = vmatprep.mubr.f32.mxu0 0.0
  %2219 = vmatmul.mubr.f32.gmra.mrb[0].mxu0 %v149
  %v2220 = vpop.f32.mrb[0].mxu0
  %v2221 = vadd.f32 0.0, %v2220
  %v2222 = vpop.f32.mrb[0].mxu0
  %2223 = vmatprep.mubr.f32.mxu0 0.0
  %2224 = vmatmul.mubr.f32.gmra.mrb[0].mxu0 %v152
  %v2225 = vpop.f32.mrb[0].mxu0
  %v2226 = vadd.f32 0.0, %v2225
  %v2227 = vpop.f32.mrb[0].mxu0
  %2228 = vmatprep.mubr.f32.mxu0 0.0
  %2229 = vmatmul.mubr.f32.gmra.mrb[0].mxu0 %v155
  %v2230 = vpop.f32.mrb[0].mxu0
  %v2231 = vadd.f32 0.0, %v2230
  %v2232 = vpop.f32.mrb[0].mxu0
  %2233 = vmatprep.mubr.f32.mxu0 0.0
  %2234 = vmatmul.mubr.f32.gmra.mrb[0].mxu0 %v158
  %v2235 = vpop.f32.mrb[0].mxu0
  %v2236 = vadd.f32 0.0, %v2235
  %v2237 = vpop.f32.mrb[0].mxu0
  %2238 = vmatprep.mubr.f32.mxu0 0.0
  %2239 = vmatmul.mubr.f32.gmra.mrb[0].mxu0 %v161
  %v2240 = vpop.f32.mrb[0].mxu0
  %v2241 = vadd.f32 0.0, %v2240
  %v2242 = vpop.f32.mrb[0].mxu0
  %2243 = vmatprep.mubr.f32.mxu0 0.0
  %2244 = vmatmul.mubr.f32.gmra.mrb[0].mxu0 %v164
  %v2245 = vpop.f32.mrb[0].mxu0
  %v2246 = vadd.f32 0.0, %v2245
  %v2247 = vpop.f32.mrb[0].mxu0
  %2248 = vmatprep.mubr.f32.mxu0 0.0
  %2249 = vmatmul.mubr.f32.gmra.mrb[0].mxu0 %v167
  %v2250 = vpop.f32.mrb[0].mxu0
  %v2251 = vadd.f32 0.0, %v2250
  %v2252 = vpop.f32.mrb[0].mxu0
  %2253 = vmatprep.mubr.f32.mxu0 0.0
  %2254 = vmatmul.mubr.f32.gmra.mrb[0].mxu0 %v170
  %v2255 = vpop.f32.mrb[0].mxu0
  %v2256 = vadd.f32 0.0, %v2255
  %v2257 = vpop.f32.mrb[0].mxu0
  %2258 = vmatprep.mubr.f32.mxu0 0.0
  %2259 = vmatmul.mubr.f32.gmra.mrb[0].mxu0 %v173
  %v2260 = vpop.f32.mrb[0].mxu0
  %v2261 = vadd.f32 0.0, %v2260
  %v2262 = vpop.f32.mrb[0].mxu0
  %2263 = vmatprep.mubr.f32.mxu0 0.0
  %2264 = vmatmul.mubr.f32.gmra.mrb[0].mxu0 %v176
  %v2265 = vpop.f32.mrb[0].mxu0
  %v2266 = vadd.f32 0.0, %v2265
  %v2267 = vpop.f32.mrb[0].mxu0
  %2268 = vmatprep.mubr.f32.mxu0 0.0
  %2269 = vmatmul.mubr.f32.gmra.mrb[0].mxu0 %v179
  %v2270 = vpop.f32.mrb[0].mxu0
  %v2271 = vadd.f32 0.0, %v2270
  %v2272 = vpop.f32.mrb[0].mxu0
  %2273 = vmatprep.mubr.f32.mxu0 0.0
  %2274 = vmatmul.mubr.f32.gmra.mrb[0].mxu0 %v182
  %v2275 = vpop.f32.mrb[0].mxu0
  %v2276 = vadd.f32 0.0, %v2275
  %v2277 = vpop.f32.mrb[0].mxu0
  %2278 = vmatprep.mubr.f32.mxu0 0.0
  %2279 = vmatmul.mubr.f32.gmra.mrb[0].mxu0 %v185
  %v2280 = vpop.f32.mrb[0].mxu0
  %v2281 = vadd.f32 0.0, %v2280
  %v2282 = vpop.f32.mrb[0].mxu0
  %2283 = vmatprep.mubr.f32.mxu0 0.0
  %2284 = vmatmul.mubr.f32.gmra.mrb[0].mxu0 %v188
  %v2285 = vpop.f32.mrb[0].mxu0
  %v2286 = vadd.f32 0.0, %v2285
  %v2287 = vpop.f32.mrb[0].mxu0
  %2288 = vmatprep.mubr.f32.mxu0 0.0
  %2289 = vmatmul.mubr.f32.gmra.mrb[0].mxu0 %v191
  %v2290 = vpop.f32.mrb[0].mxu0
  %v2291 = vadd.f32 0.0, %v2290
  %v2292 = vpop.f32.mrb[0].mxu0
  %2293 = vmatprep.mubr.f32.mxu0 0.0
  %2294 = vmatmul.mubr.f32.gmra.mrb[0].mxu0 %v194
  %v2295 = vpop.f32.mrb[0].mxu0
  %v2296 = vadd.f32 0.0, %v2295
  %v2297 = vpop.f32.mrb[0].mxu0
  %2298 = vmatprep.mubr.f32.mxu0 0.0
  %2299 = vmatmul.mubr.f32.gmra.mrb[0].mxu0 %v197
  %v2300 = vpop.f32.mrb[0].mxu0
  %v2301 = vadd.f32 0.0, %v2300
  %v2302 = vpop.f32.mrb[0].mxu0
  %2303 = vmatprep.mubr.f32.mxu0 0.0
  %2304 = vmatmul.mubr.f32.gmra.mrb[0].mxu0 %v200
  %v2305 = vpop.f32.mrb[0].mxu0
  %v2306 = vadd.f32 0.0, %v2305
  %v2307 = vpop.f32.mrb[0].mxu0
  %2308 = vmatprep.mubr.f32.mxu0 0.0
  %2309 = vmatmul.mubr.f32.gmra.mrb[0].mxu0 %v203
  %v2310 = vpop.f32.mrb[0].mxu0
  %v2311 = vadd.f32 0.0, %v2310
  %v2312 = vpop.f32.mrb[0].mxu0
  %2313 = vdwg.mxu0
  %2314 = vxpose.xlu0.b32.start [1/16] %v2196, 128
  %2315 = vxpose.xlu0.b32.cont [2/16] 0.0, 128
  %2316 = vxpose.xlu0.b32.cont [3/16] 0.0, 128
  %2317 = vxpose.xlu0.b32.cont [4/16] 0.0, 128
  %2318 = vxpose.xlu0.b32.cont [5/16] 0.0, 128
  %2319 = vxpose.xlu0.b32.cont [6/16] 0.0, 128
  %2320 = vxpose.xlu0.b32.cont [7/16] 0.0, 128
  %2321 = vxpose.xlu0.b32.cont [8/16] 0.0, 128
  %2322 = vxpose.xlu0.b32.cont [9/16] 0.0, 128
  %2323 = vxpose.xlu0.b32.cont [10/16] 0.0, 128
  %2324 = vxpose.xlu0.b32.cont [11/16] 0.0, 128
  %2325 = vxpose.xlu0.b32.cont [12/16] 0.0, 128
  %2326 = vxpose.xlu0.b32.cont [13/16] 0.0, 128
  %2327 = vxpose.xlu0.b32.cont [14/16] 0.0, 128
  %2328 = vxpose.xlu0.b32.cont [15/16] 0.0, 128
  %2329 = vxpose.xlu0.b32.end [16/16] 0.0, 128
  %v2330 = vpop.trf.xlu0
  %v2331 = vpop.trf.xlu0
  %v2332 = vpop.trf.xlu0
  %v2333 = vpop.trf.xlu0
  %v2334 = vpop.trf.xlu0
  %v2335 = vpop.trf.xlu0
  %v2336 = vpop.trf.xlu0
  %v2337 = vpop.trf.xlu0
  %v2338 = vpop.trf.xlu0
  %v2339 = vpop.trf.xlu0
  %v2340 = vpop.trf.xlu0
  %v2341 = vpop.trf.xlu0
  %v2342 = vpop.trf.xlu0
  %v2343 = vpop.trf.xlu0
  %v2344 = vpop.trf.xlu0
  %v2345 = vpop.trf.xlu0
  %v2347 = vsel %vm422, %v2330, 0
  %v2350 = vsel %vm422, %v2331, 0
  %2352 = vmatprep.subr.mxu0 0.0
  %2353 = vmatpush1.msra.mxu0 %v2236
  %2354 = vmatprep.subr.mxu0 0.0
  %2355 = vmatpush1.msra.mxu0 0.0
  %2356 = vmatprep.subr.mxu0 0.0
  %2357 = vmatpush1.msra.mxu0 0.0
  %2358 = vmatprep.subr.mxu0 0.0
  %2359 = vmatpush1.msra.mxu0 0.0
  %2360 = vmatprep.subr.mxu0 0.0
  %2361 = vmatpush1.msra.mxu0 0.0
  %2362 = vmatprep.subr.mxu0 0.0
  %2363 = vmatpush1.msra.mxu0 0.0
  %2364 = vmatprep.subr.mxu0 0.0
  %2365 = vmatpush1.msra.mxu0 0.0
  %2366 = vmatprep.subr.mxu0 0.0
  %2367 = vmatpush1.msra.mxu0 0.0
  %2368 = vmatprep.subr.mxu0 0.0
  %2369 = vmatpush1.msra.mxu0 0.0
  %2370 = vmatprep.subr.mxu0 0.0
  %2371 = vmatpush1.msra.mxu0 0.0
  %2372 = vmatprep.subr.mxu0 0.0
  %2373 = vmatpush1.msra.mxu0 0.0
  %2374 = vmatprep.subr.mxu0 0.0
  %2375 = vmatpush1.msra.mxu0 0.0
  %2376 = vmatprep.subr.mxu0 0.0
  %2377 = vmatpush1.msra.mxu0 0.0
  %2378 = vmatprep.subr.mxu0 0.0
  %2379 = vmatpush1.msra.mxu0 0.0
  %2380 = vmatprep.subr.mxu0 0.0
  %2381 = vmatpush1.msra.mxu0 0.0
  %2382 = vmatprep.subr.mxu0 0.0
  %2383 = vmatpush1.msra.mxu0 0.0
  %2384 = vmatprep.subr.mxu0 0.0
  %2385 = vmatpush1.msra.mxu0 0.0
  %2386 = vmatprep.subr.mxu0 0.0
  %2387 = vmatpush1.msra.mxu0 0.0
  %2388 = vmatprep.subr.mxu0 0.0
  %2389 = vmatpush1.msra.mxu0 0.0
  %2390 = vmatprep.subr.mxu0 0.0
  %2391 = vmatpush1.msra.mxu0 0.0
  %2392 = vmatprep.subr.mxu0 0.0
  %2393 = vmatpush1.msra.mxu0 0.0
  %2394 = vmatprep.subr.mxu0 0.0
  %2395 = vmatpush1.msra.mxu0 0.0
  %2396 = vmatprep.subr.mxu0 0.0
  %2397 = vmatpush1.msra.mxu0 0.0
  %2398 = vmatprep.subr.mxu0 0.0
  %2399 = vmatpush1.msra.mxu0 0.0
  %2400 = vmatprep.subr.mxu0 0.0
  %2401 = vmatpush1.msra.mxu0 0.0
  %2402 = vmatprep.subr.mxu0 0.0
  %2403 = vmatpush1.msra.mxu0 0.0
  %2404 = vmatprep.subr.mxu0 0.0
  %2405 = vmatpush1.msra.mxu0 0.0
  %2406 = vmatprep.subr.mxu0 0.0
  %2407 = vmatpush1.msra.mxu0 0.0
  %2408 = vmatprep.subr.mxu0 0.0
  %2409 = vmatpush1.msra.mxu0 0.0
  %2410 = vmatprep.subr.mxu0 0.0
  %2411 = vmatpush1.msra.mxu0 0.0
  %2412 = vmatprep.subr.mxu0 0.0
  %2413 = vmatpush1.msra.mxu0 0.0
  %2414 = vmatprep.subr.mxu0 0.0
  %2415 = vmatpush1.msra.mxu0 0.0
  %2416 = vmatprep.mubr.f32.mxu0 0.0
  %2417 = vmatmul.mubr.f32.gmra.mrb[0].mxu0 %v2347
  %v2418 = vpop.f32.mrb[0].mxu0
  %v2419 = vadd.f32 0.0, %v2418
  %v2420 = vpop.f32.mrb[0].mxu0
  %2421 = vmatprep.mubr.f32.mxu0 0.0
  %2422 = vmatmul.mubr.f32.gmra.mrb[0].mxu0 %v2350
  %v2423 = vpop.f32.mrb[0].mxu0
  %v2424 = vadd.f32 0.0, %v2423
  %v2425 = vpop.f32.mrb[0].mxu0
  %2426 = vdwg.mxu0
  %2427 = vxpose.xlu0.b32.start [1/16] %v2201, 128
  %2428 = vxpose.xlu0.b32.cont [2/16] 0.0, 128
  %2429 = vxpose.xlu0.b32.cont [3/16] 0.0, 128
  %2430 = vxpose.xlu0.b32.cont [4/16] 0.0, 128
  %2431 = vxpose.xlu0.b32.cont [5/16] 0.0, 128
  %2432 = vxpose.xlu0.b32.cont [6/16] 0.0, 128
  %2433 = vxpose.xlu0.b32.cont [7/16] 0.0, 128
  %2434 = vxpose.xlu0.b32.cont [8/16] 0.0, 128
  %2435 = vxpose.xlu0.b32.cont [9/16] 0.0, 128
  %2436 = vxpose.xlu0.b32.cont [10/16] 0.0, 128
  %2437 = vxpose.xlu0.b32.cont [11/16] 0.0, 128
  %2438 = vxpose.xlu0.b32.cont [12/16] 0.0, 128
  %2439 = vxpose.xlu0.b32.cont [13/16] 0.0, 128
  %2440 = vxpose.xlu0.b32.cont [14/16] 0.0, 128
  %2441 = vxpose.xlu0.b32.cont [15/16] 0.0, 128
  %2442 = vxpose.xlu0.b32.end [16/16] 0.0, 128
  %v2443 = vpop.trf.xlu0
  %v2444 = vpop.trf.xlu0
  %v2445 = vpop.trf.xlu0
  %v2446 = vpop.trf.xlu0
  %v2447 = vpop.trf.xlu0
  %v2448 = vpop.trf.xlu0
  %v2449 = vpop.trf.xlu0
  %v2450 = vpop.trf.xlu0
  %v2451 = vpop.trf.xlu0
  %v2452 = vpop.trf.xlu0
  %v2453 = vpop.trf.xlu0
  %v2454 = vpop.trf.xlu0
  %v2455 = vpop.trf.xlu0
  %v2456 = vpop.trf.xlu0
  %v2457 = vpop.trf.xlu0
  %v2458 = vpop.trf.xlu0
  %v2460 = vsel %vm422, %v2443, 0
  %v2463 = vsel %vm422, %v2444, 0
  %2465 = vmatprep.subr.mxu0 0.0
  %2466 = vmatpush1.msra.mxu0 %v2241
  %2467 = vmatprep.subr.mxu0 0.0
  %2468 = vmatpush1.msra.mxu0 0.0
  %2469 = vmatprep.subr.mxu0 0.0
  %2470 = vmatpush1.msra.mxu0 0.0
  %2471 = vmatprep.subr.mxu0 0.0
  %2472 = vmatpush1.msra.mxu0 0.0
  %2473 = vmatprep.subr.mxu0 0.0
  %2474 = vmatpush1.msra.mxu0 0.0
  %2475 = vmatprep.subr.mxu0 0.0
  %2476 = vmatpush1.msra.mxu0 0.0
  %2477 = vmatprep.subr.mxu0 0.0
  %2478 = vmatpush1.msra.mxu0 0.0
  %2479 = vmatprep.subr.mxu0 0.0
  %2480 = vmatpush1.msra.mxu0 0.0
  %2481 = vmatprep.subr.mxu0 0.0
  %2482 = vmatpush1.msra.mxu0 0.0
  %2483 = vmatprep.subr.mxu0 0.0
  %2484 = vmatpush1.msra.mxu0 0.0
  %2485 = vmatprep.subr.mxu0 0.0
  %2486 = vmatpush1.msra.mxu0 0.0
  %2487 = vmatprep.subr.mxu0 0.0
  %2488 = vmatpush1.msra.mxu0 0.0
  %2489 = vmatprep.subr.mxu0 0.0
  %2490 = vmatpush1.msra.mxu0 0.0
  %2491 = vmatprep.subr.mxu0 0.0
  %2492 = vmatpush1.msra.mxu0 0.0
  %2493 = vmatprep.subr.mxu0 0.0
  %2494 = vmatpush1.msra.mxu0 0.0
  %2495 = vmatprep.subr.mxu0 0.0
  %2496 = vmatpush1.msra.mxu0 0.0
  %2497 = vmatprep.subr.mxu0 0.0
  %2498 = vmatpush1.msra.mxu0 0.0
  %2499 = vmatprep.subr.mxu0 0.0
  %2500 = vmatpush1.msra.mxu0 0.0
  %2501 = vmatprep.subr.mxu0 0.0
  %2502 = vmatpush1.msra.mxu0 0.0
  %2503 = vmatprep.subr.mxu0 0.0
  %2504 = vmatpush1.msra.mxu0 0.0
  %2505 = vmatprep.subr.mxu0 0.0
  %2506 = vmatpush1.msra.mxu0 0.0
  %2507 = vmatprep.subr.mxu0 0.0
  %2508 = vmatpush1.msra.mxu0 0.0
  %2509 = vmatprep.subr.mxu0 0.0
  %2510 = vmatpush1.msra.mxu0 0.0
  %2511 = vmatprep.subr.mxu0 0.0
  %2512 = vmatpush1.msra.mxu0 0.0
  %2513 = vmatprep.subr.mxu0 0.0
  %2514 = vmatpush1.msra.mxu0 0.0
  %2515 = vmatprep.subr.mxu0 0.0
  %2516 = vmatpush1.msra.mxu0 0.0
  %2517 = vmatprep.subr.mxu0 0.0
  %2518 = vmatpush1.msra.mxu0 0.0
  %2519 = vmatprep.subr.mxu0 0.0
  %2520 = vmatpush1.msra.mxu0 0.0
  %2521 = vmatprep.subr.mxu0 0.0
  %2522 = vmatpush1.msra.mxu0 0.0
  %2523 = vmatprep.subr.mxu0 0.0
  %2524 = vmatpush1.msra.mxu0 0.0
  %2525 = vmatprep.subr.mxu0 0.0
  %2526 = vmatpush1.msra.mxu0 0.0
  %2527 = vmatprep.subr.mxu0 0.0
  %2528 = vmatpush1.msra.mxu0 0.0
  %2529 = vmatprep.mubr.f32.mxu0 0.0
  %2530 = vmatmul.mubr.f32.gmra.mrb[0].mxu0 %v2460
  %v2531 = vpop.f32.mrb[0].mxu0
  %v2532 = vadd.f32 0.0, %v2531
  %v2533 = vpop.f32.mrb[0].mxu0
  %2534 = vmatprep.mubr.f32.mxu0 0.0
  %2535 = vmatmul.mubr.f32.gmra.mrb[0].mxu0 %v2463
  %v2536 = vpop.f32.mrb[0].mxu0
  %v2537 = vadd.f32 0.0, %v2536
  %v2538 = vpop.f32.mrb[0].mxu0
  %2539 = vdwg.mxu0
  %2540 = vxpose.xlu0.b32.start [1/16] %v2206, 128
  %2541 = vxpose.xlu0.b32.cont [2/16] 0.0, 128
  %2542 = vxpose.xlu0.b32.cont [3/16] 0.0, 128
  %2543 = vxpose.xlu0.b32.cont [4/16] 0.0, 128
  %2544 = vxpose.xlu0.b32.cont [5/16] 0.0, 128
  %2545 = vxpose.xlu0.b32.cont [6/16] 0.0, 128
  %2546 = vxpose.xlu0.b32.cont [7/16] 0.0, 128
  %2547 = vxpose.xlu0.b32.cont [8/16] 0.0, 128
  %2548 = vxpose.xlu0.b32.cont [9/16] 0.0, 128
  %2549 = vxpose.xlu0.b32.cont [10/16] 0.0, 128
  %2550 = vxpose.xlu0.b32.cont [11/16] 0.0, 128
  %2551 = vxpose.xlu0.b32.cont [12/16] 0.0, 128
  %2552 = vxpose.xlu0.b32.cont [13/16] 0.0, 128
  %2553 = vxpose.xlu0.b32.cont [14/16] 0.0, 128
  %2554 = vxpose.xlu0.b32.cont [15/16] 0.0, 128
  %2555 = vxpose.xlu0.b32.end [16/16] 0.0, 128
  %v2556 = vpop.trf.xlu0
  %v2557 = vpop.trf.xlu0
  %v2558 = vpop.trf.xlu0
  %v2559 = vpop.trf.xlu0
  %v2560 = vpop.trf.xlu0
  %v2561 = vpop.trf.xlu0
  %v2562 = vpop.trf.xlu0
  %v2563 = vpop.trf.xlu0
  %v2564 = vpop.trf.xlu0
  %v2565 = vpop.trf.xlu0
  %v2566 = vpop.trf.xlu0
  %v2567 = vpop.trf.xlu0
  %v2568 = vpop.trf.xlu0
  %v2569 = vpop.trf.xlu0
  %v2570 = vpop.trf.xlu0
  %v2571 = vpop.trf.xlu0
  %v2573 = vsel %vm422, %v2556, 0
  %v2576 = vsel %vm422, %v2557, 0
  %2578 = vmatprep.subr.mxu0 0.0
  %2579 = vmatpush1.msra.mxu0 %v2246
  %2580 = vmatprep.subr.mxu0 0.0
  %2581 = vmatpush1.msra.mxu0 0.0
  %2582 = vmatprep.subr.mxu0 0.0
  %2583 = vmatpush1.msra.mxu0 0.0
  %2584 = vmatprep.subr.mxu0 0.0
  %2585 = vmatpush1.msra.mxu0 0.0
  %2586 = vmatprep.subr.mxu0 0.0
  %2587 = vmatpush1.msra.mxu0 0.0
  %2588 = vmatprep.subr.mxu0 0.0
  %2589 = vmatpush1.msra.mxu0 0.0
  %2590 = vmatprep.subr.mxu0 0.0
  %2591 = vmatpush1.msra.mxu0 0.0
  %2592 = vmatprep.subr.mxu0 0.0
  %2593 = vmatpush1.msra.mxu0 0.0
  %2594 = vmatprep.subr.mxu0 0.0
  %2595 = vmatpush1.msra.mxu0 0.0
  %2596 = vmatprep.subr.mxu0 0.0
  %2597 = vmatpush1.msra.mxu0 0.0
  %2598 = vmatprep.subr.mxu0 0.0
  %2599 = vmatpush1.msra.mxu0 0.0
  %2600 = vmatprep.subr.mxu0 0.0
  %2601 = vmatpush1.msra.mxu0 0.0
  %2602 = vmatprep.subr.mxu0 0.0
  %2603 = vmatpush1.msra.mxu0 0.0
  %2604 = vmatprep.subr.mxu0 0.0
  %2605 = vmatpush1.msra.mxu0 0.0
  %2606 = vmatprep.subr.mxu0 0.0
  %2607 = vmatpush1.msra.mxu0 0.0
  %2608 = vmatprep.subr.mxu0 0.0
  %2609 = vmatpush1.msra.mxu0 0.0
  %2610 = vmatprep.subr.mxu0 0.0
  %2611 = vmatpush1.msra.mxu0 0.0
  %2612 = vmatprep.subr.mxu0 0.0
  %2613 = vmatpush1.msra.mxu0 0.0
  %2614 = vmatprep.subr.mxu0 0.0
  %2615 = vmatpush1.msra.mxu0 0.0
  %2616 = vmatprep.subr.mxu0 0.0
  %2617 = vmatpush1.msra.mxu0 0.0
  %2618 = vmatprep.subr.mxu0 0.0
  %2619 = vmatpush1.msra.mxu0 0.0
  %2620 = vmatprep.subr.mxu0 0.0
  %2621 = vmatpush1.msra.mxu0 0.0
  %2622 = vmatprep.subr.mxu0 0.0
  %2623 = vmatpush1.msra.mxu0 0.0
  %2624 = vmatprep.subr.mxu0 0.0
  %2625 = vmatpush1.msra.mxu0 0.0
  %2626 = vmatprep.subr.mxu0 0.0
  %2627 = vmatpush1.msra.mxu0 0.0
  %2628 = vmatprep.subr.mxu0 0.0
  %2629 = vmatpush1.msra.mxu0 0.0
  %2630 = vmatprep.subr.mxu0 0.0
  %2631 = vmatpush1.msra.mxu0 0.0
  %2632 = vmatprep.subr.mxu0 0.0
  %2633 = vmatpush1.msra.mxu0 0.0
  %2634 = vmatprep.subr.mxu0 0.0
  %2635 = vmatpush1.msra.mxu0 0.0
  %2636 = vmatprep.subr.mxu0 0.0
  %2637 = vmatpush1.msra.mxu0 0.0
  %2638 = vmatprep.subr.mxu0 0.0
  %2639 = vmatpush1.msra.mxu0 0.0
  %2640 = vmatprep.subr.mxu0 0.0
  %2641 = vmatpush1.msra.mxu0 0.0
  %2642 = vmatprep.mubr.f32.mxu0 0.0
  %2643 = vmatmul.mubr.f32.gmra.mrb[0].mxu0 %v2573
  %v2644 = vpop.f32.mrb[0].mxu0
  %v2645 = vadd.f32 0.0, %v2644
  %v2646 = vpop.f32.mrb[0].mxu0
  %2647 = vmatprep.mubr.f32.mxu0 0.0
  %2648 = vmatmul.mubr.f32.gmra.mrb[0].mxu0 %v2576
  %v2649 = vpop.f32.mrb[0].mxu0
  %v2650 = vadd.f32 0.0, %v2649
  %v2651 = vpop.f32.mrb[0].mxu0
  %2652 = vdwg.mxu0
  %2653 = vxpose.xlu0.b32.start [1/16] %v2211, 128
  %2654 = vxpose.xlu0.b32.cont [2/16] 0.0, 128
  %2655 = vxpose.xlu0.b32.cont [3/16] 0.0, 128
  %2656 = vxpose.xlu0.b32.cont [4/16] 0.0, 128
  %2657 = vxpose.xlu0.b32.cont [5/16] 0.0, 128
  %2658 = vxpose.xlu0.b32.cont [6/16] 0.0, 128
  %2659 = vxpose.xlu0.b32.cont [7/16] 0.0, 128
  %2660 = vxpose.xlu0.b32.cont [8/16] 0.0, 128
  %2661 = vxpose.xlu0.b32.cont [9/16] 0.0, 128
  %2662 = vxpose.xlu0.b32.cont [10/16] 0.0, 128
  %2663 = vxpose.xlu0.b32.cont [11/16] 0.0, 128
  %2664 = vxpose.xlu0.b32.cont [12/16] 0.0, 128
  %2665 = vxpose.xlu0.b32.cont [13/16] 0.0, 128
  %2666 = vxpose.xlu0.b32.cont [14/16] 0.0, 128
  %2667 = vxpose.xlu0.b32.cont [15/16] 0.0, 128
  %2668 = vxpose.xlu0.b32.end [16/16] 0.0, 128
  %v2669 = vpop.trf.xlu0
  %v2670 = vpop.trf.xlu0
  %v2671 = vpop.trf.xlu0
  %v2672 = vpop.trf.xlu0
  %v2673 = vpop.trf.xlu0
  %v2674 = vpop.trf.xlu0
  %v2675 = vpop.trf.xlu0
  %v2676 = vpop.trf.xlu0
  %v2677 = vpop.trf.xlu0
  %v2678 = vpop.trf.xlu0
  %v2679 = vpop.trf.xlu0
  %v2680 = vpop.trf.xlu0
  %v2681 = vpop.trf.xlu0
  %v2682 = vpop.trf.xlu0
  %v2683 = vpop.trf.xlu0
  %v2684 = vpop.trf.xlu0
  %v2686 = vsel %vm422, %v2669, 0
  %v2689 = vsel %vm422, %v2670, 0
  %2691 = vmatprep.subr.mxu0 0.0
  %2692 = vmatpush1.msra.mxu0 %v2251
  %2693 = vmatprep.subr.mxu0 0.0
  %2694 = vmatpush1.msra.mxu0 0.0
  %2695 = vmatprep.subr.mxu0 0.0
  %2696 = vmatpush1.msra.mxu0 0.0
  %2697 = vmatprep.subr.mxu0 0.0
  %2698 = vmatpush1.msra.mxu0 0.0
  %2699 = vmatprep.subr.mxu0 0.0
  %2700 = vmatpush1.msra.mxu0 0.0
  %2701 = vmatprep.subr.mxu0 0.0
  %2702 = vmatpush1.msra.mxu0 0.0
  %2703 = vmatprep.subr.mxu0 0.0
  %2704 = vmatpush1.msra.mxu0 0.0
  %2705 = vmatprep.subr.mxu0 0.0
  %2706 = vmatpush1.msra.mxu0 0.0
  %2707 = vmatprep.subr.mxu0 0.0
  %2708 = vmatpush1.msra.mxu0 0.0
  %2709 = vmatprep.subr.mxu0 0.0
  %2710 = vmatpush1.msra.mxu0 0.0
  %2711 = vmatprep.subr.mxu0 0.0
  %2712 = vmatpush1.msra.mxu0 0.0
  %2713 = vmatprep.subr.mxu0 0.0
  %2714 = vmatpush1.msra.mxu0 0.0
  %2715 = vmatprep.subr.mxu0 0.0
  %2716 = vmatpush1.msra.mxu0 0.0
  %2717 = vmatprep.subr.mxu0 0.0
  %2718 = vmatpush1.msra.mxu0 0.0
  %2719 = vmatprep.subr.mxu0 0.0
  %2720 = vmatpush1.msra.mxu0 0.0
  %2721 = vmatprep.subr.mxu0 0.0
  %2722 = vmatpush1.msra.mxu0 0.0
  %2723 = vmatprep.subr.mxu0 0.0
  %2724 = vmatpush1.msra.mxu0 0.0
  %2725 = vmatprep.subr.mxu0 0.0
  %2726 = vmatpush1.msra.mxu0 0.0
  %2727 = vmatprep.subr.mxu0 0.0
  %2728 = vmatpush1.msra.mxu0 0.0
  %2729 = vmatprep.subr.mxu0 0.0
  %2730 = vmatpush1.msra.mxu0 0.0
  %2731 = vmatprep.subr.mxu0 0.0
  %2732 = vmatpush1.msra.mxu0 0.0
  %2733 = vmatprep.subr.mxu0 0.0
  %2734 = vmatpush1.msra.mxu0 0.0
  %2735 = vmatprep.subr.mxu0 0.0
  %2736 = vmatpush1.msra.mxu0 0.0
  %2737 = vmatprep.subr.mxu0 0.0
  %2738 = vmatpush1.msra.mxu0 0.0
  %2739 = vmatprep.subr.mxu0 0.0
  %2740 = vmatpush1.msra.mxu0 0.0
  %2741 = vmatprep.subr.mxu0 0.0
  %2742 = vmatpush1.msra.mxu0 0.0
  %2743 = vmatprep.subr.mxu0 0.0
  %2744 = vmatpush1.msra.mxu0 0.0
  %2745 = vmatprep.subr.mxu0 0.0
  %2746 = vmatpush1.msra.mxu0 0.0
  %2747 = vmatprep.subr.mxu0 0.0
  %2748 = vmatpush1.msra.mxu0 0.0
  %2749 = vmatprep.subr.mxu0 0.0
  %2750 = vmatpush1.msra.mxu0 0.0
  %2751 = vmatprep.subr.mxu0 0.0
  %2752 = vmatpush1.msra.mxu0 0.0
  %2753 = vmatprep.subr.mxu0 0.0
  %2754 = vmatpush1.msra.mxu0 0.0
  %2755 = vmatprep.mubr.f32.mxu0 0.0
  %2756 = vmatmul.mubr.f32.gmra.mrb[0].mxu0 %v2686
  %v2757 = vpop.f32.mrb[0].mxu0
  %v2758 = vadd.f32 0.0, %v2757
  %v2759 = vpop.f32.mrb[0].mxu0
  %2760 = vmatprep.mubr.f32.mxu0 0.0
  %2761 = vmatmul.mubr.f32.gmra.mrb[0].mxu0 %v2689
  %v2762 = vpop.f32.mrb[0].mxu0
  %v2763 = vadd.f32 0.0, %v2762
  %v2764 = vpop.f32.mrb[0].mxu0
  %2765 = vdwg.mxu0
  %2766 = vxpose.xlu0.b32.start [1/16] %v2216, 128
  %2767 = vxpose.xlu0.b32.cont [2/16] 0.0, 128
  %2768 = vxpose.xlu0.b32.cont [3/16] 0.0, 128
  %2769 = vxpose.xlu0.b32.cont [4/16] 0.0, 128
  %2770 = vxpose.xlu0.b32.cont [5/16] 0.0, 128
  %2771 = vxpose.xlu0.b32.cont [6/16] 0.0, 128
  %2772 = vxpose.xlu0.b32.cont [7/16] 0.0, 128
  %2773 = vxpose.xlu0.b32.cont [8/16] 0.0, 128
  %2774 = vxpose.xlu0.b32.cont [9/16] 0.0, 128
  %2775 = vxpose.xlu0.b32.cont [10/16] 0.0, 128
  %2776 = vxpose.xlu0.b32.cont [11/16] 0.0, 128
  %2777 = vxpose.xlu0.b32.cont [12/16] 0.0, 128
  %2778 = vxpose.xlu0.b32.cont [13/16] 0.0, 128
  %2779 = vxpose.xlu0.b32.cont [14/16] 0.0, 128
  %2780 = vxpose.xlu0.b32.cont [15/16] 0.0, 128
  %2781 = vxpose.xlu0.b32.end [16/16] 0.0, 128
  %v2782 = vpop.trf.xlu0
  %v2783 = vpop.trf.xlu0
  %v2784 = vpop.trf.xlu0
  %v2785 = vpop.trf.xlu0
  %v2786 = vpop.trf.xlu0
  %v2787 = vpop.trf.xlu0
  %v2788 = vpop.trf.xlu0
  %v2789 = vpop.trf.xlu0
  %v2790 = vpop.trf.xlu0
  %v2791 = vpop.trf.xlu0
  %v2792 = vpop.trf.xlu0
  %v2793 = vpop.trf.xlu0
  %v2794 = vpop.trf.xlu0
  %v2795 = vpop.trf.xlu0
  %v2796 = vpop.trf.xlu0
  %v2797 = vpop.trf.xlu0
  %v2799 = vsel %vm422, %v2782, 0
  %v2802 = vsel %vm422, %v2783, 0
  %2804 = vmatprep.subr.mxu0 0.0
  %2805 = vmatpush1.msra.mxu0 %v2256
  %2806 = vmatprep.subr.mxu0 0.0
  %2807 = vmatpush1.msra.mxu0 0.0
  %2808 = vmatprep.subr.mxu0 0.0
  %2809 = vmatpush1.msra.mxu0 0.0
  %2810 = vmatprep.subr.mxu0 0.0
  %2811 = vmatpush1.msra.mxu0 0.0
  %2812 = vmatprep.subr.mxu0 0.0
  %2813 = vmatpush1.msra.mxu0 0.0
  %2814 = vmatprep.subr.mxu0 0.0
  %2815 = vmatpush1.msra.mxu0 0.0
  %2816 = vmatprep.subr.mxu0 0.0
  %2817 = vmatpush1.msra.mxu0 0.0
  %2818 = vmatprep.subr.mxu0 0.0
  %2819 = vmatpush1.msra.mxu0 0.0
  %2820 = vmatprep.subr.mxu0 0.0
  %2821 = vmatpush1.msra.mxu0 0.0
  %2822 = vmatprep.subr.mxu0 0.0
  %2823 = vmatpush1.msra.mxu0 0.0
  %2824 = vmatprep.subr.mxu0 0.0
  %2825 = vmatpush1.msra.mxu0 0.0
  %2826 = vmatprep.subr.mxu0 0.0
  %2827 = vmatpush1.msra.mxu0 0.0
  %2828 = vmatprep.subr.mxu0 0.0
  %2829 = vmatpush1.msra.mxu0 0.0
  %2830 = vmatprep.subr.mxu0 0.0
  %2831 = vmatpush1.msra.mxu0 0.0
  %2832 = vmatprep.subr.mxu0 0.0
  %2833 = vmatpush1.msra.mxu0 0.0
  %2834 = vmatprep.subr.mxu0 0.0
  %2835 = vmatpush1.msra.mxu0 0.0
  %2836 = vmatprep.subr.mxu0 0.0
  %2837 = vmatpush1.msra.mxu0 0.0
  %2838 = vmatprep.subr.mxu0 0.0
  %2839 = vmatpush1.msra.mxu0 0.0
  %2840 = vmatprep.subr.mxu0 0.0
  %2841 = vmatpush1.msra.mxu0 0.0
  %2842 = vmatprep.subr.mxu0 0.0
  %2843 = vmatpush1.msra.mxu0 0.0
  %2844 = vmatprep.subr.mxu0 0.0
  %2845 = vmatpush1.msra.mxu0 0.0
  %2846 = vmatprep.subr.mxu0 0.0
  %2847 = vmatpush1.msra.mxu0 0.0
  %2848 = vmatprep.subr.mxu0 0.0
  %2849 = vmatpush1.msra.mxu0 0.0
  %2850 = vmatprep.subr.mxu0 0.0
  %2851 = vmatpush1.msra.mxu0 0.0
  %2852 = vmatprep.subr.mxu0 0.0
  %2853 = vmatpush1.msra.mxu0 0.0
  %2854 = vmatprep.subr.mxu0 0.0
  %2855 = vmatpush1.msra.mxu0 0.0
  %2856 = vmatprep.subr.mxu0 0.0
  %2857 = vmatpush1.msra.mxu0 0.0
  %2858 = vmatprep.subr.mxu0 0.0
  %2859 = vmatpush1.msra.mxu0 0.0
  %2860 = vmatprep.subr.mxu0 0.0
  %2861 = vmatpush1.msra.mxu0 0.0
  %2862 = vmatprep.subr.mxu0 0.0
  %2863 = vmatpush1.msra.mxu0 0.0
  %2864 = vmatprep.subr.mxu0 0.0
  %2865 = vmatpush1.msra.mxu0 0.0
  %2866 = vmatprep.subr.mxu0 0.0
  %2867 = vmatpush1.msra.mxu0 0.0
  %2868 = vmatprep.mubr.f32.mxu0 0.0
  %2869 = vmatmul.mubr.f32.gmra.mrb[0].mxu0 %v2799
  %v2870 = vpop.f32.mrb[0].mxu0
  %v2871 = vadd.f32 0.0, %v2870
  %v2872 = vpop.f32.mrb[0].mxu0
  %2873 = vmatprep.mubr.f32.mxu0 0.0
  %2874 = vmatmul.mubr.f32.gmra.mrb[0].mxu0 %v2802
  %v2875 = vpop.f32.mrb[0].mxu0
  %v2876 = vadd.f32 0.0, %v2875
  %v2877 = vpop.f32.mrb[0].mxu0
  %2878 = vdwg.mxu0
  %2879 = vxpose.xlu0.b32.start [1/16] %v2221, 128
  %2880 = vxpose.xlu0.b32.cont [2/16] 0.0, 128
  %2881 = vxpose.xlu0.b32.cont [3/16] 0.0, 128
  %2882 = vxpose.xlu0.b32.cont [4/16] 0.0, 128
  %2883 = vxpose.xlu0.b32.cont [5/16] 0.0, 128
  %2884 = vxpose.xlu0.b32.cont [6/16] 0.0, 128
  %2885 = vxpose.xlu0.b32.cont [7/16] 0.0, 128
  %2886 = vxpose.xlu0.b32.cont [8/16] 0.0, 128
  %2887 = vxpose.xlu0.b32.cont [9/16] 0.0, 128
  %2888 = vxpose.xlu0.b32.cont [10/16] 0.0, 128
  %2889 = vxpose.xlu0.b32.cont [11/16] 0.0, 128
  %2890 = vxpose.xlu0.b32.cont [12/16] 0.0, 128
  %2891 = vxpose.xlu0.b32.cont [13/16] 0.0, 128
  %2892 = vxpose.xlu0.b32.cont [14/16] 0.0, 128
  %2893 = vxpose.xlu0.b32.cont [15/16] 0.0, 128
  %2894 = vxpose.xlu0.b32.end [16/16] 0.0, 128
  %v2895 = vpop.trf.xlu0
  %v2896 = vpop.trf.xlu0
  %v2897 = vpop.trf.xlu0
  %v2898 = vpop.trf.xlu0
  %v2899 = vpop.trf.xlu0
  %v2900 = vpop.trf.xlu0
  %v2901 = vpop.trf.xlu0
  %v2902 = vpop.trf.xlu0
  %v2903 = vpop.trf.xlu0
  %v2904 = vpop.trf.xlu0
  %v2905 = vpop.trf.xlu0
  %v2906 = vpop.trf.xlu0
  %v2907 = vpop.trf.xlu0
  %v2908 = vpop.trf.xlu0
  %v2909 = vpop.trf.xlu0
  %v2910 = vpop.trf.xlu0
  %v2912 = vsel %vm422, %v2895, 0
  %v2915 = vsel %vm422, %v2896, 0
  %2917 = vmatprep.subr.mxu0 0.0
  %2918 = vmatpush1.msra.mxu0 %v2261
  %2919 = vmatprep.subr.mxu0 0.0
  %2920 = vmatpush1.msra.mxu0 0.0
  %2921 = vmatprep.subr.mxu0 0.0
  %2922 = vmatpush1.msra.mxu0 0.0
  %2923 = vmatprep.subr.mxu0 0.0
  %2924 = vmatpush1.msra.mxu0 0.0
  %2925 = vmatprep.subr.mxu0 0.0
  %2926 = vmatpush1.msra.mxu0 0.0
  %2927 = vmatprep.subr.mxu0 0.0
  %2928 = vmatpush1.msra.mxu0 0.0
  %2929 = vmatprep.subr.mxu0 0.0
  %2930 = vmatpush1.msra.mxu0 0.0
  %2931 = vmatprep.subr.mxu0 0.0
  %2932 = vmatpush1.msra.mxu0 0.0
  %2933 = vmatprep.subr.mxu0 0.0
  %2934 = vmatpush1.msra.mxu0 0.0
  %2935 = vmatprep.subr.mxu0 0.0
  %2936 = vmatpush1.msra.mxu0 0.0
  %2937 = vmatprep.subr.mxu0 0.0
  %2938 = vmatpush1.msra.mxu0 0.0
  %2939 = vmatprep.subr.mxu0 0.0
  %2940 = vmatpush1.msra.mxu0 0.0
  %2941 = vmatprep.subr.mxu0 0.0
  %2942 = vmatpush1.msra.mxu0 0.0
  %2943 = vmatprep.subr.mxu0 0.0
  %2944 = vmatpush1.msra.mxu0 0.0
  %2945 = vmatprep.subr.mxu0 0.0
  %2946 = vmatpush1.msra.mxu0 0.0
  %2947 = vmatprep.subr.mxu0 0.0
  %2948 = vmatpush1.msra.mxu0 0.0
  %2949 = vmatprep.subr.mxu0 0.0
  %2950 = vmatpush1.msra.mxu0 0.0
  %2951 = vmatprep.subr.mxu0 0.0
  %2952 = vmatpush1.msra.mxu0 0.0
  %2953 = vmatprep.subr.mxu0 0.0
  %2954 = vmatpush1.msra.mxu0 0.0
  %2955 = vmatprep.subr.mxu0 0.0
  %2956 = vmatpush1.msra.mxu0 0.0
  %2957 = vmatprep.subr.mxu0 0.0
  %2958 = vmatpush1.msra.mxu0 0.0
  %2959 = vmatprep.subr.mxu0 0.0
  %2960 = vmatpush1.msra.mxu0 0.0
  %2961 = vmatprep.subr.mxu0 0.0
  %2962 = vmatpush1.msra.mxu0 0.0
  %2963 = vmatprep.subr.mxu0 0.0
  %2964 = vmatpush1.msra.mxu0 0.0
  %2965 = vmatprep.subr.mxu0 0.0
  %2966 = vmatpush1.msra.mxu0 0.0
  %2967 = vmatprep.subr.mxu0 0.0
  %2968 = vmatpush1.msra.mxu0 0.0
  %2969 = vmatprep.subr.mxu0 0.0
  %2970 = vmatpush1.msra.mxu0 0.0
  %2971 = vmatprep.subr.mxu0 0.0
  %2972 = vmatpush1.msra.mxu0 0.0
  %2973 = vmatprep.subr.mxu0 0.0
  %2974 = vmatpush1.msra.mxu0 0.0
  %2975 = vmatprep.subr.mxu0 0.0
  %2976 = vmatpush1.msra.mxu0 0.0
  %2977 = vmatprep.subr.mxu0 0.0
  %2978 = vmatpush1.msra.mxu0 0.0
  %2979 = vmatprep.subr.mxu0 0.0
  %2980 = vmatpush1.msra.mxu0 0.0
  %2981 = vmatprep.mubr.f32.mxu0 0.0
  %2982 = vmatmul.mubr.f32.gmra.mrb[0].mxu0 %v2912
  %v2983 = vpop.f32.mrb[0].mxu0
  %v2984 = vadd.f32 0.0, %v2983
  %v2985 = vpop.f32.mrb[0].mxu0
  %2986 = vmatprep.mubr.f32.mxu0 0.0
  %2987 = vmatmul.mubr.f32.gmra.mrb[0].mxu0 %v2915
  %v2988 = vpop.f32.mrb[0].mxu0
  %v2989 = vadd.f32 0.0, %v2988
  %v2990 = vpop.f32.mrb[0].mxu0
  %2991 = vdwg.mxu0
  %2992 = vxpose.xlu0.b32.start [1/16] %v2226, 128
  %2993 = vxpose.xlu0.b32.cont [2/16] 0.0, 128
  %2994 = vxpose.xlu0.b32.cont [3/16] 0.0, 128
  %2995 = vxpose.xlu0.b32.cont [4/16] 0.0, 128
  %2996 = vxpose.xlu0.b32.cont [5/16] 0.0, 128
  %2997 = vxpose.xlu0.b32.cont [6/16] 0.0, 128
  %2998 = vxpose.xlu0.b32.cont [7/16] 0.0, 128
  %2999 = vxpose.xlu0.b32.cont [8/16] 0.0, 128
  %3000 = vxpose.xlu0.b32.cont [9/16] 0.0, 128
  %3001 = vxpose.xlu0.b32.cont [10/16] 0.0, 128
  %3002 = vxpose.xlu0.b32.cont [11/16] 0.0, 128
  %3003 = vxpose.xlu0.b32.cont [12/16] 0.0, 128
  %3004 = vxpose.xlu0.b32.cont [13/16] 0.0, 128
  %3005 = vxpose.xlu0.b32.cont [14/16] 0.0, 128
  %3006 = vxpose.xlu0.b32.cont [15/16] 0.0, 128
  %3007 = vxpose.xlu0.b32.end [16/16] 0.0, 128
  %v3008 = vpop.trf.xlu0
  %v3009 = vpop.trf.xlu0
  %v3010 = vpop.trf.xlu0
  %v3011 = vpop.trf.xlu0
  %v3012 = vpop.trf.xlu0
  %v3013 = vpop.trf.xlu0
  %v3014 = vpop.trf.xlu0
  %v3015 = vpop.trf.xlu0
  %v3016 = vpop.trf.xlu0
  %v3017 = vpop.trf.xlu0
  %v3018 = vpop.trf.xlu0
  %v3019 = vpop.trf.xlu0
  %v3020 = vpop.trf.xlu0
  %v3021 = vpop.trf.xlu0
  %v3022 = vpop.trf.xlu0
  %v3023 = vpop.trf.xlu0
  %v3025 = vsel %vm422, %v3008, 0
  %v3028 = vsel %vm422, %v3009, 0
  %3030 = vmatprep.subr.mxu0 0.0
  %3031 = vmatpush1.msra.mxu0 %v2266
  %3032 = vmatprep.subr.mxu0 0.0
  %3033 = vmatpush1.msra.mxu0 0.0
  %3034 = vmatprep.subr.mxu0 0.0
  %3035 = vmatpush1.msra.mxu0 0.0
  %3036 = vmatprep.subr.mxu0 0.0
  %3037 = vmatpush1.msra.mxu0 0.0
  %3038 = vmatprep.subr.mxu0 0.0
  %3039 = vmatpush1.msra.mxu0 0.0
  %3040 = vmatprep.subr.mxu0 0.0
  %3041 = vmatpush1.msra.mxu0 0.0
  %3042 = vmatprep.subr.mxu0 0.0
  %3043 = vmatpush1.msra.mxu0 0.0
  %3044 = vmatprep.subr.mxu0 0.0
  %3045 = vmatpush1.msra.mxu0 0.0
  %3046 = vmatprep.subr.mxu0 0.0
  %3047 = vmatpush1.msra.mxu0 0.0
  %3048 = vmatprep.subr.mxu0 0.0
  %3049 = vmatpush1.msra.mxu0 0.0
  %3050 = vmatprep.subr.mxu0 0.0
  %3051 = vmatpush1.msra.mxu0 0.0
  %3052 = vmatprep.subr.mxu0 0.0
  %3053 = vmatpush1.msra.mxu0 0.0
  %3054 = vmatprep.subr.mxu0 0.0
  %3055 = vmatpush1.msra.mxu0 0.0
  %3056 = vmatprep.subr.mxu0 0.0
  %3057 = vmatpush1.msra.mxu0 0.0
  %3058 = vmatprep.subr.mxu0 0.0
  %3059 = vmatpush1.msra.mxu0 0.0
  %3060 = vmatprep.subr.mxu0 0.0
  %3061 = vmatpush1.msra.mxu0 0.0
  %3062 = vmatprep.subr.mxu0 0.0
  %3063 = vmatpush1.msra.mxu0 0.0
  %3064 = vmatprep.subr.mxu0 0.0
  %3065 = vmatpush1.msra.mxu0 0.0
  %3066 = vmatprep.subr.mxu0 0.0
  %3067 = vmatpush1.msra.mxu0 0.0
  %3068 = vmatprep.subr.mxu0 0.0
  %3069 = vmatpush1.msra.mxu0 0.0
  %3070 = vmatprep.subr.mxu0 0.0
  %3071 = vmatpush1.msra.mxu0 0.0
  %3072 = vmatprep.subr.mxu0 0.0
  %3073 = vmatpush1.msra.mxu0 0.0
  %3074 = vmatprep.subr.mxu0 0.0
  %3075 = vmatpush1.msra.mxu0 0.0
  %3076 = vmatprep.subr.mxu0 0.0
  %3077 = vmatpush1.msra.mxu0 0.0
  %3078 = vmatprep.subr.mxu0 0.0
  %3079 = vmatpush1.msra.mxu0 0.0
  %3080 = vmatprep.subr.mxu0 0.0
  %3081 = vmatpush1.msra.mxu0 0.0
  %3082 = vmatprep.subr.mxu0 0.0
  %3083 = vmatpush1.msra.mxu0 0.0
  %3084 = vmatprep.subr.mxu0 0.0
  %3085 = vmatpush1.msra.mxu0 0.0
  %3086 = vmatprep.subr.mxu0 0.0
  %3087 = vmatpush1.msra.mxu0 0.0
  %3088 = vmatprep.subr.mxu0 0.0
  %3089 = vmatpush1.msra.mxu0 0.0
  %3090 = vmatprep.subr.mxu0 0.0
  %3091 = vmatpush1.msra.mxu0 0.0
  %3092 = vmatprep.subr.mxu0 0.0
  %3093 = vmatpush1.msra.mxu0 0.0
  %3094 = vmatprep.mubr.f32.mxu0 0.0
  %3095 = vmatmul.mubr.f32.gmra.mrb[0].mxu0 %v3025
  %v3096 = vpop.f32.mrb[0].mxu0
  %v3097 = vadd.f32 0.0, %v3096
  %v3098 = vpop.f32.mrb[0].mxu0
  %3099 = vmatprep.mubr.f32.mxu0 0.0
  %3100 = vmatmul.mubr.f32.gmra.mrb[0].mxu0 %v3028
  %v3101 = vpop.f32.mrb[0].mxu0
  %v3102 = vadd.f32 0.0, %v3101
  %v3103 = vpop.f32.mrb[0].mxu0
  %3104 = vdwg.mxu0
  %3105 = vxpose.xlu0.b32.start [1/16] %v2231, 128
  %3106 = vxpose.xlu0.b32.cont [2/16] 0.0, 128
  %3107 = vxpose.xlu0.b32.cont [3/16] 0.0, 128
  %3108 = vxpose.xlu0.b32.cont [4/16] 0.0, 128
  %3109 = vxpose.xlu0.b32.cont [5/16] 0.0, 128
  %3110 = vxpose.xlu0.b32.cont [6/16] 0.0, 128
  %3111 = vxpose.xlu0.b32.cont [7/16] 0.0, 128
  %3112 = vxpose.xlu0.b32.cont [8/16] 0.0, 128
  %3113 = vxpose.xlu0.b32.cont [9/16] 0.0, 128
  %3114 = vxpose.xlu0.b32.cont [10/16] 0.0, 128
  %3115 = vxpose.xlu0.b32.cont [11/16] 0.0, 128
  %3116 = vxpose.xlu0.b32.cont [12/16] 0.0, 128
  %3117 = vxpose.xlu0.b32.cont [13/16] 0.0, 128
  %3118 = vxpose.xlu0.b32.cont [14/16] 0.0, 128
  %3119 = vxpose.xlu0.b32.cont [15/16] 0.0, 128
  %3120 = vxpose.xlu0.b32.end [16/16] 0.0, 128
  %v3121 = vpop.trf.xlu0
  %v3122 = vpop.trf.xlu0
  %v3123 = vpop.trf.xlu0
  %v3124 = vpop.trf.xlu0
  %v3125 = vpop.trf.xlu0
  %v3126 = vpop.trf.xlu0
  %v3127 = vpop.trf.xlu0
  %v3128 = vpop.trf.xlu0
  %v3129 = vpop.trf.xlu0
  %v3130 = vpop.trf.xlu0
  %v3131 = vpop.trf.xlu0
  %v3132 = vpop.trf.xlu0
  %v3133 = vpop.trf.xlu0
  %v3134 = vpop.trf.xlu0
  %v3135 = vpop.trf.xlu0
  %v3136 = vpop.trf.xlu0
  %v3138 = vsel %vm422, %v3121, 0
  %v3141 = vsel %vm422, %v3122, 0
  %3143 = vmatprep.subr.mxu0 0.0
  %3144 = vmatpush1.msra.mxu0 %v2271
  %3145 = vmatprep.subr.mxu0 0.0
  %3146 = vmatpush1.msra.mxu0 0.0
  %3147 = vmatprep.subr.mxu0 0.0
  %3148 = vmatpush1.msra.mxu0 0.0
  %3149 = vmatprep.subr.mxu0 0.0
  %3150 = vmatpush1.msra.mxu0 0.0
  %3151 = vmatprep.subr.mxu0 0.0
  %3152 = vmatpush1.msra.mxu0 0.0
  %3153 = vmatprep.subr.mxu0 0.0
  %3154 = vmatpush1.msra.mxu0 0.0
  %3155 = vmatprep.subr.mxu0 0.0
  %3156 = vmatpush1.msra.mxu0 0.0
  %3157 = vmatprep.subr.mxu0 0.0
  %3158 = vmatpush1.msra.mxu0 0.0
  %3159 = vmatprep.subr.mxu0 0.0
  %3160 = vmatpush1.msra.mxu0 0.0
  %3161 = vmatprep.subr.mxu0 0.0
  %3162 = vmatpush1.msra.mxu0 0.0
  %3163 = vmatprep.subr.mxu0 0.0
  %3164 = vmatpush1.msra.mxu0 0.0
  %3165 = vmatprep.subr.mxu0 0.0
  %3166 = vmatpush1.msra.mxu0 0.0
  %3167 = vmatprep.subr.mxu0 0.0
  %3168 = vmatpush1.msra.mxu0 0.0
  %3169 = vmatprep.subr.mxu0 0.0
  %3170 = vmatpush1.msra.mxu0 0.0
  %3171 = vmatprep.subr.mxu0 0.0
  %3172 = vmatpush1.msra.mxu0 0.0
  %3173 = vmatprep.subr.mxu0 0.0
  %3174 = vmatpush1.msra.mxu0 0.0
  %3175 = vmatprep.subr.mxu0 0.0
  %3176 = vmatpush1.msra.mxu0 0.0
  %3177 = vmatprep.subr.mxu0 0.0
  %3178 = vmatpush1.msra.mxu0 0.0
  %3179 = vmatprep.subr.mxu0 0.0
  %3180 = vmatpush1.msra.mxu0 0.0
  %3181 = vmatprep.subr.mxu0 0.0
  %3182 = vmatpush1.msra.mxu0 0.0
  %3183 = vmatprep.subr.mxu0 0.0
  %3184 = vmatpush1.msra.mxu0 0.0
  %3185 = vmatprep.subr.mxu0 0.0
  %3186 = vmatpush1.msra.mxu0 0.0
  %3187 = vmatprep.subr.mxu0 0.0
  %3188 = vmatpush1.msra.mxu0 0.0
  %3189 = vmatprep.subr.mxu0 0.0
  %3190 = vmatpush1.msra.mxu0 0.0
  %3191 = vmatprep.subr.mxu0 0.0
  %3192 = vmatpush1.msra.mxu0 0.0
  %3193 = vmatprep.subr.mxu0 0.0
  %3194 = vmatpush1.msra.mxu0 0.0
  %3195 = vmatprep.subr.mxu0 0.0
  %3196 = vmatpush1.msra.mxu0 0.0
  %3197 = vmatprep.subr.mxu0 0.0
  %3198 = vmatpush1.msra.mxu0 0.0
  %3199 = vmatprep.subr.mxu0 0.0
  %3200 = vmatpush1.msra.mxu0 0.0
  %3201 = vmatprep.subr.mxu0 0.0
  %3202 = vmatpush1.msra.mxu0 0.0
  %3203 = vmatprep.subr.mxu0 0.0
  %3204 = vmatpush1.msra.mxu0 0.0
  %3205 = vmatprep.subr.mxu0 0.0
  %3206 = vmatpush1.msra.mxu0 0.0
  %3207 = vmatprep.mubr.f32.mxu0 0.0
  %3208 = vmatmul.mubr.f32.gmra.mrb[0].mxu0 %v3138
  %v3209 = vpop.f32.mrb[0].mxu0
  %v3210 = vadd.f32 0.0, %v3209
  %v3211 = vpop.f32.mrb[0].mxu0
  %3212 = vmatprep.mubr.f32.mxu0 0.0
  %3213 = vmatmul.mubr.f32.gmra.mrb[0].mxu0 %v3141
  %v3214 = vpop.f32.mrb[0].mxu0
  %v3215 = vadd.f32 0.0, %v3214
  %v3216 = vpop.f32.mrb[0].mxu0
  %3217 = vdwg.mxu0
  %v3218 = vsel %vm1295, %v2419, -inf
  %3219 = vmax.xlane.f32.xlu0 %v3218
  %v3220 = vpop.xlane.xlu0 %3219
  %v3221 = vsel %vm1295, %v2424, -inf
  %3222 = vmax.xlane.f32.xlu0 %v3221
  %v3223 = vpop.xlane.xlu0 %3222
  %v3224 = vsel %vm1295, %v2532, -inf
  %3225 = vmax.xlane.f32.xlu0 %v3224
  %v3226 = vpop.xlane.xlu0 %3225
  %v3227 = vsel %vm1295, %v2537, -inf
  %3228 = vmax.xlane.f32.xlu0 %v3227
  %v3229 = vpop.xlane.xlu0 %3228
  %v3230 = vsel %vm1295, %v2645, -inf
  %3231 = vmax.xlane.f32.xlu0 %v3230
  %v3232 = vpop.xlane.xlu0 %3231
  %v3233 = vsel %vm1295, %v2650, -inf
  %3234 = vmax.xlane.f32.xlu0 %v3233
  %v3235 = vpop.xlane.xlu0 %3234
  %v3236 = vsel %vm1295, %v2758, -inf
  %3237 = vmax.xlane.f32.xlu0 %v3236
  %v3238 = vpop.xlane.xlu0 %3237
  %v3239 = vsel %vm1295, %v2763, -inf
  %3240 = vmax.xlane.f32.xlu0 %v3239
  %v3241 = vpop.xlane.xlu0 %3240
  %v3242 = vsel %vm1295, %v2871, -inf
  %3243 = vmax.xlane.f32.xlu0 %v3242
  %v3244 = vpop.xlane.xlu0 %3243
  %v3245 = vsel %vm1295, %v2876, -inf
  %3246 = vmax.xlane.f32.xlu0 %v3245
  %v3247 = vpop.xlane.xlu0 %3246
  %v3248 = vsel %vm1295, %v2984, -inf
  %3249 = vmax.xlane.f32.xlu0 %v3248
  %v3250 = vpop.xlane.xlu0 %3249
  %v3251 = vsel %vm1295, %v2989, -inf
  %3252 = vmax.xlane.f32.xlu0 %v3251
  %v3253 = vpop.xlane.xlu0 %3252
  %v3254 = vsel %vm1295, %v3097, -inf
  %3255 = vmax.xlane.f32.xlu0 %v3254
  %v3256 = vpop.xlane.xlu0 %3255
  %v3257 = vsel %vm1295, %v3102, -inf
  %3258 = vmax.xlane.f32.xlu0 %v3257
  %v3259 = vpop.xlane.xlu0 %3258
  %v3260 = vsel %vm1295, %v3210, -inf
  %3261 = vmax.xlane.f32.xlu0 %v3260
  %v3262 = vpop.xlane.xlu0 %3261
  %v3263 = vsel %vm1295, %v3215, -inf
  %3264 = vmax.xlane.f32.xlu0 %v3263
  %v3265 = vpop.xlane.xlu0 %3264
  %v3266 = vsub.f32 %v2419, %v3220
  %v3267 = vsub.f32 %v2424, %v3223
  %v3268 = vsub.f32 %v2532, %v3226
  %v3269 = vsub.f32 %v2537, %v3229
  %v3270 = vsub.f32 %v2645, %v3232
  %v3271 = vsub.f32 %v2650, %v3235
  %v3272 = vsub.f32 %v2758, %v3238
  %v3273 = vsub.f32 %v2763, %v3241
  %v3274 = vsub.f32 %v2871, %v3244
  %v3275 = vsub.f32 %v2876, %v3247
  %v3276 = vsub.f32 %v2984, %v3250
  %v3277 = vsub.f32 %v2989, %v3253
  %v3278 = vsub.f32 %v3097, %v3256
  %v3279 = vsub.f32 %v3102, %v3259
  %v3280 = vsub.f32 %v3210, %v3262
  %v3281 = vsub.f32 %v3215, %v3265
  %v3282 = vmul.f32 %v3266, 1.442695
  %v3283 = vpow.pop %v3282
  %v3284 = vmul.f32 %v3267, 1.442695
  %v3285 = vpow.pop %v3284
  %v3286 = vmul.f32 %v3268, 1.442695
  %v3287 = vpow.pop %v3286
  %v3288 = vmul.f32 %v3269, 1.442695
  %v3289 = vpow.pop %v3288
  %v3290 = vmul.f32 %v3270, 1.442695
  %v3291 = vpow.pop %v3290
  %v3292 = vmul.f32 %v3271, 1.442695
  %v3293 = vpow.pop %v3292
  %v3294 = vmul.f32 %v3272, 1.442695
  %v3295 = vpow.pop %v3294
  %v3296 = vmul.f32 %v3273, 1.442695
  %v3297 = vpow.pop %v3296
  %v3298 = vmul.f32 %v3274, 1.442695
  %v3299 = vpow.pop %v3298
  %v3300 = vmul.f32 %v3275, 1.442695
  %v3301 = vpow.pop %v3300
  %v3302 = vmul.f32 %v3276, 1.442695
  %v3303 = vpow.pop %v3302
  %v3304 = vmul.f32 %v3277, 1.442695
  %v3305 = vpow.pop %v3304
  %v3306 = vmul.f32 %v3278, 1.442695
  %v3307 = vpow.pop %v3306
  %v3308 = vmul.f32 %v3279, 1.442695
  %v3309 = vpow.pop %v3308
  %v3310 = vmul.f32 %v3280, 1.442695
  %v3311 = vpow.pop %v3310
  %v3312 = vmul.f32 %v3281, 1.442695
  %v3313 = vpow.pop %v3312
  %v3314 = vsel %vm1295, %v3283, 0.0
  %3315 = vadd.xlane.f32.xlu0 %v3314
  %v3316 = vpop.xlane.xlu0 %3315
  %v3317 = vsel %vm1295, %v3285, 0.0
  %3318 = vadd.xlane.f32.xlu0 %v3317
  %v3319 = vpop.xlane.xlu0 %3318
  %v3320 = vsel %vm1295, %v3287, 0.0
  %3321 = vadd.xlane.f32.xlu0 %v3320
  %v3322 = vpop.xlane.xlu0 %3321
  %v3323 = vsel %vm1295, %v3289, 0.0
  %3324 = vadd.xlane.f32.xlu0 %v3323
  %v3325 = vpop.xlane.xlu0 %3324
  %v3326 = vsel %vm1295, %v3291, 0.0
  %3327 = vadd.xlane.f32.xlu0 %v3326
  %v3328 = vpop.xlane.xlu0 %3327
  %v3329 = vsel %vm1295, %v3293, 0.0
  %3330 = vadd.xlane.f32.xlu0 %v3329
  %v3331 = vpop.xlane.xlu0 %3330
  %v3332 = vsel %vm1295, %v3295, 0.0
  %3333 = vadd.xlane.f32.xlu0 %v3332
  %v3334 = vpop.xlane.xlu0 %3333
  %v3335 = vsel %vm1295, %v3297, 0.0
  %3336 = vadd.xlane.f32.xlu0 %v3335
  %v3337 = vpop.xlane.xlu0 %3336
  %v3338 = vsel %vm1295, %v3299, 0.0
  %3339 = vadd.xlane.f32.xlu0 %v3338
  %v3340 = vpop.xlane.xlu0 %3339
  %v3341 = vsel %vm1295, %v3301, 0.0
  %3342 = vadd.xlane.f32.xlu0 %v3341
  %v3343 = vpop.xlane.xlu0 %3342
  %v3344 = vsel %vm1295, %v3303, 0.0
  %3345 = vadd.xlane.f32.xlu0 %v3344
  %v3346 = vpop.xlane.xlu0 %3345
  %v3347 = vsel %vm1295, %v3305, 0.0
  %3348 = vadd.xlane.f32.xlu0 %v3347
  %v3349 = vpop.xlane.xlu0 %3348
  %v3350 = vsel %vm1295, %v3307, 0.0
  %3351 = vadd.xlane.f32.xlu0 %v3350
  %v3352 = vpop.xlane.xlu0 %3351
  %v3353 = vsel %vm1295, %v3309, 0.0
  %3354 = vadd.xlane.f32.xlu0 %v3353
  %v3355 = vpop.xlane.xlu0 %3354
  %v3356 = vsel %vm1295, %v3311, 0.0
  %3357 = vadd.xlane.f32.xlu0 %v3356
  %v3358 = vpop.xlane.xlu0 %3357
  %v3359 = vsel %vm1295, %v3313, 0.0
  %3360 = vadd.xlane.f32.xlu0 %v3359
  %v3361 = vpop.xlane.xlu0 %3360
  %v3362 = vrcp.pop %v3316
  %v3363 = vrcp.pop %v3319
  %v3364 = vrcp.pop %v3322
  %v3365 = vrcp.pop %v3325
  %v3366 = vrcp.pop %v3328
  %v3367 = vrcp.pop %v3331
  %v3368 = vrcp.pop %v3334
  %v3369 = vrcp.pop %v3337
  %v3370 = vrcp.pop %v3340
  %v3371 = vrcp.pop %v3343
  %v3372 = vrcp.pop %v3346
  %v3373 = vrcp.pop %v3349
  %v3374 = vrcp.pop %v3352
  %v3375 = vrcp.pop %v3355
  %v3376 = vrcp.pop %v3358
  %v3377 = vrcp.pop %v3361
  %v3378 = vmul.f32 %v3283, %v3362
  %v3379 = vmul.f32 %v3285, %v3363
  %v3380 = vmul.f32 %v3287, %v3364
  %v3381 = vmul.f32 %v3289, %v3365
  %v3382 = vmul.f32 %v3291, %v3366
  %v3383 = vmul.f32 %v3293, %v3367
  %v3384 = vmul.f32 %v3295, %v3368
  %v3385 = vmul.f32 %v3297, %v3369
  %v3386 = vmul.f32 %v3299, %v3370
  %v3387 = vmul.f32 %v3301, %v3371
  %v3388 = vmul.f32 %v3303, %v3372
  %v3389 = vmul.f32 %v3305, %v3373
  %v3390 = vmul.f32 %v3307, %v3374
  %v3391 = vmul.f32 %v3309, %v3375
  %v3392 = vmul.f32 %v3311, %v3376
  %v3393 = vmul.f32 %v3313, %v3377
  %v3395 = vsel %vm1295, %v2276, 0
  %v3398 = vsel %vm1295, %v3378, 0
  %v3401 = vsel %vm1295, %v3379, 0
  %3403 = vmatprep.subr.mxu0 0.0
  %3404 = vmatpush1.xpose.msra.mxu0 %v3398
  %3405 = vmatprep.subr.mxu0 0.0
  %3406 = vmatpush1.xpose.msra.mxu0 %v3401
  %3407 = vmatprep.subr.mxu0 0.0
  %3408 = vmatpush1.xpose.msra.mxu0 0.0
  %3409 = vmatprep.subr.mxu0 0.0
  %3410 = vmatpush1.xpose.msra.mxu0 0.0
  %3411 = vmatprep.subr.mxu0 0.0
  %3412 = vmatpush1.xpose.msra.mxu0 0.0
  %3413 = vmatprep.subr.mxu0 0.0
  %3414 = vmatpush1.xpose.msra.mxu0 0.0
  %3415 = vmatprep.subr.mxu0 0.0
  %3416 = vmatpush1.xpose.msra.mxu0 0.0
  %3417 = vmatprep.subr.mxu0 0.0
  %3418 = vmatpush1.xpose.msra.mxu0 0.0
  %3419 = vmatprep.subr.mxu0 0.0
  %3420 = vmatpush1.xpose.msra.mxu0 0.0
  %3421 = vmatprep.subr.mxu0 0.0
  %3422 = vmatpush1.xpose.msra.mxu0 0.0
  %3423 = vmatprep.subr.mxu0 0.0
  %3424 = vmatpush1.xpose.msra.mxu0 0.0
  %3425 = vmatprep.subr.mxu0 0.0
  %3426 = vmatpush1.xpose.msra.mxu0 0.0
  %3427 = vmatprep.subr.mxu0 0.0
  %3428 = vmatpush1.xpose.msra.mxu0 0.0
  %3429 = vmatprep.subr.mxu0 0.0
  %3430 = vmatpush1.xpose.msra.mxu0 0.0
  %3431 = vmatprep.subr.mxu0 0.0
  %3432 = vmatpush1.xpose.msra.mxu0 0.0
  %3433 = vmatprep.subr.mxu0 0.0
  %3434 = vmatpush1.xpose.msra.mxu0 0.0
  %3435 = vmatprep.subr.mxu0 0.0
  %3436 = vmatpush1.xpose.msra.mxu0 0.0
  %3437 = vmatprep.subr.mxu0 0.0
  %3438 = vmatpush1.xpose.msra.mxu0 0.0
  %3439 = vmatprep.subr.mxu0 0.0
  %3440 = vmatpush1.xpose.msra.mxu0 0.0
  %3441 = vmatprep.subr.mxu0 0.0
  %3442 = vmatpush1.xpose.msra.mxu0 0.0
  %3443 = vmatprep.subr.mxu0 0.0
  %3444 = vmatpush1.xpose.msra.mxu0 0.0
  %3445 = vmatprep.subr.mxu0 0.0
  %3446 = vmatpush1.xpose.msra.mxu0 0.0
  %3447 = vmatprep.subr.mxu0 0.0
  %3448 = vmatpush1.xpose.msra.mxu0 0.0
  %3449 = vmatprep.subr.mxu0 0.0
  %3450 = vmatpush1.xpose.msra.mxu0 0.0
  %3451 = vmatprep.subr.mxu0 0.0
  %3452 = vmatpush1.xpose.msra.mxu0 0.0
  %3453 = vmatprep.subr.mxu0 0.0
  %3454 = vmatpush1.xpose.msra.mxu0 0.0
  %3455 = vmatprep.subr.mxu0 0.0
  %3456 = vmatpush1.xpose.msra.mxu0 0.0
  %3457 = vmatprep.subr.mxu0 0.0
  %3458 = vmatpush1.xpose.msra.mxu0 0.0
  %3459 = vmatprep.subr.mxu0 0.0
  %3460 = vmatpush1.xpose.msra.mxu0 0.0
  %3461 = vmatprep.subr.mxu0 0.0
  %3462 = vmatpush1.xpose.msra.mxu0 0.0
  %3463 = vmatprep.subr.mxu0 0.0
  %3464 = vmatpush1.xpose.msra.mxu0 0.0
  %3465 = vmatprep.subr.mxu0 0.0
  %3466 = vmatpush1.xpose.msra.mxu0 0.0
  %3467 = vmatprep.mubr.f32.mxu0 0.0
  %3468 = vmatmul.mubr.f32.gmra.mrb[0].mxu0 %v3395
  %v3469 = vpop.f32.mrb[0].mxu0
  %v3470 = vadd.f32 0.0, %v3469
  %v3471 = vpop.f32.mrb[0].mxu0
  %3472 = vdwg.mxu0
  %v3474 = vsel %vm1295, %v2281, 0
  %v3477 = vsel %vm1295, %v3380, 0
  %v3480 = vsel %vm1295, %v3381, 0
  %3482 = vmatprep.subr.mxu0 0.0
  %3483 = vmatpush1.xpose.msra.mxu0 %v3477
  %3484 = vmatprep.subr.mxu0 0.0
  %3485 = vmatpush1.xpose.msra.mxu0 %v3480
  %3486 = vmatprep.subr.mxu0 0.0
  %3487 = vmatpush1.xpose.msra.mxu0 0.0
  %3488 = vmatprep.subr.mxu0 0.0
  %3489 = vmatpush1.xpose.msra.mxu0 0.0
  %3490 = vmatprep.subr.mxu0 0.0
  %3491 = vmatpush1.xpose.msra.mxu0 0.0
  %3492 = vmatprep.subr.mxu0 0.0
  %3493 = vmatpush1.xpose.msra.mxu0 0.0
  %3494 = vmatprep.subr.mxu0 0.0
  %3495 = vmatpush1.xpose.msra.mxu0 0.0
  %3496 = vmatprep.subr.mxu0 0.0
  %3497 = vmatpush1.xpose.msra.mxu0 0.0
  %3498 = vmatprep.subr.mxu0 0.0
  %3499 = vmatpush1.xpose.msra.mxu0 0.0
  %3500 = vmatprep.subr.mxu0 0.0
  %3501 = vmatpush1.xpose.msra.mxu0 0.0
  %3502 = vmatprep.subr.mxu0 0.0
  %3503 = vmatpush1.xpose.msra.mxu0 0.0
  %3504 = vmatprep.subr.mxu0 0.0
  %3505 = vmatpush1.xpose.msra.mxu0 0.0
  %3506 = vmatprep.subr.mxu0 0.0
  %3507 = vmatpush1.xpose.msra.mxu0 0.0
  %3508 = vmatprep.subr.mxu0 0.0
  %3509 = vmatpush1.xpose.msra.mxu0 0.0
  %3510 = vmatprep.subr.mxu0 0.0
  %3511 = vmatpush1.xpose.msra.mxu0 0.0
  %3512 = vmatprep.subr.mxu0 0.0
  %3513 = vmatpush1.xpose.msra.mxu0 0.0
  %3514 = vmatprep.subr.mxu0 0.0
  %3515 = vmatpush1.xpose.msra.mxu0 0.0
  %3516 = vmatprep.subr.mxu0 0.0
  %3517 = vmatpush1.xpose.msra.mxu0 0.0
  %3518 = vmatprep.subr.mxu0 0.0
  %3519 = vmatpush1.xpose.msra.mxu0 0.0
  %3520 = vmatprep.subr.mxu0 0.0
  %3521 = vmatpush1.xpose.msra.mxu0 0.0
  %3522 = vmatprep.subr.mxu0 0.0
  %3523 = vmatpush1.xpose.msra.mxu0 0.0
  %3524 = vmatprep.subr.mxu0 0.0
  %3525 = vmatpush1.xpose.msra.mxu0 0.0
  %3526 = vmatprep.subr.mxu0 0.0
  %3527 = vmatpush1.xpose.msra.mxu0 0.0
  %3528 = vmatprep.subr.mxu0 0.0
  %3529 = vmatpush1.xpose.msra.mxu0 0.0
  %3530 = vmatprep.subr.mxu0 0.0
  %3531 = vmatpush1.xpose.msra.mxu0 0.0
  %3532 = vmatprep.subr.mxu0 0.0
  %3533 = vmatpush1.xpose.msra.mxu0 0.0
  %3534 = vmatprep.subr.mxu0 0.0
  %3535 = vmatpush1.xpose.msra.mxu0 0.0
  %3536 = vmatprep.subr.mxu0 0.0
  %3537 = vmatpush1.xpose.msra.mxu0 0.0
  %3538 = vmatprep.subr.mxu0 0.0
  %3539 = vmatpush1.xpose.msra.mxu0 0.0
  %3540 = vmatprep.subr.mxu0 0.0
  %3541 = vmatpush1.xpose.msra.mxu0 0.0
  %3542 = vmatprep.subr.mxu0 0.0
  %3543 = vmatpush1.xpose.msra.mxu0 0.0
  %3544 = vmatprep.subr.mxu0 0.0
  %3545 = vmatpush1.xpose.msra.mxu0 0.0
  %3546 = vmatprep.mubr.f32.mxu0 0.0
  %3547 = vmatmul.mubr.f32.gmra.mrb[0].mxu0 %v3474
  %v3548 = vpop.f32.mrb[0].mxu0
  %v3549 = vadd.f32 0.0, %v3548
  %v3550 = vpop.f32.mrb[0].mxu0
  %3551 = vdwg.mxu0
  %v3553 = vsel %vm1295, %v2286, 0
  %v3556 = vsel %vm1295, %v3382, 0
  %v3559 = vsel %vm1295, %v3383, 0
  %3561 = vmatprep.subr.mxu0 0.0
  %3562 = vmatpush1.xpose.msra.mxu0 %v3556
  %3563 = vmatprep.subr.mxu0 0.0
  %3564 = vmatpush1.xpose.msra.mxu0 %v3559
  %3565 = vmatprep.subr.mxu0 0.0
  %3566 = vmatpush1.xpose.msra.mxu0 0.0
  %3567 = vmatprep.subr.mxu0 0.0
  %3568 = vmatpush1.xpose.msra.mxu0 0.0
  %3569 = vmatprep.subr.mxu0 0.0
  %3570 = vmatpush1.xpose.msra.mxu0 0.0
  %3571 = vmatprep.subr.mxu0 0.0
  %3572 = vmatpush1.xpose.msra.mxu0 0.0
  %3573 = vmatprep.subr.mxu0 0.0
  %3574 = vmatpush1.xpose.msra.mxu0 0.0
  %3575 = vmatprep.subr.mxu0 0.0
  %3576 = vmatpush1.xpose.msra.mxu0 0.0
  %3577 = vmatprep.subr.mxu0 0.0
  %3578 = vmatpush1.xpose.msra.mxu0 0.0
  %3579 = vmatprep.subr.mxu0 0.0
  %3580 = vmatpush1.xpose.msra.mxu0 0.0
  %3581 = vmatprep.subr.mxu0 0.0
  %3582 = vmatpush1.xpose.msra.mxu0 0.0
  %3583 = vmatprep.subr.mxu0 0.0
  %3584 = vmatpush1.xpose.msra.mxu0 0.0
  %3585 = vmatprep.subr.mxu0 0.0
  %3586 = vmatpush1.xpose.msra.mxu0 0.0
  %3587 = vmatprep.subr.mxu0 0.0
  %3588 = vmatpush1.xpose.msra.mxu0 0.0
  %3589 = vmatprep.subr.mxu0 0.0
  %3590 = vmatpush1.xpose.msra.mxu0 0.0
  %3591 = vmatprep.subr.mxu0 0.0
  %3592 = vmatpush1.xpose.msra.mxu0 0.0
  %3593 = vmatprep.subr.mxu0 0.0
  %3594 = vmatpush1.xpose.msra.mxu0 0.0
  %3595 = vmatprep.subr.mxu0 0.0
  %3596 = vmatpush1.xpose.msra.mxu0 0.0
  %3597 = vmatprep.subr.mxu0 0.0
  %3598 = vmatpush1.xpose.msra.mxu0 0.0
  %3599 = vmatprep.subr.mxu0 0.0
  %3600 = vmatpush1.xpose.msra.mxu0 0.0
  %3601 = vmatprep.subr.mxu0 0.0
  %3602 = vmatpush1.xpose.msra.mxu0 0.0
  %3603 = vmatprep.subr.mxu0 0.0
  %3604 = vmatpush1.xpose.msra.mxu0 0.0
  %3605 = vmatprep.subr.mxu0 0.0
  %3606 = vmatpush1.xpose.msra.mxu0 0.0
  %3607 = vmatprep.subr.mxu0 0.0
  %3608 = vmatpush1.xpose.msra.mxu0 0.0
  %3609 = vmatprep.subr.mxu0 0.0
  %3610 = vmatpush1.xpose.msra.mxu0 0.0
  %3611 = vmatprep.subr.mxu0 0.0
  %3612 = vmatpush1.xpose.msra.mxu0 0.0
  %3613 = vmatprep.subr.mxu0 0.0
  %3614 = vmatpush1.xpose.msra.mxu0 0.0
  %3615 = vmatprep.subr.mxu0 0.0
  %3616 = vmatpush1.xpose.msra.mxu0 0.0
  %3617 = vmatprep.subr.mxu0 0.0
  %3618 = vmatpush1.xpose.msra.mxu0 0.0
  %3619 = vmatprep.subr.mxu0 0.0
  %3620 = vmatpush1.xpose.msra.mxu0 0.0
  %3621 = vmatprep.subr.mxu0 0.0
  %3622 = vmatpush1.xpose.msra.mxu0 0.0
  %3623 = vmatprep.subr.mxu0 0.0
  %3624 = vmatpush1.xpose.msra.mxu0 0.0
  %3625 = vmatprep.mubr.f32.mxu0 0.0
  %3626 = vmatmul.mubr.f32.gmra.mrb[0].mxu0 %v3553
  %v3627 = vpop.f32.mrb[0].mxu0
  %v3628 = vadd.f32 0.0, %v3627
  %v3629 = vpop.f32.mrb[0].mxu0
  %3630 = vdwg.mxu0
  %v3632 = vsel %vm1295, %v2291, 0
  %v3635 = vsel %vm1295, %v3384, 0
  %v3638 = vsel %vm1295, %v3385, 0
  %3640 = vmatprep.subr.mxu0 0.0
  %3641 = vmatpush1.xpose.msra.mxu0 %v3635
  %3642 = vmatprep.subr.mxu0 0.0
  %3643 = vmatpush1.xpose.msra.mxu0 %v3638
  %3644 = vmatprep.subr.mxu0 0.0
  %3645 = vmatpush1.xpose.msra.mxu0 0.0
  %3646 = vmatprep.subr.mxu0 0.0
  %3647 = vmatpush1.xpose.msra.mxu0 0.0
  %3648 = vmatprep.subr.mxu0 0.0
  %3649 = vmatpush1.xpose.msra.mxu0 0.0
  %3650 = vmatprep.subr.mxu0 0.0
  %3651 = vmatpush1.xpose.msra.mxu0 0.0
  %3652 = vmatprep.subr.mxu0 0.0
  %3653 = vmatpush1.xpose.msra.mxu0 0.0
  %3654 = vmatprep.subr.mxu0 0.0
  %3655 = vmatpush1.xpose.msra.mxu0 0.0
  %3656 = vmatprep.subr.mxu0 0.0
  %3657 = vmatpush1.xpose.msra.mxu0 0.0
  %3658 = vmatprep.subr.mxu0 0.0
  %3659 = vmatpush1.xpose.msra.mxu0 0.0
  %3660 = vmatprep.subr.mxu0 0.0
  %3661 = vmatpush1.xpose.msra.mxu0 0.0
  %3662 = vmatprep.subr.mxu0 0.0
  %3663 = vmatpush1.xpose.msra.mxu0 0.0
  %3664 = vmatprep.subr.mxu0 0.0
  %3665 = vmatpush1.xpose.msra.mxu0 0.0
  %3666 = vmatprep.subr.mxu0 0.0
  %3667 = vmatpush1.xpose.msra.mxu0 0.0
  %3668 = vmatprep.subr.mxu0 0.0
  %3669 = vmatpush1.xpose.msra.mxu0 0.0
  %3670 = vmatprep.subr.mxu0 0.0
  %3671 = vmatpush1.xpose.msra.mxu0 0.0
  %3672 = vmatprep.subr.mxu0 0.0
  %3673 = vmatpush1.xpose.msra.mxu0 0.0
  %3674 = vmatprep.subr.mxu0 0.0
  %3675 = vmatpush1.xpose.msra.mxu0 0.0
  %3676 = vmatprep.subr.mxu0 0.0
  %3677 = vmatpush1.xpose.msra.mxu0 0.0
  %3678 = vmatprep.subr.mxu0 0.0
  %3679 = vmatpush1.xpose.msra.mxu0 0.0
  %3680 = vmatprep.subr.mxu0 0.0
  %3681 = vmatpush1.xpose.msra.mxu0 0.0
  %3682 = vmatprep.subr.mxu0 0.0
  %3683 = vmatpush1.xpose.msra.mxu0 0.0
  %3684 = vmatprep.subr.mxu0 0.0
  %3685 = vmatpush1.xpose.msra.mxu0 0.0
  %3686 = vmatprep.subr.mxu0 0.0
  %3687 = vmatpush1.xpose.msra.mxu0 0.0
  %3688 = vmatprep.subr.mxu0 0.0
  %3689 = vmatpush1.xpose.msra.mxu0 0.0
  %3690 = vmatprep.subr.mxu0 0.0
  %3691 = vmatpush1.xpose.msra.mxu0 0.0
  %3692 = vmatprep.subr.mxu0 0.0
  %3693 = vmatpush1.xpose.msra.mxu0 0.0
  %3694 = vmatprep.subr.mxu0 0.0
  %3695 = vmatpush1.xpose.msra.mxu0 0.0
  %3696 = vmatprep.subr.mxu0 0.0
  %3697 = vmatpush1.xpose.msra.mxu0 0.0
  %3698 = vmatprep.subr.mxu0 0.0
  %3699 = vmatpush1.xpose.msra.mxu0 0.0
  %3700 = vmatprep.subr.mxu0 0.0
  %3701 = vmatpush1.xpose.msra.mxu0 0.0
  %3702 = vmatprep.subr.mxu0 0.0
  %3703 = vmatpush1.xpose.msra.mxu0 0.0
  %3704 = vmatprep.mubr.f32.mxu0 0.0
  %3705 = vmatmul.mubr.f32.gmra.mrb[0].mxu0 %v3632
  %v3706 = vpop.f32.mrb[0].mxu0
  %v3707 = vadd.f32 0.0, %v3706
  %v3708 = vpop.f32.mrb[0].mxu0
  %3709 = vdwg.mxu0
  %v3711 = vsel %vm1295, %v2296, 0
  %v3714 = vsel %vm1295, %v3386, 0
  %v3717 = vsel %vm1295, %v3387, 0
  %3719 = vmatprep.subr.mxu0 0.0
  %3720 = vmatpush1.xpose.msra.mxu0 %v3714
  %3721 = vmatprep.subr.mxu0 0.0
  %3722 = vmatpush1.xpose.msra.mxu0 %v3717
  %3723 = vmatprep.subr.mxu0 0.0
  %3724 = vmatpush1.xpose.msra.mxu0 0.0
  %3725 = vmatprep.subr.mxu0 0.0
  %3726 = vmatpush1.xpose.msra.mxu0 0.0
  %3727 = vmatprep.subr.mxu0 0.0
  %3728 = vmatpush1.xpose.msra.mxu0 0.0
  %3729 = vmatprep.subr.mxu0 0.0
  %3730 = vmatpush1.xpose.msra.mxu0 0.0
  %3731 = vmatprep.subr.mxu0 0.0
  %3732 = vmatpush1.xpose.msra.mxu0 0.0
  %3733 = vmatprep.subr.mxu0 0.0
  %3734 = vmatpush1.xpose.msra.mxu0 0.0
  %3735 = vmatprep.subr.mxu0 0.0
  %3736 = vmatpush1.xpose.msra.mxu0 0.0
  %3737 = vmatprep.subr.mxu0 0.0
  %3738 = vmatpush1.xpose.msra.mxu0 0.0
  %3739 = vmatprep.subr.mxu0 0.0
  %3740 = vmatpush1.xpose.msra.mxu0 0.0
  %3741 = vmatprep.subr.mxu0 0.0
  %3742 = vmatpush1.xpose.msra.mxu0 0.0
  %3743 = vmatprep.subr.mxu0 0.0
  %3744 = vmatpush1.xpose.msra.mxu0 0.0
  %3745 = vmatprep.subr.mxu0 0.0
  %3746 = vmatpush1.xpose.msra.mxu0 0.0
  %3747 = vmatprep.subr.mxu0 0.0
  %3748 = vmatpush1.xpose.msra.mxu0 0.0
  %3749 = vmatprep.subr.mxu0 0.0
  %3750 = vmatpush1.xpose.msra.mxu0 0.0
  %3751 = vmatprep.subr.mxu0 0.0
  %3752 = vmatpush1.xpose.msra.mxu0 0.0
  %3753 = vmatprep.subr.mxu0 0.0
  %3754 = vmatpush1.xpose.msra.mxu0 0.0
  %3755 = vmatprep.subr.mxu0 0.0
  %3756 = vmatpush1.xpose.msra.mxu0 0.0
  %3757 = vmatprep.subr.mxu0 0.0
  %3758 = vmatpush1.xpose.msra.mxu0 0.0
  %3759 = vmatprep.subr.mxu0 0.0
  %3760 = vmatpush1.xpose.msra.mxu0 0.0
  %3761 = vmatprep.subr.mxu0 0.0
  %3762 = vmatpush1.xpose.msra.mxu0 0.0
  %3763 = vmatprep.subr.mxu0 0.0
  %3764 = vmatpush1.xpose.msra.mxu0 0.0
  %3765 = vmatprep.subr.mxu0 0.0
  %3766 = vmatpush1.xpose.msra.mxu0 0.0
  %3767 = vmatprep.subr.mxu0 0.0
  %3768 = vmatpush1.xpose.msra.mxu0 0.0
  %3769 = vmatprep.subr.mxu0 0.0
  %3770 = vmatpush1.xpose.msra.mxu0 0.0
  %3771 = vmatprep.subr.mxu0 0.0
  %3772 = vmatpush1.xpose.msra.mxu0 0.0
  %3773 = vmatprep.subr.mxu0 0.0
  %3774 = vmatpush1.xpose.msra.mxu0 0.0
  %3775 = vmatprep.subr.mxu0 0.0
  %3776 = vmatpush1.xpose.msra.mxu0 0.0
  %3777 = vmatprep.subr.mxu0 0.0
  %3778 = vmatpush1.xpose.msra.mxu0 0.0
  %3779 = vmatprep.subr.mxu0 0.0
  %3780 = vmatpush1.xpose.msra.mxu0 0.0
  %3781 = vmatprep.subr.mxu0 0.0
  %3782 = vmatpush1.xpose.msra.mxu0 0.0
  %3783 = vmatprep.mubr.f32.mxu0 0.0
  %3784 = vmatmul.mubr.f32.gmra.mrb[0].mxu0 %v3711
  %v3785 = vpop.f32.mrb[0].mxu0
  %v3786 = vadd.f32 0.0, %v3785
  %v3787 = vpop.f32.mrb[0].mxu0
  %3788 = vdwg.mxu0
  %v3790 = vsel %vm1295, %v2301, 0
  %v3793 = vsel %vm1295, %v3388, 0
  %v3796 = vsel %vm1295, %v3389, 0
  %3798 = vmatprep.subr.mxu0 0.0
  %3799 = vmatpush1.xpose.msra.mxu0 %v3793
  %3800 = vmatprep.subr.mxu0 0.0
  %3801 = vmatpush1.xpose.msra.mxu0 %v3796
  %3802 = vmatprep.subr.mxu0 0.0
  %3803 = vmatpush1.xpose.msra.mxu0 0.0
  %3804 = vmatprep.subr.mxu0 0.0
  %3805 = vmatpush1.xpose.msra.mxu0 0.0
  %3806 = vmatprep.subr.mxu0 0.0
  %3807 = vmatpush1.xpose.msra.mxu0 0.0
  %3808 = vmatprep.subr.mxu0 0.0
  %3809 = vmatpush1.xpose.msra.mxu0 0.0
  %3810 = vmatprep.subr.mxu0 0.0
  %3811 = vmatpush1.xpose.msra.mxu0 0.0
  %3812 = vmatprep.subr.mxu0 0.0
  %3813 = vmatpush1.xpose.msra.mxu0 0.0
  %3814 = vmatprep.subr.mxu0 0.0
  %3815 = vmatpush1.xpose.msra.mxu0 0.0
  %3816 = vmatprep.subr.mxu0 0.0
  %3817 = vmatpush1.xpose.msra.mxu0 0.0
  %3818 = vmatprep.subr.mxu0 0.0
  %3819 = vmatpush1.xpose.msra.mxu0 0.0
  %3820 = vmatprep.subr.mxu0 0.0
  %3821 = vmatpush1.xpose.msra.mxu0 0.0
  %3822 = vmatprep.subr.mxu0 0.0
  %3823 = vmatpush1.xpose.msra.mxu0 0.0
  %3824 = vmatprep.subr.mxu0 0.0
  %3825 = vmatpush1.xpose.msra.mxu0 0.0
  %3826 = vmatprep.subr.mxu0 0.0
  %3827 = vmatpush1.xpose.msra.mxu0 0.0
  %3828 = vmatprep.subr.mxu0 0.0
  %3829 = vmatpush1.xpose.msra.mxu0 0.0
  %3830 = vmatprep.subr.mxu0 0.0
  %3831 = vmatpush1.xpose.msra.mxu0 0.0
  %3832 = vmatprep.subr.mxu0 0.0
  %3833 = vmatpush1.xpose.msra.mxu0 0.0
  %3834 = vmatprep.subr.mxu0 0.0
  %3835 = vmatpush1.xpose.msra.mxu0 0.0
  %3836 = vmatprep.subr.mxu0 0.0
  %3837 = vmatpush1.xpose.msra.mxu0 0.0
  %3838 = vmatprep.subr.mxu0 0.0
  %3839 = vmatpush1.xpose.msra.mxu0 0.0
  %3840 = vmatprep.subr.mxu0 0.0
  %3841 = vmatpush1.xpose.msra.mxu0 0.0
  %3842 = vmatprep.subr.mxu0 0.0
  %3843 = vmatpush1.xpose.msra.mxu0 0.0
  %3844 = vmatprep.subr.mxu0 0.0
  %3845 = vmatpush1.xpose.msra.mxu0 0.0
  %3846 = vmatprep.subr.mxu0 0.0
  %3847 = vmatpush1.xpose.msra.mxu0 0.0
  %3848 = vmatprep.subr.mxu0 0.0
  %3849 = vmatpush1.xpose.msra.mxu0 0.0
  %3850 = vmatprep.subr.mxu0 0.0
  %3851 = vmatpush1.xpose.msra.mxu0 0.0
  %3852 = vmatprep.subr.mxu0 0.0
  %3853 = vmatpush1.xpose.msra.mxu0 0.0
  %3854 = vmatprep.subr.mxu0 0.0
  %3855 = vmatpush1.xpose.msra.mxu0 0.0
  %3856 = vmatprep.subr.mxu0 0.0
  %3857 = vmatpush1.xpose.msra.mxu0 0.0
  %3858 = vmatprep.subr.mxu0 0.0
  %3859 = vmatpush1.xpose.msra.mxu0 0.0
  %3860 = vmatprep.subr.mxu0 0.0
  %3861 = vmatpush1.xpose.msra.mxu0 0.0
  %3862 = vmatprep.mubr.f32.mxu0 0.0
  %3863 = vmatmul.mubr.f32.gmra.mrb[0].mxu0 %v3790
  %v3864 = vpop.f32.mrb[0].mxu0
  %v3865 = vadd.f32 0.0, %v3864
  %v3866 = vpop.f32.mrb[0].mxu0
  %3867 = vdwg.mxu0
  %v3869 = vsel %vm1295, %v2306, 0
  %v3872 = vsel %vm1295, %v3390, 0
  %v3875 = vsel %vm1295, %v3391, 0
  %3877 = vmatprep.subr.mxu0 0.0
  %3878 = vmatpush1.xpose.msra.mxu0 %v3872
  %3879 = vmatprep.subr.mxu0 0.0
  %3880 = vmatpush1.xpose.msra.mxu0 %v3875
  %3881 = vmatprep.subr.mxu0 0.0
  %3882 = vmatpush1.xpose.msra.mxu0 0.0
  %3883 = vmatprep.subr.mxu0 0.0
  %3884 = vmatpush1.xpose.msra.mxu0 0.0
  %3885 = vmatprep.subr.mxu0 0.0
  %3886 = vmatpush1.xpose.msra.mxu0 0.0
  %3887 = vmatprep.subr.mxu0 0.0
  %3888 = vmatpush1.xpose.msra.mxu0 0.0
  %3889 = vmatprep.subr.mxu0 0.0
  %3890 = vmatpush1.xpose.msra.mxu0 0.0
  %3891 = vmatprep.subr.mxu0 0.0
  %3892 = vmatpush1.xpose.msra.mxu0 0.0
  %3893 = vmatprep.subr.mxu0 0.0
  %3894 = vmatpush1.xpose.msra.mxu0 0.0
  %3895 = vmatprep.subr.mxu0 0.0
  %3896 = vmatpush1.xpose.msra.mxu0 0.0
  %3897 = vmatprep.subr.mxu0 0.0
  %3898 = vmatpush1.xpose.msra.mxu0 0.0
  %3899 = vmatprep.subr.mxu0 0.0
  %3900 = vmatpush1.xpose.msra.mxu0 0.0
  %3901 = vmatprep.subr.mxu0 0.0
  %3902 = vmatpush1.xpose.msra.mxu0 0.0
  %3903 = vmatprep.subr.mxu0 0.0
  %3904 = vmatpush1.xpose.msra.mxu0 0.0
  %3905 = vmatprep.subr.mxu0 0.0
  %3906 = vmatpush1.xpose.msra.mxu0 0.0
  %3907 = vmatprep.subr.mxu0 0.0
  %3908 = vmatpush1.xpose.msra.mxu0 0.0
  %3909 = vmatprep.subr.mxu0 0.0
  %3910 = vmatpush1.xpose.msra.mxu0 0.0
  %3911 = vmatprep.subr.mxu0 0.0
  %3912 = vmatpush1.xpose.msra.mxu0 0.0
  %3913 = vmatprep.subr.mxu0 0.0
  %3914 = vmatpush1.xpose.msra.mxu0 0.0
  %3915 = vmatprep.subr.mxu0 0.0
  %3916 = vmatpush1.xpose.msra.mxu0 0.0
  %3917 = vmatprep.subr.mxu0 0.0
  %3918 = vmatpush1.xpose.msra.mxu0 0.0
  %3919 = vmatprep.subr.mxu0 0.0
  %3920 = vmatpush1.xpose.msra.mxu0 0.0
  %3921 = vmatprep.subr.mxu0 0.0
  %3922 = vmatpush1.xpose.msra.mxu0 0.0
  %3923 = vmatprep.subr.mxu0 0.0
  %3924 = vmatpush1.xpose.msra.mxu0 0.0
  %3925 = vmatprep.subr.mxu0 0.0
  %3926 = vmatpush1.xpose.msra.mxu0 0.0
  %3927 = vmatprep.subr.mxu0 0.0
  %3928 = vmatpush1.xpose.msra.mxu0 0.0
  %3929 = vmatprep.subr.mxu0 0.0
  %3930 = vmatpush1.xpose.msra.mxu0 0.0
  %3931 = vmatprep.subr.mxu0 0.0
  %3932 = vmatpush1.xpose.msra.mxu0 0.0
  %3933 = vmatprep.subr.mxu0 0.0
  %3934 = vmatpush1.xpose.msra.mxu0 0.0
  %3935 = vmatprep.subr.mxu0 0.0
  %3936 = vmatpush1.xpose.msra.mxu0 0.0
  %3937 = vmatprep.subr.mxu0 0.0
  %3938 = vmatpush1.xpose.msra.mxu0 0.0
  %3939 = vmatprep.subr.mxu0 0.0
  %3940 = vmatpush1.xpose.msra.mxu0 0.0
  %3941 = vmatprep.mubr.f32.mxu0 0.0
  %3942 = vmatmul.mubr.f32.gmra.mrb[0].mxu0 %v3869
  %v3943 = vpop.f32.mrb[0].mxu0
  %v3944 = vadd.f32 0.0, %v3943
  %v3945 = vpop.f32.mrb[0].mxu0
  %3946 = vdwg.mxu0
  %v3948 = vsel %vm1295, %v2311, 0
  %v3951 = vsel %vm1295, %v3392, 0
  %v3954 = vsel %vm1295, %v3393, 0
  %3956 = vmatprep.subr.mxu0 0.0
  %3957 = vmatpush1.xpose.msra.mxu0 %v3951
  %3958 = vmatprep.subr.mxu0 0.0
  %3959 = vmatpush1.xpose.msra.mxu0 %v3954
  %3960 = vmatprep.subr.mxu0 0.0
  %3961 = vmatpush1.xpose.msra.mxu0 0.0
  %3962 = vmatprep.subr.mxu0 0.0
  %3963 = vmatpush1.xpose.msra.mxu0 0.0
  %3964 = vmatprep.subr.mxu0 0.0
  %3965 = vmatpush1.xpose.msra.mxu0 0.0
  %3966 = vmatprep.subr.mxu0 0.0
  %3967 = vmatpush1.xpose.msra.mxu0 0.0
  %3968 = vmatprep.subr.mxu0 0.0
  %3969 = vmatpush1.xpose.msra.mxu0 0.0
  %3970 = vmatprep.subr.mxu0 0.0
  %3971 = vmatpush1.xpose.msra.mxu0 0.0
  %3972 = vmatprep.subr.mxu0 0.0
  %3973 = vmatpush1.xpose.msra.mxu0 0.0
  %3974 = vmatprep.subr.mxu0 0.0
  %3975 = vmatpush1.xpose.msra.mxu0 0.0
  %3976 = vmatprep.subr.mxu0 0.0
  %3977 = vmatpush1.xpose.msra.mxu0 0.0
  %3978 = vmatprep.subr.mxu0 0.0
  %3979 = vmatpush1.xpose.msra.mxu0 0.0
  %3980 = vmatprep.subr.mxu0 0.0
  %3981 = vmatpush1.xpose.msra.mxu0 0.0
  %3982 = vmatprep.subr.mxu0 0.0
  %3983 = vmatpush1.xpose.msra.mxu0 0.0
  %3984 = vmatprep.subr.mxu0 0.0
  %3985 = vmatpush1.xpose.msra.mxu0 0.0
  %3986 = vmatprep.subr.mxu0 0.0
  %3987 = vmatpush1.xpose.msra.mxu0 0.0
  %3988 = vmatprep.subr.mxu0 0.0
  %3989 = vmatpush1.xpose.msra.mxu0 0.0
  %3990 = vmatprep.subr.mxu0 0.0
  %3991 = vmatpush1.xpose.msra.mxu0 0.0
  %3992 = vmatprep.subr.mxu0 0.0
  %3993 = vmatpush1.xpose.msra.mxu0 0.0
  %3994 = vmatprep.subr.mxu0 0.0
  %3995 = vmatpush1.xpose.msra.mxu0 0.0
  %3996 = vmatprep.subr.mxu0 0.0
  %3997 = vmatpush1.xpose.msra.mxu0 0.0
  %3998 = vmatprep.subr.mxu0 0.0
  %3999 = vmatpush1.xpose.msra.mxu0 0.0
  %4000 = vmatprep.subr.mxu0 0.0
  %4001 = vmatpush1.xpose.msra.mxu0 0.0
  %4002 = vmatprep.subr.mxu0 0.0
  %4003 = vmatpush1.xpose.msra.mxu0 0.0
  %4004 = vmatprep.subr.mxu0 0.0
  %4005 = vmatpush1.xpose.msra.mxu0 0.0
  %4006 = vmatprep.subr.mxu0 0.0
  %4007 = vmatpush1.xpose.msra.mxu0 0.0
  %4008 = vmatprep.subr.mxu0 0.0
  %4009 = vmatpush1.xpose.msra.mxu0 0.0
  %4010 = vmatprep.subr.mxu0 0.0
  %4011 = vmatpush1.xpose.msra.mxu0 0.0
  %4012 = vmatprep.subr.mxu0 0.0
  %4013 = vmatpush1.xpose.msra.mxu0 0.0
  %4014 = vmatprep.subr.mxu0 0.0
  %4015 = vmatpush1.xpose.msra.mxu0 0.0
  %4016 = vmatprep.subr.mxu0 0.0
  %4017 = vmatpush1.xpose.msra.mxu0 0.0
  %4018 = vmatprep.subr.mxu0 0.0
  %4019 = vmatpush1.xpose.msra.mxu0 0.0
  %4020 = vmatprep.mubr.f32.mxu0 0.0
  %4021 = vmatmul.mubr.f32.gmra.mrb[0].mxu0 %v3948
  %v4022 = vpop.f32.mrb[0].mxu0
  %v4023 = vadd.f32 0.0, %v4022
  %v4024 = vpop.f32.mrb[0].mxu0
  %4025 = vdwg.mxu0
  %v4026 = vadd.f32 %v2121, %v3470
  %v4027 = vadd.f32 %v2122, %v3549
  %v4028 = vadd.f32 %v2123, %v3628
  %v4029 = vadd.f32 %v2124, %v3707
  %v4030 = vadd.f32 %v2125, %v3786
  %v4031 = vadd.f32 %v2126, %v3865
  %v4032 = vadd.f32 %v2127, %v3944
  %v4033 = vadd.f32 %v2128, %v4023
  %4042 = vrot.lane.b32.xlu0 %v4026, 16
  %v4043 = vpop.permute.xlu0 %4042
  %4044 = vrot.lane.b32.xlu0 %v4027, 16
  %v4045 = vpop.permute.xlu0 %4044
  %4046 = vrot.lane.b32.xlu0 %v4028, 16
  %v4047 = vpop.permute.xlu0 %4046
  %4048 = vrot.lane.b32.xlu0 %v4029, 16
  %v4049 = vpop.permute.xlu0 %4048
  %4050 = vrot.lane.b32.xlu0 %v4030, 16
  %v4051 = vpop.permute.xlu0 %4050
  %4052 = vrot.lane.b32.xlu0 %v4031, 16
  %v4053 = vpop.permute.xlu0 %4052
  %4054 = vrot.lane.b32.xlu0 %v4032, 16
  %v4055 = vpop.permute.xlu0 %4054
  %4056 = vrot.lane.b32.xlu0 %v4033, 16
  %v4057 = vpop.permute.xlu0 %4056
  %vm4066 = vcmask 261248
  %4067 = vst.msk [vmem:[#allocation2] sm:$0xff] %vm4066, %v4043
  %4068 = vst.msk [vmem:[#allocation2 + $0x8] sm:$0xff] %vm4066, %v4045
  %4069 = vst.msk [vmem:[#allocation2 + $0x10] sm:$0xff] %vm4066, %v4047
  %4070 = vst.msk [vmem:[#allocation2 + $0x18] sm:$0xff] %vm4066, %v4049
  %4071 = vst.msk [vmem:[#allocation2 + $0x20] sm:$0xff] %vm4066, %v4051
  %4072 = vst.msk [vmem:[#allocation2 + $0x28] sm:$0xff] %vm4066, %v4053
  %4073 = vst.msk [vmem:[#allocation2 + $0x30] sm:$0xff] %vm4066, %v4055
  %4074 = vst.msk [vmem:[#allocation2 + $0x38] sm:$0xff] %vm4066, %v4057
  %v4075 = vld [vmem:[#allocation2] sm:$0xff]
  %v4076 = vld [vmem:[#allocation2 + $0x8] sm:$0xff]
  %v4077 = vld [vmem:[#allocation2 + $0x10] sm:$0xff]
  %v4078 = vld [vmem:[#allocation2 + $0x18] sm:$0xff]
  %v4079 = vld [vmem:[#allocation2 + $0x20] sm:$0xff]
  %v4080 = vld [vmem:[#allocation2 + $0x28] sm:$0xff]
  %v4081 = vld [vmem:[#allocation2 + $0x30] sm:$0xff]
  %v4082 = vld [vmem:[#allocation2 + $0x38] sm:$0xff]
  %vm4083 = vcmask 261120
  %v4084 = vsel %vm4083, %v4075, 0.0
  %4085 = vadd.xlane.f32.xlu0 %v4084
  %v4086 = vpop.xlane.xlu0 %4085
  %v4087 = vsel %vm4083, %v4076, 0.0
  %4088 = vadd.xlane.f32.xlu0 %v4087
  %v4089 = vpop.xlane.xlu0 %4088
  %v4090 = vsel %vm4083, %v4077, 0.0
  %4091 = vadd.xlane.f32.xlu0 %v4090
  %v4092 = vpop.xlane.xlu0 %4091
  %v4093 = vsel %vm4083, %v4078, 0.0
  %4094 = vadd.xlane.f32.xlu0 %v4093
  %v4095 = vpop.xlane.xlu0 %4094
  %v4096 = vsel %vm4083, %v4079, 0.0
  %4097 = vadd.xlane.f32.xlu0 %v4096
  %v4098 = vpop.xlane.xlu0 %4097
  %v4099 = vsel %vm4083, %v4080, 0.0
  %4100 = vadd.xlane.f32.xlu0 %v4099
  %v4101 = vpop.xlane.xlu0 %4100
  %v4102 = vsel %vm4083, %v4081, 0.0
  %4103 = vadd.xlane.f32.xlu0 %v4102
  %v4104 = vpop.xlane.xlu0 %4103
  %v4105 = vsel %vm4083, %v4082, 0.0
  %4106 = vadd.xlane.f32.xlu0 %v4105
  %v4107 = vpop.xlane.xlu0 %4106
  %v4108 = vrcp.pop 32.0
  %v4109 = vmul.f32 %v4086, %v4108
  %v4110 = vmul.f32 %v4089, %v4108
  %v4111 = vmul.f32 %v4092, %v4108
  %v4112 = vmul.f32 %v4095, %v4108
  %v4113 = vmul.f32 %v4098, %v4108
  %v4114 = vmul.f32 %v4101, %v4108
  %v4115 = vmul.f32 %v4104, %v4108
  %v4116 = vmul.f32 %v4107, %v4108
  %v4117 = vsub.f32 %v4075, %v4109
  %v4118 = vsub.f32 %v4076, %v4110
  %v4119 = vsub.f32 %v4077, %v4111
  %v4120 = vsub.f32 %v4078, %v4112
  %v4121 = vsub.f32 %v4079, %v4113
  %v4122 = vsub.f32 %v4080, %v4114
  %v4123 = vsub.f32 %v4081, %v4115
  %v4124 = vsub.f32 %v4082, %v4116
  %v4125 = vmul.f32 %v4117, %v4117
  %v4126 = vmul.f32 %v4118, %v4118
  %v4127 = vmul.f32 %v4119, %v4119
  %v4128 = vmul.f32 %v4120, %v4120
  %v4129 = vmul.f32 %v4121, %v4121
  %v4130 = vmul.f32 %v4122, %v4122
  %v4131 = vmul.f32 %v4123, %v4123
  %v4132 = vmul.f32 %v4124, %v4124
  %v4133 = vsel %vm4083, %v4125, 0.0
  %4134 = vadd.xlane.f32.xlu0 %v4133
  %v4135 = vpop.xlane.xlu0 %4134
  %v4136 = vsel %vm4083, %v4126, 0.0
  %4137 = vadd.xlane.f32.xlu0 %v4136
  %v4138 = vpop.xlane.xlu0 %4137
  %v4139 = vsel %vm4083, %v4127, 0.0
  %4140 = vadd.xlane.f32.xlu0 %v4139
  %v4141 = vpop.xlane.xlu0 %4140
  %v4142 = vsel %vm4083, %v4128, 0.0
  %4143 = vadd.xlane.f32.xlu0 %v4142
  %v4144 = vpop.xlane.xlu0 %4143
  %v4145 = vsel %vm4083, %v4129, 0.0
  %4146 = vadd.xlane.f32.xlu0 %v4145
  %v4147 = vpop.xlane.xlu0 %4146
  %v4148 = vsel %vm4083, %v4130, 0.0
  %4149 = vadd.xlane.f32.xlu0 %v4148
  %v4150 = vpop.xlane.xlu0 %4149
  %v4151 = vsel %vm4083, %v4131, 0.0
  %4152 = vadd.xlane.f32.xlu0 %v4151
  %v4153 = vpop.xlane.xlu0 %4152
  %v4154 = vsel %vm4083, %v4132, 0.0
  %4155 = vadd.xlane.f32.xlu0 %v4154
  %v4156 = vpop.xlane.xlu0 %4155
  %v4157 = vmul.f32 %v4135, %v4108
  %v4158 = vmul.f32 %v4138, %v4108
  %v4159 = vmul.f32 %v4141, %v4108
  %v4160 = vmul.f32 %v4144, %v4108
  %v4161 = vmul.f32 %v4147, %v4108
  %v4162 = vmul.f32 %v4150, %v4108
  %v4163 = vmul.f32 %v4153, %v4108
  %v4164 = vmul.f32 %v4156, %v4108
  %v4165 = vadd.f32 %v4157, 1e-05
  %v4166 = vadd.f32 %v4158, 1e-05
  %v4167 = vadd.f32 %v4159, 1e-05
  %v4168 = vadd.f32 %v4160, 1e-05
  %v4169 = vadd.f32 %v4161, 1e-05
  %v4170 = vadd.f32 %v4162, 1e-05
  %v4171 = vadd.f32 %v4163, 1e-05
  %v4172 = vadd.f32 %v4164, 1e-05
  %v4173 = vrsqrt.pop %v4165
  %v4174 = vrsqrt.pop %v4166
  %v4175 = vrsqrt.pop %v4167
  %v4176 = vrsqrt.pop %v4168
  %v4177 = vrsqrt.pop %v4169
  %v4178 = vrsqrt.pop %v4170
  %v4179 = vrsqrt.pop %v4171
  %v4180 = vrsqrt.pop %v4172
  %v4181 = vmul.f32 %v4117, %v4173
  %v4182 = vmul.f32 %v4118, %v4174
  %v4183 = vmul.f32 %v4119, %v4175
  %v4184 = vmul.f32 %v4120, %v4176
  %v4185 = vmul.f32 %v4121, %v4177
  %v4186 = vmul.f32 %v4122, %v4178
  %v4187 = vmul.f32 %v4123, %v4179
  %v4188 = vmul.f32 %v4124, %v4180
  %4190 = vset.pattern.permute.xlu0 0
  %4191 = vperm.xlu0 %4190, %v116
  %v4192 = vpop.permute.xlu0 %4191
  %4195 = vset.pattern.permute.xlu0 0
  %4196 = vperm.xlu0 %4195, %v117
  %v4197 = vpop.permute.xlu0 %4196
  %4200 = vset.pattern.permute.xlu0 0
  %4201 = vperm.xlu0 %4200, %v118
  %v4202 = vpop.permute.xlu0 %4201
  %4205 = vset.pattern.permute.xlu0 0
  %4206 = vperm.xlu0 %4205, %v119
  %v4207 = vpop.permute.xlu0 %4206
  %4210 = vset.pattern.permute.xlu0 0
  %4211 = vperm.xlu0 %4210, %v120
  %v4212 = vpop.permute.xlu0 %4211
  %4215 = vset.pattern.permute.xlu0 0
  %4216 = vperm.xlu0 %4215, %v121
  %v4217 = vpop.permute.xlu0 %4216
  %4220 = vset.pattern.permute.xlu0 0
  %4221 = vperm.xlu0 %4220, %v122
  %v4222 = vpop.permute.xlu0 %4221
  %4225 = vset.pattern.permute.xlu0 0
  %4226 = vperm.xlu0 %4225, %v123
  %v4227 = vpop.permute.xlu0 %4226
  %v4229 = vmul.f32 %v4181, %v4192
  %v4230 = vmul.f32 %v4182, %v4197
  %v4231 = vmul.f32 %v4183, %v4202
  %v4232 = vmul.f32 %v4184, %v4207
  %v4233 = vmul.f32 %v4185, %v4212
  %v4234 = vmul.f32 %v4186, %v4217
  %v4235 = vmul.f32 %v4187, %v4222
  %v4236 = vmul.f32 %v4188, %v4227
  %4237 = vset.pattern.permute.xlu0 1
  %4238 = vperm.xlu0 %4237, %v116
  %v4239 = vpop.permute.xlu0 %4238
  %4241 = vset.pattern.permute.xlu0 1
  %4242 = vperm.xlu0 %4241, %v117
  %v4243 = vpop.permute.xlu0 %4242
  %4245 = vset.pattern.permute.xlu0 1
  %4246 = vperm.xlu0 %4245, %v118
  %v4247 = vpop.permute.xlu0 %4246
  %4249 = vset.pattern.permute.xlu0 1
  %4250 = vperm.xlu0 %4249, %v119
  %v4251 = vpop.permute.xlu0 %4250
  %4253 = vset.pattern.permute.xlu0 1
  %4254 = vperm.xlu0 %4253, %v120
  %v4255 = vpop.permute.xlu0 %4254
  %4257 = vset.pattern.permute.xlu0 1
  %4258 = vperm.xlu0 %4257, %v121
  %v4259 = vpop.permute.xlu0 %4258
  %4261 = vset.pattern.permute.xlu0 1
  %4262 = vperm.xlu0 %4261, %v122
  %v4263 = vpop.permute.xlu0 %4262
  %4265 = vset.pattern.permute.xlu0 1
  %4266 = vperm.xlu0 %4265, %v123
  %v4267 = vpop.permute.xlu0 %4266
  %v4269 = vadd.f32 %v4229, %v4239
  %v4270 = vadd.f32 %v4230, %v4243
  %v4271 = vadd.f32 %v4231, %v4247
  %v4272 = vadd.f32 %v4232, %v4251
  %v4273 = vadd.f32 %v4233, %v4255
  %v4274 = vadd.f32 %v4234, %v4259
  %v4275 = vadd.f32 %v4235, %v4263
  %v4276 = vadd.f32 %v4236, %v4267
  %v4278 = vsel %vm132, %v84, 0
  %v4281 = vsel %vm132, %v85, 0
  %v4284 = vsel %vm132, %v86, 0
  %v4287 = vsel %vm132, %v87, 0
  %v4290 = vsel %vm132, %v88, 0
  %v4293 = vsel %vm132, %v89, 0
  %v4296 = vsel %vm132, %v90, 0
  %v4299 = vsel %vm132, %v91, 0
  %v4302 = vsel %vm132, %v92, 0
  %v4305 = vsel %vm132, %v93, 0
  %v4308 = vsel %vm132, %v94, 0
  %v4311 = vsel %vm132, %v95, 0
  %v4314 = vsel %vm132, %v96, 0
  %v4317 = vsel %vm132, %v97, 0
  %v4320 = vsel %vm132, %v98, 0
  %v4323 = vsel %vm132, %v99, 0
  %4325 = vmatprep.subr.mxu0 0.0
  %4326 = vmatpush1.msra.mxu0 %v4269
  %4327 = vmatprep.subr.mxu0 0.0
  %4328 = vmatpush1.msra.mxu0 %v4270
  %4329 = vmatprep.subr.mxu0 0.0
  %4330 = vmatpush1.msra.mxu0 %v4271
  %4331 = vmatprep.subr.mxu0 0.0
  %4332 = vmatpush1.msra.mxu0 %v4272
  %4333 = vmatprep.subr.mxu0 0.0
  %4334 = vmatpush1.msra.mxu0 %v4273
  %4335 = vmatprep.subr.mxu0 0.0
  %4336 = vmatpush1.msra.mxu0 %v4274
  %4337 = vmatprep.subr.mxu0 0.0
  %4338 = vmatpush1.msra.mxu0 %v4275
  %4339 = vmatprep.subr.mxu0 0.0
  %4340 = vmatpush1.msra.mxu0 %v4276
  %4341 = vmatprep.subr.mxu0 0.0
  %4342 = vmatpush1.msra.mxu0 0.0
  %4343 = vmatprep.subr.mxu0 0.0
  %4344 = vmatpush1.msra.mxu0 0.0
  %4345 = vmatprep.subr.mxu0 0.0
  %4346 = vmatpush1.msra.mxu0 0.0
  %4347 = vmatprep.subr.mxu0 0.0
  %4348 = vmatpush1.msra.mxu0 0.0
  %4349 = vmatprep.subr.mxu0 0.0
  %4350 = vmatpush1.msra.mxu0 0.0
  %4351 = vmatprep.subr.mxu0 0.0
  %4352 = vmatpush1.msra.mxu0 0.0
  %4353 = vmatprep.subr.mxu0 0.0
  %4354 = vmatpush1.msra.mxu0 0.0
  %4355 = vmatprep.subr.mxu0 0.0
  %4356 = vmatpush1.msra.mxu0 0.0
  %4357 = vmatprep.subr.mxu0 0.0
  %4358 = vmatpush1.msra.mxu0 0.0
  %4359 = vmatprep.subr.mxu0 0.0
  %4360 = vmatpush1.msra.mxu0 0.0
  %4361 = vmatprep.subr.mxu0 0.0
  %4362 = vmatpush1.msra.mxu0 0.0
  %4363 = vmatprep.subr.mxu0 0.0
  %4364 = vmatpush1.msra.mxu0 0.0
  %4365 = vmatprep.subr.mxu0 0.0
  %4366 = vmatpush1.msra.mxu0 0.0
  %4367 = vmatprep.subr.mxu0 0.0
  %4368 = vmatpush1.msra.mxu0 0.0
  %4369 = vmatprep.subr.mxu0 0.0
  %4370 = vmatpush1.msra.mxu0 0.0
  %4371 = vmatprep.subr.mxu0 0.0
  %4372 = vmatpush1.msra.mxu0 0.0
  %4373 = vmatprep.subr.mxu0 0.0
  %4374 = vmatpush1.msra.mxu0 0.0
  %4375 = vmatprep.subr.mxu0 0.0
  %4376 = vmatpush1.msra.mxu0 0.0
  %4377 = vmatprep.subr.mxu0 0.0
  %4378 = vmatpush1.msra.mxu0 0.0
  %4379 = vmatprep.subr.mxu0 0.0
  %4380 = vmatpush1.msra.mxu0 0.0
  %4381 = vmatprep.subr.mxu0 0.0
  %4382 = vmatpush1.msra.mxu0 0.0
  %4383 = vmatprep.subr.mxu0 0.0
  %4384 = vmatpush1.msra.mxu0 0.0
  %4385 = vmatprep.subr.mxu0 0.0
  %4386 = vmatpush1.msra.mxu0 0.0
  %4387 = vmatprep.subr.mxu0 0.0
  %4388 = vmatpush1.msra.mxu0 0.0
  %4389 = vmatprep.mubr.f32.mxu0 0.0
  %4390 = vmatmul.mubr.f32.gmra.mrb[0].mxu0 %v4278
  %v4391 = vpop.f32.mrb[0].mxu0
  %v4392 = vadd.f32 0.0, %v4391
  %v4393 = vpop.f32.mrb[0].mxu0
  %4394 = vmatprep.mubr.f32.mxu0 0.0
  %4395 = vmatmul.mubr.f32.gmra.mrb[0].mxu0 %v4281
  %v4396 = vpop.f32.mrb[0].mxu0
  %v4397 = vadd.f32 0.0, %v4396
  %v4398 = vpop.f32.mrb[0].mxu0
  %4399 = vmatprep.mubr.f32.mxu0 0.0
  %4400 = vmatmul.mubr.f32.gmra.mrb[0].mxu0 %v4284
  %v4401 = vpop.f32.mrb[0].mxu0
  %v4402 = vadd.f32 0.0, %v4401
  %v4403 = vpop.f32.mrb[0].mxu0
  %4404 = vmatprep.mubr.f32.mxu0 0.0
  %4405 = vmatmul.mubr.f32.gmra.mrb[0].mxu0 %v4287
  %v4406 = vpop.f32.mrb[0].mxu0
  %v4407 = vadd.f32 0.0, %v4406
  %v4408 = vpop.f32.mrb[0].mxu0
  %4409 = vmatprep.mubr.f32.mxu0 0.0
  %4410 = vmatmul.mubr.f32.gmra.mrb[0].mxu0 %v4290
  %v4411 = vpop.f32.mrb[0].mxu0
  %v4412 = vadd.f32 0.0, %v4411
  %v4413 = vpop.f32.mrb[0].mxu0
  %4414 = vmatprep.mubr.f32.mxu0 0.0
  %4415 = vmatmul.mubr.f32.gmra.mrb[0].mxu0 %v4293
  %v4416 = vpop.f32.mrb[0].mxu0
  %v4417 = vadd.f32 0.0, %v4416
  %v4418 = vpop.f32.mrb[0].mxu0
  %4419 = vmatprep.mubr.f32.mxu0 0.0
  %4420 = vmatmul.mubr.f32.gmra.mrb[0].mxu0 %v4296
  %v4421 = vpop.f32.mrb[0].mxu0
  %v4422 = vadd.f32 0.0, %v4421
  %v4423 = vpop.f32.mrb[0].mxu0
  %4424 = vmatprep.mubr.f32.mxu0 0.0
  %4425 = vmatmul.mubr.f32.gmra.mrb[0].mxu0 %v4299
  %v4426 = vpop.f32.mrb[0].mxu0
  %v4427 = vadd.f32 0.0, %v4426
  %v4428 = vpop.f32.mrb[0].mxu0
  %4429 = vmatprep.mubr.f32.mxu0 0.0
  %4430 = vmatmul.mubr.f32.gmra.mrb[0].mxu0 %v4302
  %v4431 = vpop.f32.mrb[0].mxu0
  %v4432 = vadd.f32 0.0, %v4431
  %v4433 = vpop.f32.mrb[0].mxu0
  %4434 = vmatprep.mubr.f32.mxu0 0.0
  %4435 = vmatmul.mubr.f32.gmra.mrb[0].mxu0 %v4305
  %v4436 = vpop.f32.mrb[0].mxu0
  %v4437 = vadd.f32 0.0, %v4436
  %v4438 = vpop.f32.mrb[0].mxu0
  %4439 = vmatprep.mubr.f32.mxu0 0.0
  %4440 = vmatmul.mubr.f32.gmra.mrb[0].mxu0 %v4308
  %v4441 = vpop.f32.mrb[0].mxu0
  %v4442 = vadd.f32 0.0, %v4441
  %v4443 = vpop.f32.mrb[0].mxu0
  %4444 = vmatprep.mubr.f32.mxu0 0.0
  %4445 = vmatmul.mubr.f32.gmra.mrb[0].mxu0 %v4311
  %v4446 = vpop.f32.mrb[0].mxu0
  %v4447 = vadd.f32 0.0, %v4446
  %v4448 = vpop.f32.mrb[0].mxu0
  %4449 = vmatprep.mubr.f32.mxu0 0.0
  %4450 = vmatmul.mubr.f32.gmra.mrb[0].mxu0 %v4314
  %v4451 = vpop.f32.mrb[0].mxu0
  %v4452 = vadd.f32 0.0, %v4451
  %v4453 = vpop.f32.mrb[0].mxu0
  %4454 = vmatprep.mubr.f32.mxu0 0.0
  %4455 = vmatmul.mubr.f32.gmra.mrb[0].mxu0 %v4317
  %v4456 = vpop.f32.mrb[0].mxu0
  %v4457 = vadd.f32 0.0, %v4456
  %v4458 = vpop.f32.mrb[0].mxu0
  %4459 = vmatprep.mubr.f32.mxu0 0.0
  %4460 = vmatmul.mubr.f32.gmra.mrb[0].mxu0 %v4320
  %v4461 = vpop.f32.mrb[0].mxu0
  %v4462 = vadd.f32 0.0, %v4461
  %v4463 = vpop.f32.mrb[0].mxu0
  %4464 = vmatprep.mubr.f32.mxu0 0.0
  %4465 = vmatmul.mubr.f32.gmra.mrb[0].mxu0 %v4323
  %v4466 = vpop.f32.mrb[0].mxu0
  %v4467 = vadd.f32 0.0, %v4466
  %v4468 = vpop.f32.mrb[0].mxu0
  %4469 = vdwg.mxu0
  %vm4470 = vcmp.ge.f32.partialorder %v4392, 0.0
  %vm4471 = vcmp.ge.f32.partialorder %v4397, 0.0
  %vm4472 = vcmp.ge.f32.partialorder %v4402, 0.0
  %vm4473 = vcmp.ge.f32.partialorder %v4407, 0.0
  %vm4474 = vcmp.ge.f32.partialorder %v4412, 0.0
  %vm4475 = vcmp.ge.f32.partialorder %v4417, 0.0
  %vm4476 = vcmp.ge.f32.partialorder %v4422, 0.0
  %vm4477 = vcmp.ge.f32.partialorder %v4427, 0.0
  %vm4478 = vcmp.ge.f32.partialorder %v4432, 0.0
  %vm4479 = vcmp.ge.f32.partialorder %v4437, 0.0
  %vm4480 = vcmp.ge.f32.partialorder %v4442, 0.0
  %vm4481 = vcmp.ge.f32.partialorder %v4447, 0.0
  %vm4482 = vcmp.ge.f32.partialorder %v4452, 0.0
  %vm4483 = vcmp.ge.f32.partialorder %v4457, 0.0
  %vm4484 = vcmp.ge.f32.partialorder %v4462, 0.0
  %vm4485 = vcmp.ge.f32.partialorder %v4467, 0.0
  %v4486 = vmul.f32 %v4392, 0.2
  %v4487 = vmul.f32 %v4397, 0.2
  %v4488 = vmul.f32 %v4402, 0.2
  %v4489 = vmul.f32 %v4407, 0.2
  %v4490 = vmul.f32 %v4412, 0.2
  %v4491 = vmul.f32 %v4417, 0.2
  %v4492 = vmul.f32 %v4422, 0.2
  %v4493 = vmul.f32 %v4427, 0.2
  %v4494 = vmul.f32 %v4432, 0.2
  %v4495 = vmul.f32 %v4437, 0.2
  %v4496 = vmul.f32 %v4442, 0.2
  %v4497 = vmul.f32 %v4447, 0.2
  %v4498 = vmul.f32 %v4452, 0.2
  %v4499 = vmul.f32 %v4457, 0.2
  %v4500 = vmul.f32 %v4462, 0.2
  %v4501 = vmul.f32 %v4467, 0.2
  %v4502 = vsel %vm4470, %v4392, %v4486
  %v4503 = vsel %vm4471, %v4397, %v4487
  %v4504 = vsel %vm4472, %v4402, %v4488
  %v4505 = vsel %vm4473, %v4407, %v4489
  %v4506 = vsel %vm4474, %v4412, %v4490
  %v4507 = vsel %vm4475, %v4417, %v4491
  %v4508 = vsel %vm4476, %v4422, %v4492
  %v4509 = vsel %vm4477, %v4427, %v4493
  %v4510 = vsel %vm4478, %v4432, %v4494
  %v4511 = vsel %vm4479, %v4437, %v4495
  %v4512 = vsel %vm4480, %v4442, %v4496
  %v4513 = vsel %vm4481, %v4447, %v4497
  %v4514 = vsel %vm4482, %v4452, %v4498
  %v4515 = vsel %vm4483, %v4457, %v4499
  %v4516 = vsel %vm4484, %v4462, %v4500
  %v4517 = vsel %vm4485, %v4467, %v4501
  %4518 = vmatprep.subr.mxu0 0.0
  %4519 = vmatpush1.msra.mxu0 %v4502
  %4520 = vmatprep.subr.mxu0 0.0
  %4521 = vmatpush1.msra.mxu0 %v4503
  %4522 = vmatprep.subr.mxu0 0.0
  %4523 = vmatpush1.msra.mxu0 %v4504
  %4524 = vmatprep.subr.mxu0 0.0
  %4525 = vmatpush1.msra.mxu0 %v4505
  %4526 = vmatprep.subr.mxu0 0.0
  %4527 = vmatpush1.msra.mxu0 %v4506
  %4528 = vmatprep.subr.mxu0 0.0
  %4529 = vmatpush1.msra.mxu0 %v4507
  %4530 = vmatprep.subr.mxu0 0.0
  %4531 = vmatpush1.msra.mxu0 %v4508
  %4532 = vmatprep.subr.mxu0 0.0
  %4533 = vmatpush1.msra.mxu0 %v4509
  %4534 = vmatprep.subr.mxu0 0.0
  %4535 = vmatpush1.msra.mxu0 %v4510
  %4536 = vmatprep.subr.mxu0 0.0
  %4537 = vmatpush1.msra.mxu0 %v4511
  %4538 = vmatprep.subr.mxu0 0.0
  %4539 = vmatpush1.msra.mxu0 %v4512
  %4540 = vmatprep.subr.mxu0 0.0
  %4541 = vmatpush1.msra.mxu0 %v4513
  %4542 = vmatprep.subr.mxu0 0.0
  %4543 = vmatpush1.msra.mxu0 %v4514
  %4544 = vmatprep.subr.mxu0 0.0
  %4545 = vmatpush1.msra.mxu0 %v4515
  %4546 = vmatprep.subr.mxu0 0.0
  %4547 = vmatpush1.msra.mxu0 %v4516
  %4548 = vmatprep.subr.mxu0 0.0
  %4549 = vmatpush1.msra.mxu0 %v4517
  %4550 = vmatprep.subr.mxu0 0.0
  %4551 = vmatpush1.msra.mxu0 0.0
  %4552 = vmatprep.subr.mxu0 0.0
  %4553 = vmatpush1.msra.mxu0 0.0
  %4554 = vmatprep.subr.mxu0 0.0
  %4555 = vmatpush1.msra.mxu0 0.0
  %4556 = vmatprep.subr.mxu0 0.0
  %4557 = vmatpush1.msra.mxu0 0.0
  %4558 = vmatprep.subr.mxu0 0.0
  %4559 = vmatpush1.msra.mxu0 0.0
  %4560 = vmatprep.subr.mxu0 0.0
  %4561 = vmatpush1.msra.mxu0 0.0
  %4562 = vmatprep.subr.mxu0 0.0
  %4563 = vmatpush1.msra.mxu0 0.0
  %4564 = vmatprep.subr.mxu0 0.0
  %4565 = vmatpush1.msra.mxu0 0.0
  %4566 = vmatprep.subr.mxu0 0.0
  %4567 = vmatpush1.msra.mxu0 0.0
  %4568 = vmatprep.subr.mxu0 0.0
  %4569 = vmatpush1.msra.mxu0 0.0
  %4570 = vmatprep.subr.mxu0 0.0
  %4571 = vmatpush1.msra.mxu0 0.0
  %4572 = vmatprep.subr.mxu0 0.0
  %4573 = vmatpush1.msra.mxu0 0.0
  %4574 = vmatprep.subr.mxu0 0.0
  %4575 = vmatpush1.msra.mxu0 0.0
  %4576 = vmatprep.subr.mxu0 0.0
  %4577 = vmatpush1.msra.mxu0 0.0
  %4578 = vmatprep.subr.mxu0 0.0
  %4579 = vmatpush1.msra.mxu0 0.0
  %4580 = vmatprep.subr.mxu0 0.0
  %4581 = vmatpush1.msra.mxu0 0.0
  %4582 = vmatprep.mubr.f32.mxu0 0.0
  %4583 = vmatmul.mubr.f32.gmra.mrb[0].mxu0 %v108
  %v4584 = vpop.f32.mrb[0].mxu0
  %v4585 = vadd.f32 0.0, %v4584
  %v4586 = vpop.f32.mrb[0].mxu0
  %4587 = vmatprep.mubr.f32.mxu0 0.0
  %4588 = vmatmul.mubr.f32.gmra.mrb[0].mxu0 %v109
  %v4589 = vpop.f32.mrb[0].mxu0
  %v4590 = vadd.f32 0.0, %v4589
  %v4591 = vpop.f32.mrb[0].mxu0
  %4592 = vmatprep.mubr.f32.mxu0 0.0
  %4593 = vmatmul.mubr.f32.gmra.mrb[0].mxu0 %v110
  %v4594 = vpop.f32.mrb[0].mxu0
  %v4595 = vadd.f32 0.0, %v4594
  %v4596 = vpop.f32.mrb[0].mxu0
  %4597 = vmatprep.mubr.f32.mxu0 0.0
  %4598 = vmatmul.mubr.f32.gmra.mrb[0].mxu0 %v111
  %v4599 = vpop.f32.mrb[0].mxu0
  %v4600 = vadd.f32 0.0, %v4599
  %v4601 = vpop.f32.mrb[0].mxu0
  %4602 = vmatprep.mubr.f32.mxu0 0.0
  %4603 = vmatmul.mubr.f32.gmra.mrb[0].mxu0 %v112
  %v4604 = vpop.f32.mrb[0].mxu0
  %v4605 = vadd.f32 0.0, %v4604
  %v4606 = vpop.f32.mrb[0].mxu0
  %4607 = vmatprep.mubr.f32.mxu0 0.0
  %4608 = vmatmul.mubr.f32.gmra.mrb[0].mxu0 %v113
  %v4609 = vpop.f32.mrb[0].mxu0
  %v4610 = vadd.f32 0.0, %v4609
  %v4611 = vpop.f32.mrb[0].mxu0
  %4612 = vmatprep.mubr.f32.mxu0 0.0
  %4613 = vmatmul.mubr.f32.gmra.mrb[0].mxu0 %v114
  %v4614 = vpop.f32.mrb[0].mxu0
  %v4615 = vadd.f32 0.0, %v4614
  %v4616 = vpop.f32.mrb[0].mxu0
  %4617 = vmatprep.mubr.f32.mxu0 0.0
  %4618 = vmatmul.mubr.f32.gmra.mrb[0].mxu0 %v115
  %v4619 = vpop.f32.mrb[0].mxu0
  %v4620 = vadd.f32 0.0, %v4619
  %v4621 = vpop.f32.mrb[0].mxu0
  %4622 = vdwg.mxu0
  %v4623 = vadd.f32 %v4269, %v4585
  %v4624 = vadd.f32 %v4270, %v4590
  %v4625 = vadd.f32 %v4271, %v4595
  %v4626 = vadd.f32 %v4272, %v4600
  %v4627 = vadd.f32 %v4273, %v4605
  %v4628 = vadd.f32 %v4274, %v4610
  %v4629 = vadd.f32 %v4275, %v4615
  %v4630 = vadd.f32 %v4276, %v4620
  %v4631 = vsel %vm4083, %v4623, 0.0
  %4632 = vadd.xlane.f32.xlu0 %v4631
  %v4633 = vpop.xlane.xlu0 %4632
  %v4634 = vsel %vm4083, %v4624, 0.0
  %4635 = vadd.xlane.f32.xlu0 %v4634
  %v4636 = vpop.xlane.xlu0 %4635
  %v4637 = vsel %vm4083, %v4625, 0.0
  %4638 = vadd.xlane.f32.xlu0 %v4637
  %v4639 = vpop.xlane.xlu0 %4638
  %v4640 = vsel %vm4083, %v4626, 0.0
  %4641 = vadd.xlane.f32.xlu0 %v4640
  %v4642 = vpop.xlane.xlu0 %4641
  %v4643 = vsel %vm4083, %v4627, 0.0
  %4644 = vadd.xlane.f32.xlu0 %v4643
  %v4645 = vpop.xlane.xlu0 %4644
  %v4646 = vsel %vm4083, %v4628, 0.0
  %4647 = vadd.xlane.f32.xlu0 %v4646
  %v4648 = vpop.xlane.xlu0 %4647
  %v4649 = vsel %vm4083, %v4629, 0.0
  %4650 = vadd.xlane.f32.xlu0 %v4649
  %v4651 = vpop.xlane.xlu0 %4650
  %v4652 = vsel %vm4083, %v4630, 0.0
  %4653 = vadd.xlane.f32.xlu0 %v4652
  %v4654 = vpop.xlane.xlu0 %4653
  %v4655 = vmul.f32 %v4633, %v4108
  %v4656 = vmul.f32 %v4636, %v4108
  %v4657 = vmul.f32 %v4639, %v4108
  %v4658 = vmul.f32 %v4642, %v4108
  %v4659 = vmul.f32 %v4645, %v4108
  %v4660 = vmul.f32 %v4648, %v4108
  %v4661 = vmul.f32 %v4651, %v4108
  %v4662 = vmul.f32 %v4654, %v4108
  %v4663 = vsub.f32 %v4623, %v4655
  %v4664 = vsub.f32 %v4624, %v4656
  %v4665 = vsub.f32 %v4625, %v4657
  %v4666 = vsub.f32 %v4626, %v4658
  %v4667 = vsub.f32 %v4627, %v4659
  %v4668 = vsub.f32 %v4628, %v4660
  %v4669 = vsub.f32 %v4629, %v4661
  %v4670 = vsub.f32 %v4630, %v4662
  %v4671 = vmul.f32 %v4663, %v4663
  %v4672 = vmul.f32 %v4664, %v4664
  %v4673 = vmul.f32 %v4665, %v4665
  %v4674 = vmul.f32 %v4666, %v4666
  %v4675 = vmul.f32 %v4667, %v4667
  %v4676 = vmul.f32 %v4668, %v4668
  %v4677 = vmul.f32 %v4669, %v4669
  %v4678 = vmul.f32 %v4670, %v4670
  %v4679 = vsel %vm4083, %v4671, 0.0
  %4680 = vadd.xlane.f32.xlu0 %v4679
  %v4681 = vpop.xlane.xlu0 %4680
  %v4682 = vsel %vm4083, %v4672, 0.0
  %4683 = vadd.xlane.f32.xlu0 %v4682
  %v4684 = vpop.xlane.xlu0 %4683
  %v4685 = vsel %vm4083, %v4673, 0.0
  %4686 = vadd.xlane.f32.xlu0 %v4685
  %v4687 = vpop.xlane.xlu0 %4686
  %v4688 = vsel %vm4083, %v4674, 0.0
  %4689 = vadd.xlane.f32.xlu0 %v4688
  %v4690 = vpop.xlane.xlu0 %4689
  %v4691 = vsel %vm4083, %v4675, 0.0
  %4692 = vadd.xlane.f32.xlu0 %v4691
  %v4693 = vpop.xlane.xlu0 %4692
  %v4694 = vsel %vm4083, %v4676, 0.0
  %4695 = vadd.xlane.f32.xlu0 %v4694
  %v4696 = vpop.xlane.xlu0 %4695
  %v4697 = vsel %vm4083, %v4677, 0.0
  %4698 = vadd.xlane.f32.xlu0 %v4697
  %v4699 = vpop.xlane.xlu0 %4698
  %v4700 = vsel %vm4083, %v4678, 0.0
  %4701 = vadd.xlane.f32.xlu0 %v4700
  %v4702 = vpop.xlane.xlu0 %4701
  %v4703 = vmul.f32 %v4681, %v4108
  %v4704 = vmul.f32 %v4684, %v4108
  %v4705 = vmul.f32 %v4687, %v4108
  %v4706 = vmul.f32 %v4690, %v4108
  %v4707 = vmul.f32 %v4693, %v4108
  %v4708 = vmul.f32 %v4696, %v4108
  %v4709 = vmul.f32 %v4699, %v4108
  %v4710 = vmul.f32 %v4702, %v4108
  %v4711 = vadd.f32 %v4703, 1e-05
  %v4712 = vadd.f32 %v4704, 1e-05
  %v4713 = vadd.f32 %v4705, 1e-05
  %v4714 = vadd.f32 %v4706, 1e-05
  %v4715 = vadd.f32 %v4707, 1e-05
  %v4716 = vadd.f32 %v4708, 1e-05
  %v4717 = vadd.f32 %v4709, 1e-05
  %v4718 = vadd.f32 %v4710, 1e-05
  %v4719 = vrsqrt.pop %v4711
  %v4720 = vrsqrt.pop %v4712
  %v4721 = vrsqrt.pop %v4713
  %v4722 = vrsqrt.pop %v4714
  %v4723 = vrsqrt.pop %v4715
  %v4724 = vrsqrt.pop %v4716
  %v4725 = vrsqrt.pop %v4717
  %v4726 = vrsqrt.pop %v4718
  %v4727 = vmul.f32 %v4663, %v4719
  %v4728 = vmul.f32 %v4664, %v4720
  %v4729 = vmul.f32 %v4665, %v4721
  %v4730 = vmul.f32 %v4666, %v4722
  %v4731 = vmul.f32 %v4667, %v4723
  %v4732 = vmul.f32 %v4668, %v4724
  %v4733 = vmul.f32 %v4669, %v4725
  %v4734 = vmul.f32 %v4670, %v4726
  %4735 = vset.pattern.permute.xlu0 2
  %4736 = vperm.xlu0 %4735, %v116
  %v4737 = vpop.permute.xlu0 %4736
  %4739 = vset.pattern.permute.xlu0 2
  %4740 = vperm.xlu0 %4739, %v117
  %v4741 = vpop.permute.xlu0 %4740
  %4743 = vset.pattern.permute.xlu0 2
  %4744 = vperm.xlu0 %4743, %v118
  %v4745 = vpop.permute.xlu0 %4744
  %4747 = vset.pattern.permute.xlu0 2
  %4748 = vperm.xlu0 %4747, %v119
  %v4749 = vpop.permute.xlu0 %4748
  %4751 = vset.pattern.permute.xlu0 2
  %4752 = vperm.xlu0 %4751, %v120
  %v4753 = vpop.permute.xlu0 %4752
  %4755 = vset.pattern.permute.xlu0 2
  %4756 = vperm.xlu0 %4755, %v121
  %v4757 = vpop.permute.xlu0 %4756
  %4759 = vset.pattern.permute.xlu0 2
  %4760 = vperm.xlu0 %4759, %v122
  %v4761 = vpop.permute.xlu0 %4760
  %4763 = vset.pattern.permute.xlu0 2
  %4764 = vperm.xlu0 %4763, %v123
  %v4765 = vpop.permute.xlu0 %4764
  %v4767 = vmul.f32 %v4727, %v4737
  %v4768 = vmul.f32 %v4728, %v4741
  %v4769 = vmul.f32 %v4729, %v4745
  %v4770 = vmul.f32 %v4730, %v4749
  %v4771 = vmul.f32 %v4731, %v4753
  %v4772 = vmul.f32 %v4732, %v4757
  %v4773 = vmul.f32 %v4733, %v4761
  %v4774 = vmul.f32 %v4734, %v4765
  %4775 = vset.pattern.permute.xlu0 3
  %4776 = vperm.xlu0 %4775, %v116
  %v4777 = vpop.permute.xlu0 %4776
  %4779 = vset.pattern.permute.xlu0 3
  %4780 = vperm.xlu0 %4779, %v117
  %v4781 = vpop.permute.xlu0 %4780
  %4783 = vset.pattern.permute.xlu0 3
  %4784 = vperm.xlu0 %4783, %v118
  %v4785 = vpop.permute.xlu0 %4784
  %4787 = vset.pattern.permute.xlu0 3
  %4788 = vperm.xlu0 %4787, %v119
  %v4789 = vpop.permute.xlu0 %4788
  %4791 = vset.pattern.permute.xlu0 3
  %4792 = vperm.xlu0 %4791, %v120
  %v4793 = vpop.permute.xlu0 %4792
  %4795 = vset.pattern.permute.xlu0 3
  %4796 = vperm.xlu0 %4795, %v121
  %v4797 = vpop.permute.xlu0 %4796
  %4799 = vset.pattern.permute.xlu0 3
  %4800 = vperm.xlu0 %4799, %v122
  %v4801 = vpop.permute.xlu0 %4800
  %4803 = vset.pattern.permute.xlu0 3
  %4804 = vperm.xlu0 %4803, %v123
  %v4805 = vpop.permute.xlu0 %4804
  %v4807 = vadd.f32 %v4767, %v4777
  %v4808 = vadd.f32 %v4768, %v4781
  %v4809 = vadd.f32 %v4769, %v4785
  %v4810 = vadd.f32 %v4770, %v4789
  %v4811 = vadd.f32 %v4771, %v4793
  %v4812 = vadd.f32 %v4772, %v4797
  %v4813 = vadd.f32 %v4773, %v4801
  %v4814 = vadd.f32 %v4774, %v4805
  %4815 = vst.msk [vmem:[#allocation2] sm:$0xff] %vm4083, %v4807
  %4816 = vst.msk [vmem:[#allocation2 + $0x8] sm:$0xff] %vm4083, %v4808
  %4817 = vst.msk [vmem:[#allocation2 + $0x10] sm:$0xff] %vm4083, %v4809
  %4818 = vst.msk [vmem:[#allocation2 + $0x18] sm:$0xff] %vm4083, %v4810
  %4819 = vst.msk [vmem:[#allocation2 + $0x20] sm:$0xff] %vm4083, %v4811
  %4820 = vst.msk [vmem:[#allocation2 + $0x28] sm:$0xff] %vm4083, %v4812
  %4821 = vst.msk [vmem:[#allocation2 + $0x30] sm:$0xff] %vm4083, %v4813
  %4822 = vst.msk [vmem:[#allocation2 + $0x38] sm:$0xff] %vm4083, %v4814
  %v4823 = vld [vmem:[#allocation2] sm:$0xff]
  %v4824 = vld [vmem:[#allocation2 + $0x8] sm:$0xff]
  %v4825 = vld [vmem:[#allocation2 + $0x10] sm:$0xff]
  %v4826 = vld [vmem:[#allocation2 + $0x18] sm:$0xff]
  %v4827 = vld [vmem:[#allocation2 + $0x20] sm:$0xff]
  %v4828 = vld [vmem:[#allocation2 + $0x28] sm:$0xff]
  %v4829 = vld [vmem:[#allocation2 + $0x30] sm:$0xff]
  %v4830 = vld [vmem:[#allocation2 + $0x38] sm:$0xff]
  %4831 = vst.msk [vmem:[%s5] sm:$0xff] %vm1295, %v4823
  %4832 = vst.msk [vmem:[%s5 + $0x8] sm:$0xff] %vm1295, %v4824
  %4833 = vst.msk [vmem:[%s5 + $0x10] sm:$0xff] %vm1295, %v4825
  %4834 = vst.msk [vmem:[%s5 + $0x18] sm:$0xff] %vm1295, %v4826
  %4835 = vst.msk [vmem:[%s5 + $0x20] sm:$0xff] %vm1295, %v4827
  %4836 = vst.msk [vmem:[%s5 + $0x28] sm:$0xff] %vm1295, %v4828
  %4837 = vst.msk [vmem:[%s5 + $0x30] sm:$0xff] %vm1295, %v4829
  %4838 = vst.msk [vmem:[%s5 + $0x38] sm:$0xff] %vm1295, %v4830
  %v4839 = vld [vmem:[#allocation2] sm:$0xff]
  %v4840 = vld [vmem:[#allocation2 + $0x8] sm:$0xff]
  %v4841 = vld [vmem:[#allocation2 + $0x10] sm:$0xff]
  %v4842 = vld [vmem:[#allocation2 + $0x18] sm:$0xff]
  %v4843 = vld [vmem:[#allocation2 + $0x20] sm:$0xff]
  %v4844 = vld [vmem:[#allocation2 + $0x28] sm:$0xff]
  %v4845 = vld [vmem:[#allocation2 + $0x30] sm:$0xff]
  %v4846 = vld [vmem:[#allocation2 + $0x38] sm:$0xff]
  %4855 = vrot.lane.b32.xlu0 %v4839, 112
  %v4856 = vpop.permute.xlu0 %4855
  %4857 = vrot.lane.b32.xlu0 %v4840, 112
  %v4858 = vpop.permute.xlu0 %4857
  %4859 = vrot.lane.b32.xlu0 %v4841, 112
  %v4860 = vpop.permute.xlu0 %4859
  %4861 = vrot.lane.b32.xlu0 %v4842, 112
  %v4862 = vpop.permute.xlu0 %4861
  %4863 = vrot.lane.b32.xlu0 %v4843, 112
  %v4864 = vpop.permute.xlu0 %4863
  %4865 = vrot.lane.b32.xlu0 %v4844, 112
  %v4866 = vpop.permute.xlu0 %4865
  %4867 = vrot.lane.b32.xlu0 %v4845, 112
  %v4868 = vpop.permute.xlu0 %4867
  %4869 = vrot.lane.b32.xlu0 %v4846, 112
  %v4870 = vpop.permute.xlu0 %4869
  %s4879 = scalar_lea.vmem %s5, 64
  %4880 = vst.msk [vmem:[%s4879] sm:$0xff] %vm1295, %v4856
  %4881 = vst.msk [vmem:[%s4879 + $0x8] sm:$0xff] %vm1295, %v4858
  %4882 = vst.msk [vmem:[%s4879 + $0x10] sm:$0xff] %vm1295, %v4860
  %4883 = vst.msk [vmem:[%s4879 + $0x18] sm:$0xff] %vm1295, %v4862
  %4884 = vst.msk [vmem:[%s4879 + $0x20] sm:$0xff] %vm1295, %v4864
  %4885 = vst.msk [vmem:[%s4879 + $0x28] sm:$0xff] %vm1295, %v4866
  %4886 = vst.msk [vmem:[%s4879 + $0x30] sm:$0xff] %vm1295, %v4868
  %4887 = vst.msk [vmem:[%s4879 + $0x38] sm:$0xff] %vm1295, %v4870
  // Predicated region
  $region22: #{tpu_custom_call.1} parent=0 // pred_check
    _
  $region23: #{tpu_custom_call.1} parent=0 // pred_check_branch
    %4889 = sbr.rel (0) target = $region25
  $region24: #{tpu_custom_call.1} parent=0 // pred_region
    _
  $region25: #{tpu_custom_call.1} parent=0 // pred_fallthru
    _
  // Predicated region
  $region26: #{tpu_custom_call.1} parent=0 // pred_check
    _
  $region27: #{tpu_custom_call.1} parent=0 // pred_check_branch
    %4891 = sbr.rel (0) target = $region29
  $region28: #{tpu_custom_call.1} parent=0 // pred_region
    _
  $region29: #{tpu_custom_call.1} parent=0 // pred_fallthru
    _

</llo_original>
